<compile_context>
chip_gen: v5e
topology: v5e:2x2
jax: 0.10.0
libtpu: 0.0.40
codegen_flags: <defaults>
</compile_context>

<pallas_src>
import functools
import math

import jax
import jax.numpy as jnp
from jax.experimental import pallas as pl
from jax.experimental.pallas import tpu as pltpu

HPAD = 128  # padded channel width (one full lane dimension)


# ----------------------------- in-kernel math ------------------------------ #

def _gelu(x):
    # tanh-approximation GELU: transcendental on the EUP, tiny VALU polynomial.
    c = 0.7978845608028654  # sqrt(2/pi)
    return 0.5 * x * (1.0 + jnp.tanh(c * (x + 0.044715 * x * x * x)))


# ------------------------------- fused kernel ------------------------------ #

def _ts2vec_fused_kernel(x_ref, w_in_ref, b_in_ref, w_conv_ref, b_conv_ref,
                         wp_ref, bp_ref, o_ref, carry_ref, *, dilations):
    Bt, T, cin = x_ref.shape
    R = Bt * T
    H = o_ref.shape[-1]                  # = HPAD
    n_blocks = len(dilations)

    # Per-row time index broadcast across lanes.  Rows are flattened (b, t)
    # pairs; the masks below provide SamePadConv zero padding AND keep the
    # row-axis rolls from leaking data across batch elements.
    t_idx = jax.lax.broadcasted_iota(jnp.int32, (Bt, T, H), 1).reshape(R, H)

    # ---- input projection: Linear(input_dims -> hidden), NaN rows zeroed ----
    x = x_ref[...].reshape(R, cin)                            # (R, Cin) f32
    nan_row = jnp.max(jnp.where(jnp.isnan(x), 1.0, 0.0),
                      axis=-1, keepdims=True) > 0.0           # (R, 1)
    xz = jnp.where(nan_row, 0.0, x).astype(jnp.bfloat16)      # x[~nan_mask] = 0
    h = jnp.dot(xz, w_in_ref[...],
                preferred_element_type=jnp.float32) + b_in_ref[...]
    # mask == all_true & nan_mask  (eval / mask=False path).
    # TODO(synk): binomial/continuous random masking (mask=True training path)
    # is not implemented.
    carry_ref[...] = jnp.where(nan_row, 0.0, h)               # (R, H) f32

    def conv(g, idx, d):
        """SamePadConv(k=3, dilation=d): y[t] = b + sum_k x[t+(k-1)d] @ W_k.

        All 3 taps folded into one K=3*H MXU contraction; shifted taps built
        with pltpu.roll (XLU) + time mask (zero 'same' padding, per-element).
        Taps with |shift| >= T are all-padding and skipped at trace time.
        """
        if d < T:
            lo = jnp.where(t_idx >= d, pltpu.roll(g, shift=d, axis=0), 0.0)
            hi = jnp.where(t_idx < T - d,
                           pltpu.roll(g, shift=R - d, axis=0), 0.0)
            lhs = jnp.concatenate([lo, g, hi], axis=1).astype(jnp.bfloat16)
            acc = jnp.dot(lhs, w_conv_ref[idx],
                          preferred_element_type=jnp.float32)
        else:                                   # dead side taps: centre only
            acc = jnp.dot(g.astype(jnp.bfloat16), w_conv_ref[idx, H:2 * H, :],
                          preferred_element_type=jnp.float32)
        return acc + b_conv_ref[idx]

    # ---- DilatedConvEncoder: VMEM-resident activation across all blocks ----
    for i, d in enumerate(dilations):
        x_in = carry_ref[...]                                 # (R, H) f32
        if i == n_blocks - 1:     # final block: 1x1-conv projector residual
            residual = jnp.dot(x_in.astype(jnp.bfloat16), wp_ref[...],
                               preferred_element_type=jnp.float32) + bp_ref[...]
        else:
            residual = x_in
        h1 = conv(_gelu(x_in), 2 * i, d)
        h2 = conv(_gelu(h1), 2 * i + 1, d)
        out = h2 + residual
        if i == n_blocks - 1:
            # repr_dropout(p=0.1) is identity at inference; write straight to
            # the output block (no trailing carry copy).
            o_ref[...] = out.reshape(Bt, T, H)
        else:
            carry_ref[...] = out


# ------------------------------ pallas glue -------------------------------- #

def _full_spec(shape):
    n = len(shape)
    return pl.BlockSpec(shape, lambda g, n=n: (0,) * n)


def _pick_bt(B, T, target_rows=512):
    """Largest divisor of B with Bt*T <= ~target_rows: feeds the MXU >=256 rows
    per dot when the batch allows, while keeping multiple grid steps so the
    BlockSpec pipeline can overlap input fetch / output writeback at large B."""
    bt = max(1, min(B, target_rows // max(T, 1)))
    while B % bt:
        bt -= 1
    return bt


def _fused_call(x, params):
    B, T, cin = x.shape
    n_blocks = params["w_conv"].shape[0] // 2
    dilations = tuple(2 ** i for i in range(n_blocks))
    bt = _pick_bt(B, T)
    kernel = functools.partial(_ts2vec_fused_kernel, dilations=dilations)
    return pl.pallas_call(
        kernel,
        out_shape=jax.ShapeDtypeStruct((B, T, HPAD), jnp.float32),
        grid_spec=pltpu.PrefetchScalarGridSpec(
            num_scalar_prefetch=0,
            grid=(B // bt,),
            in_specs=[
                pl.BlockSpec((bt, T, cin), lambda g: (g, 0, 0)),
                _full_spec(params["w_in"].shape),
                _full_spec(params["b_in"].shape),
                _full_spec(params["w_conv"].shape),
                _full_spec(params["b_conv"].shape),
                _full_spec(params["wp"].shape),
                _full_spec(params["bp"].shape),
            ],
            out_specs=pl.BlockSpec((bt, T, HPAD), lambda g: (g, 0, 0)),
            scratch_shapes=[
                pltpu.VMEM((bt * T, HPAD), jnp.float32),   # block-to-block carry
            ],
        ),
        compiler_params=pltpu.CompilerParams(
            # v7x: batch-blocks shard across the two TensorCores; on v5e/v6e
            # the grid is a serial loop and latency hiding comes from the
            # BlockSpec pipeline.  bf16 weights (~2.2 MiB, ~4.4 MiB double
            # buffered) keep total VMEM far inside v7x's 64 MiB, so the
            # default scoped limit is sufficient at these shapes.
            dimension_semantics=("parallel",),
        ),
    )(x, params["w_in"], params["b_in"], params["w_conv"], params["b_conv"],
      params["wp"], params["bp"])


@functools.partial(jax.jit, static_argnames=("output_dims",))
def ts2vec_forward(x, params, *, output_dims):
    """TS2Vec.forward(x, mask=False): (B, T, input_dims) -> (B, T, output_dims)."""
    h = _fused_call(x, params)
    # Kernel stores lane-dense 128-channel blocks; strip padding host-side.
    # (For very large B*T, emit output_dims / bf16 directly to cut writeback.)
    return h[:, :, :output_dims]


# ------------------------------ model setup -------------------------------- #

def _pad_to(a, shape):
    return jnp.pad(a, [(0, s - d) for d, s in zip(a.shape, shape)])


def init_params(key, input_dims, output_dims, hidden_dims=64, depth=10):
    """Deterministic synthetic parameters matching the TSEncoder shapes.

    torch Linear weight (H, Cin)    -> stored transposed (Cin, H)
    torch Conv1d weight (Co, Ci, K) -> stored per conv as (3*HPAD, HPAD):
        rows [0:128]   = W_{k=0}  (tap x[t-d])
        rows [128:256] = W_{k=1}  (centre tap)
        rows [256:384] = W_{k=2}  (tap x[t+d])
    Channel dims zero-padded to HPAD=128 lanes; padded lanes stay exactly zero
    through the whole network.  Matmul weights are bfloat16 (kernel accumulates
    in f32); biases stay float32.
    """
    channels = [hidden_dims] * depth + [output_dims]
    n_blocks = len(channels)
    keys = iter(jax.random.split(key, 6 + 4 * n_blocks))

    def u(shape, fan_in):
        bound = 1.0 / math.sqrt(fan_in)
        return jax.random.uniform(next(keys), shape, jnp.float32, -bound, bound)

    def conv_w(in_ch, out_ch):
        w = u((3, in_ch, out_ch), in_ch * 3)
        return _pad_to(w, (3, HPAD, HPAD)).reshape(3 * HPAD, HPAD)

    w_in = _pad_to(u((input_dims, hidden_dims), input_dims), (input_dims, HPAD))
    b_in = _pad_to(u((1, hidden_dims), input_dims), (1, HPAD))

    w_conv_list, b_conv_list = [], []
    wp = jnp.zeros((HPAD, HPAD), jnp.float32)
    bp = jnp.zeros((1, HPAD), jnp.float32)
    in_ch = hidden_dims
    for i, out_ch in enumerate(channels):
        final = (i == n_blocks - 1)
        w_conv_list.append(conv_w(in_ch, out_ch))
        b_conv_list.append(_pad_to(u((1, out_ch), in_ch * 3), (1, HPAD)))
        w_conv_list.append(conv_w(out_ch, out_ch))
        b_conv_list.append(_pad_to(u((1, out_ch), out_ch * 3), (1, HPAD)))
        if in_ch != out_ch or final:
            assert final, "projector only expected on the final ConvBlock"
            wp = _pad_to(u((in_ch, out_ch), in_ch), (HPAD, HPAD))   # 1x1 conv
            bp = _pad_to(u((1, out_ch), in_ch), (1, HPAD))
        in_ch = out_ch

    return {
        "w_in": w_in.astype(jnp.bfloat16),
        "b_in": b_in,
        "w_conv": jnp.stack(w_conv_list).astype(jnp.bfloat16),  # (2*nb, 384, 128)
        "b_conv": jnp.stack(b_conv_list),                        # (2*nb, 1, 128)
        "wp": wp.astype(jnp.bfloat16),
        "bp": bp,
    }


# ------------------------- pure-JAX reference check ------------------------ #

def _ref_forward(x, params, output_dims):
    """Mirrors the kernel's numerics (bf16 matmul operands, f32 accumulation,
    tanh-GELU) but builds the dilated-conv taps with explicit zero padding —
    an independent check of the roll/mask tap construction and weight order."""
    B, T, _ = x.shape

    def mm(a, w):
        return jnp.dot(a.astype(jnp.bfloat16), w.astype(jnp.bfloat16),
                       preferred_element_type=jnp.float32)

    nan_row = jnp.any(jnp.isnan(x), axis=-1, keepdims=True)
    xz = jnp.where(nan_row, 0.0, x)
    cur = jnp.where(nan_row, 0.0, mm(xz, params["w_in"]) + params["b_in"])

    n_blocks = params["w_conv"].shape[0] // 2

    def conv(g, idx, d):
        w = params["w_conv"][idx].reshape(3, HPAD, HPAD)
        p = jnp.pad(g, ((0, 0), (d, d), (0, 0)))
        y = (mm(p[:, 0:T], w[0]) + mm(p[:, d:T + d], w[1])
             + mm(p[:, 2 * d:T + 2 * d], w[2]))
        return y + params["b_conv"][idx]

    for i in range(n_blocks):
        d = 2 ** i
        if i == n_blocks - 1:
            res = mm(cur, params["wp"]) + params["bp"]
        else:
            res = cur
        cur = conv(_gelu(conv(_gelu(cur), 2 * i, d)), 2 * i + 1, d) + res
    return cur[:, :, :output_dims]


# --------------------------------- main ------------------------------------ #

if __name__ == "__main__":
    B, T = 2, 16
    input_size, output_size = 8, 32      # TS2Vec(input_size, output_size)
    key = jax.random.PRNGKey(0)
    kx, kp = jax.random.split(key)

    x = jax.random.normal(kx, (B, T, input_size), jnp.float32)
    params = init_params(kp, input_size, output_size)   # hidden=64, depth=10

    out = ts2vec_forward(x, params, output_dims=output_size)
    out = jax.block_until_ready(out)

    assert out.shape == (B, T, output_size), out.shape
    assert out.dtype == jnp.float32
    assert bool(jnp.all(jnp.isfinite(out)))

    ref = _ref_forward(x, params, output_dims=output_size)
    err = float(jnp.max(jnp.abs(out - ref)))
    assert err < 5e-3, f"max |kernel - reference| = {err}"

    print("KERNEL_OK")
</pallas_src>

<mosaic_0001>
module attributes {stable_mosaic.version = 11 : i64} {
  func.func @_ts2vec_fused_kernel(%arg0: i32, %arg1: memref<2x16x8xf32, #tpu.memory_space<vmem>>, %arg2: memref<8x128xbf16, #tpu.memory_space<vmem>>, %arg3: memref<1x128xf32, #tpu.memory_space<vmem>>, %arg4: memref<22x384x128xbf16, #tpu.memory_space<vmem>>, %arg5: memref<22x1x128xf32, #tpu.memory_space<vmem>>, %arg6: memref<128x128xbf16, #tpu.memory_space<vmem>>, %arg7: memref<1x128xf32, #tpu.memory_space<vmem>>, %arg8: memref<2x16x128xf32, #tpu.memory_space<vmem>>, %arg9: memref<32x128xf32, #tpu.memory_space<vmem>>) attributes {dimension_semantics = [#tpu.dimension_semantics<parallel>], iteration_bounds = array<i64: 1>, scalar_prefetch = 0 : i64, scratch_operands = 1 : i64, tpu.core_type = #tpu.core_type<tc>, window_params = [{transform_indices = @transform_0, window_bounds = array<i64: 2, 16, 8>}, {pipeline_mode = #tpu.pipeline_mode<synchronous>, transform_indices = @transform_1, window_bounds = array<i64: 8, 128>}, {pipeline_mode = #tpu.pipeline_mode<synchronous>, transform_indices = @transform_2, window_bounds = array<i64: 1, 128>}, {pipeline_mode = #tpu.pipeline_mode<synchronous>, transform_indices = @transform_3, window_bounds = array<i64: 22, 384, 128>}, {pipeline_mode = #tpu.pipeline_mode<synchronous>, transform_indices = @transform_4, window_bounds = array<i64: 22, 1, 128>}, {pipeline_mode = #tpu.pipeline_mode<synchronous>, transform_indices = @transform_5, window_bounds = array<i64: 128, 128>}, {pipeline_mode = #tpu.pipeline_mode<synchronous>, transform_indices = @transform_6, window_bounds = array<i64: 1, 128>}, {transform_indices = @transform_7, window_bounds = array<i64: 2, 16, 128>}]} {
    %0 = tpu.iota {dimensions = array<i32: 1>} : vector<2x16x128xi32>
    %1 = vector.shape_cast %0 : vector<2x16x128xi32> to vector<32x128xi32>
    %c0 = arith.constant 0 : index
    %c0_0 = arith.constant 0 : index
    %c0_1 = arith.constant 0 : index
    %2 = vector.load %arg1[%c0, %c0_0, %c0_1] : memref<2x16x8xf32, #tpu.memory_space<vmem>>, vector<2x16x8xf32>
    %3 = vector.shape_cast %2 : vector<2x16x8xf32> to vector<32x8xf32>
    %4 = arith.cmpf one, %3, %3 : vector<32x8xf32>
    %cst = arith.constant 1.000000e+00 : f32
    %cst_2 = arith.constant 0.000000e+00 : f32
    %5 = vector.broadcast %cst : f32 to vector<32x8xf32>
    %6 = vector.broadcast %cst_2 : f32 to vector<32x8xf32>
    %7 = arith.select %4, %5, %6 : vector<32x8xi1>, vector<32x8xf32>
    %cst_3 = arith.constant dense<0xFF800000> : vector<32xf32>
    %8 = vector.multi_reduction <maximumf>, %7, %cst_3 [1] : vector<32x8xf32> to vector<32xf32>
    %9 = vector.shape_cast %8 : vector<32xf32> to vector<32x1xf32>
    %cst_4 = arith.constant 0.000000e+00 : f32
    %10 = vector.broadcast %cst_4 : f32 to vector<32x1xf32>
    %11 = arith.cmpf ogt, %9, %10 : vector<32x1xf32>
    %cst_5 = arith.constant 0.000000e+00 : f32
    %12 = vector.shape_cast %11 : vector<32x1xi1> to vector<32x1xi1>
    %13 = vector.broadcast %12 : vector<32x1xi1> to vector<32x8xi1>
    %14 = vector.broadcast %cst_5 : f32 to vector<32x8xf32>
    %15 = arith.select %13, %14, %3 : vector<32x8xi1>, vector<32x8xf32>
    %16 = arith.truncf %15 : vector<32x8xf32> to vector<32x8xbf16>
    %c0_6 = arith.constant 0 : index
    %c0_7 = arith.constant 0 : index
    %17 = vector.load %arg2[%c0_6, %c0_7] : memref<8x128xbf16, #tpu.memory_space<vmem>>, vector<8x128xbf16>
    %cst_8 = arith.constant dense<0.000000e+00> : vector<32x128xf32>
    %18 = tpu.matmul %16, %17, %cst_8 {dimension_numbers = #tpu.dot_dimension_numbers<[1], [0], [0], [1], [0, 0, 1, 1], [], []>} : vector<32x8xbf16>, vector<8x128xbf16>, vector<32x128xf32> -> vector<32x128xf32>
    %c0_9 = arith.constant 0 : index
    %c0_10 = arith.constant 0 : index
    %19 = vector.load %arg3[%c0_9, %c0_10] : memref<1x128xf32, #tpu.memory_space<vmem>>, vector<1x128xf32>
    %20 = vector.broadcast %19 : vector<1x128xf32> to vector<32x128xf32>
    %21 = arith.addf %18, %20 : vector<32x128xf32>
    %cst_11 = arith.constant 0.000000e+00 : f32
    %22 = vector.shape_cast %11 : vector<32x1xi1> to vector<32x1xi1>
    %23 = vector.broadcast %22 : vector<32x1xi1> to vector<32x128xi1>
    %24 = vector.broadcast %cst_11 : f32 to vector<32x128xf32>
    %25 = arith.select %23, %24, %21 : vector<32x128xi1>, vector<32x128xf32>
    %c0_12 = arith.constant 0 : index
    %c0_13 = arith.constant 0 : index
    %26 = vector.load %arg9[%c0_12, %c0_13] : memref<32x128xf32, #tpu.memory_space<vmem>>, vector<32x128xf32>
    tpu.vector_store %arg9[%c0_12, %c0_13], %25 {strides = array<i32>} : memref<32x128xf32, #tpu.memory_space<vmem>>, vector<32x128xf32>,
    %c0_14 = arith.constant 0 : index
    %c0_15 = arith.constant 0 : index
    %27 = vector.load %arg9[%c0_14, %c0_15] : memref<32x128xf32, #tpu.memory_space<vmem>>, vector<32x128xf32>
    %cst_16 = arith.constant 5.000000e-01 : f32
    %28 = vector.broadcast %cst_16 : f32 to vector<32x128xf32>
    %29 = arith.mulf %28, %27 : vector<32x128xf32>
    %cst_17 = arith.constant 4.471500e-02 : f32
    %30 = vector.broadcast %cst_17 : f32 to vector<32x128xf32>
    %31 = arith.mulf %30, %27 : vector<32x128xf32>
    %32 = arith.mulf %31, %27 : vector<32x128xf32>
    %33 = arith.mulf %32, %27 : vector<32x128xf32>
    %34 = arith.addf %27, %33 : vector<32x128xf32>
    %cst_18 = arith.constant 0.797884583 : f32
    %35 = vector.broadcast %cst_18 : f32 to vector<32x128xf32>
    %36 = arith.mulf %35, %34 : vector<32x128xf32>
    %37 = math.tanh %36 : vector<32x128xf32>
    %cst_19 = arith.constant 1.000000e+00 : f32
    %38 = vector.broadcast %cst_19 : f32 to vector<32x128xf32>
    %39 = arith.addf %38, %37 : vector<32x128xf32>
    %40 = arith.mulf %29, %39 : vector<32x128xf32>
    %c1_i32 = arith.constant 1 : i32
    %41 = vector.broadcast %c1_i32 : i32 to vector<32x128xi32>
    %42 = arith.cmpi sge, %1, %41 : vector<32x128xi32>
    %c1_i32_20 = arith.constant 1 : i32
    %43 = tpu.dynamic_rotate %40 by %c1_i32_20 dim 0 : vector<32x128xf32>, i32 -> vector<32x128xf32>
    %cst_21 = arith.constant 0.000000e+00 : f32
    %44 = vector.broadcast %cst_21 : f32 to vector<32x128xf32>
    %45 = arith.select %42, %43, %44 : vector<32x128xi1>, vector<32x128xf32>
    %c15_i32 = arith.constant 15 : i32
    %46 = vector.broadcast %c15_i32 : i32 to vector<32x128xi32>
    %47 = arith.cmpi slt, %1, %46 : vector<32x128xi32>
    %c31_i32 = arith.constant 31 : i32
    %48 = tpu.dynamic_rotate %40 by %c31_i32 dim 0 : vector<32x128xf32>, i32 -> vector<32x128xf32>
    %cst_22 = arith.constant 0.000000e+00 : f32
    %49 = vector.broadcast %cst_22 : f32 to vector<32x128xf32>
    %50 = arith.select %47, %48, %49 : vector<32x128xi1>, vector<32x128xf32>
    %51 = tpu.concatenate %45, %40, %50 in 1 : vector<32x128xf32>, vector<32x128xf32>, vector<32x128xf32> -> vector<32x384xf32>
    %52 = arith.truncf %51 : vector<32x384xf32> to vector<32x384xbf16>
    %c0_23 = arith.constant 0 : index
    %c0_24 = arith.constant 0 : index
    %c0_25 = arith.constant 0 : index
    %53 = vector.load %arg4[%c0_23, %c0_24, %c0_25] : memref<22x384x128xbf16, #tpu.memory_space<vmem>>, vector<1x384x128xbf16>
    %54 = vector.shape_cast %53 : vector<1x384x128xbf16> to vector<384x128xbf16>
    %cst_26 = arith.constant dense<0.000000e+00> : vector<32x128xf32>
    %55 = tpu.matmul %52, %54, %cst_26 {dimension_numbers = #tpu.dot_dimension_numbers<[1], [0], [0], [1], [0, 0, 1, 1], [], []>} : vector<32x384xbf16>, vector<384x128xbf16>, vector<32x128xf32> -> vector<32x128xf32>
    %c0_27 = arith.constant 0 : index
    %c0_28 = arith.constant 0 : index
    %c0_29 = arith.constant 0 : index
    %56 = vector.load %arg5[%c0_27, %c0_28, %c0_29] : memref<22x1x128xf32, #tpu.memory_space<vmem>>, vector<1x1x128xf32>
    %57 = vector.shape_cast %56 : vector<1x1x128xf32> to vector<1x128xf32>
    %58 = vector.broadcast %57 : vector<1x128xf32> to vector<32x128xf32>
    %59 = arith.addf %55, %58 : vector<32x128xf32>
    %cst_30 = arith.constant 5.000000e-01 : f32
    %60 = vector.broadcast %cst_30 : f32 to vector<32x128xf32>
    %61 = arith.mulf %60, %59 : vector<32x128xf32>
    %cst_31 = arith.constant 4.471500e-02 : f32
    %62 = vector.broadcast %cst_31 : f32 to vector<32x128xf32>
    %63 = arith.mulf %62, %59 : vector<32x128xf32>
    %64 = arith.mulf %63, %59 : vector<32x128xf32>
    %65 = arith.mulf %64, %59 : vector<32x128xf32>
    %66 = arith.addf %59, %65 : vector<32x128xf32>
    %cst_32 = arith.constant 0.797884583 : f32
    %67 = vector.broadcast %cst_32 : f32 to vector<32x128xf32>
    %68 = arith.mulf %67, %66 : vector<32x128xf32>
    %69 = math.tanh %68 : vector<32x128xf32>
    %cst_33 = arith.constant 1.000000e+00 : f32
    %70 = vector.broadcast %cst_33 : f32 to vector<32x128xf32>
    %71 = arith.addf %70, %69 : vector<32x128xf32>
    %72 = arith.mulf %61, %71 : vector<32x128xf32>
    %c1_i32_34 = arith.constant 1 : i32
    %73 = vector.broadcast %c1_i32_34 : i32 to vector<32x128xi32>
    %74 = arith.cmpi sge, %1, %73 : vector<32x128xi32>
    %c1_i32_35 = arith.constant 1 : i32
    %75 = tpu.dynamic_rotate %72 by %c1_i32_35 dim 0 : vector<32x128xf32>, i32 -> vector<32x128xf32>
    %cst_36 = arith.constant 0.000000e+00 : f32
    %76 = vector.broadcast %cst_36 : f32 to vector<32x128xf32>
    %77 = arith.select %74, %75, %76 : vector<32x128xi1>, vector<32x128xf32>
    %c15_i32_37 = arith.constant 15 : i32
    %78 = vector.broadcast %c15_i32_37 : i32 to vector<32x128xi32>
    %79 = arith.cmpi slt, %1, %78 : vector<32x128xi32>
    %c31_i32_38 = arith.constant 31 : i32
    %80 = tpu.dynamic_rotate %72 by %c31_i32_38 dim 0 : vector<32x128xf32>, i32 -> vector<32x128xf32>
    %cst_39 = arith.constant 0.000000e+00 : f32
    %81 = vector.broadcast %cst_39 : f32 to vector<32x128xf32>
    %82 = arith.select %79, %80, %81 : vector<32x128xi1>, vector<32x128xf32>
    %83 = tpu.concatenate %77, %72, %82 in 1 : vector<32x128xf32>, vector<32x128xf32>, vector<32x128xf32> -> vector<32x384xf32>
    %84 = arith.truncf %83 : vector<32x384xf32> to vector<32x384xbf16>
    %c1 = arith.constant 1 : index
    %c0_40 = arith.constant 0 : index
    %c0_41 = arith.constant 0 : index
    %85 = vector.load %arg4[%c1, %c0_40, %c0_41] : memref<22x384x128xbf16, #tpu.memory_space<vmem>>, vector<1x384x128xbf16>
    %86 = vector.shape_cast %85 : vector<1x384x128xbf16> to vector<384x128xbf16>
    %cst_42 = arith.constant dense<0.000000e+00> : vector<32x128xf32>
    %87 = tpu.matmul %84, %86, %cst_42 {dimension_numbers = #tpu.dot_dimension_numbers<[1], [0], [0], [1], [0, 0, 1, 1], [], []>} : vector<32x384xbf16>, vector<384x128xbf16>, vector<32x128xf32> -> vector<32x128xf32>
    %c1_43 = arith.constant 1 : index
    %c0_44 = arith.constant 0 : index
    %c0_45 = arith.constant 0 : index
    %88 = vector.load %arg5[%c1_43, %c0_44, %c0_45] : memref<22x1x128xf32, #tpu.memory_space<vmem>>, vector<1x1x128xf32>
    %89 = vector.shape_cast %88 : vector<1x1x128xf32> to vector<1x128xf32>
    %90 = vector.broadcast %89 : vector<1x128xf32> to vector<32x128xf32>
    %91 = arith.addf %87, %90 : vector<32x128xf32>
    %92 = arith.addf %91, %27 : vector<32x128xf32>
    %c0_46 = arith.constant 0 : index
    %c0_47 = arith.constant 0 : index
    %93 = vector.load %arg9[%c0_46, %c0_47] : memref<32x128xf32, #tpu.memory_space<vmem>>, vector<32x128xf32>
    tpu.vector_store %arg9[%c0_46, %c0_47], %92 {strides = array<i32>} : memref<32x128xf32, #tpu.memory_space<vmem>>, vector<32x128xf32>,
    %c0_48 = arith.constant 0 : index
    %c0_49 = arith.constant 0 : index
    %94 = vector.load %arg9[%c0_48, %c0_49] : memref<32x128xf32, #tpu.memory_space<vmem>>, vector<32x128xf32>
    %cst_50 = arith.constant 5.000000e-01 : f32
    %95 = vector.broadcast %cst_50 : f32 to vector<32x128xf32>
    %96 = arith.mulf %95, %94 : vector<32x128xf32>
    %cst_51 = arith.constant 4.471500e-02 : f32
    %97 = vector.broadcast %cst_51 : f32 to vector<32x128xf32>
    %98 = arith.mulf %97, %94 : vector<32x128xf32>
    %99 = arith.mulf %98, %94 : vector<32x128xf32>
    %100 = arith.mulf %99, %94 : vector<32x128xf32>
    %101 = arith.addf %94, %100 : vector<32x128xf32>
    %cst_52 = arith.constant 0.797884583 : f32
    %102 = vector.broadcast %cst_52 : f32 to vector<32x128xf32>
    %103 = arith.mulf %102, %101 : vector<32x128xf32>
    %104 = math.tanh %103 : vector<32x128xf32>
    %cst_53 = arith.constant 1.000000e+00 : f32
    %105 = vector.broadcast %cst_53 : f32 to vector<32x128xf32>
    %106 = arith.addf %105, %104 : vector<32x128xf32>
    %107 = arith.mulf %96, %106 : vector<32x128xf32>
    %c2_i32 = arith.constant 2 : i32
    %108 = vector.broadcast %c2_i32 : i32 to vector<32x128xi32>
    %109 = arith.cmpi sge, %1, %108 : vector<32x128xi32>
    %c2_i32_54 = arith.constant 2 : i32
    %110 = tpu.dynamic_rotate %107 by %c2_i32_54 dim 0 : vector<32x128xf32>, i32 -> vector<32x128xf32>
    %cst_55 = arith.constant 0.000000e+00 : f32
    %111 = vector.broadcast %cst_55 : f32 to vector<32x128xf32>
    %112 = arith.select %109, %110, %111 : vector<32x128xi1>, vector<32x128xf32>
    %c14_i32 = arith.constant 14 : i32
    %113 = vector.broadcast %c14_i32 : i32 to vector<32x128xi32>
    %114 = arith.cmpi slt, %1, %113 : vector<32x128xi32>
    %c30_i32 = arith.constant 30 : i32
    %115 = tpu.dynamic_rotate %107 by %c30_i32 dim 0 : vector<32x128xf32>, i32 -> vector<32x128xf32>
    %cst_56 = arith.constant 0.000000e+00 : f32
    %116 = vector.broadcast %cst_56 : f32 to vector<32x128xf32>
    %117 = arith.select %114, %115, %116 : vector<32x128xi1>, vector<32x128xf32>
    %118 = tpu.concatenate %112, %107, %117 in 1 : vector<32x128xf32>, vector<32x128xf32>, vector<32x128xf32> -> vector<32x384xf32>
    %119 = arith.truncf %118 : vector<32x384xf32> to vector<32x384xbf16>
    %c2 = arith.constant 2 : index
    %c0_57 = arith.constant 0 : index
    %c0_58 = arith.constant 0 : index
    %120 = vector.load %arg4[%c2, %c0_57, %c0_58] : memref<22x384x128xbf16, #tpu.memory_space<vmem>>, vector<1x384x128xbf16>
    %121 = vector.shape_cast %120 : vector<1x384x128xbf16> to vector<384x128xbf16>
    %cst_59 = arith.constant dense<0.000000e+00> : vector<32x128xf32>
    %122 = tpu.matmul %119, %121, %cst_59 {dimension_numbers = #tpu.dot_dimension_numbers<[1], [0], [0], [1], [0, 0, 1, 1], [], []>} : vector<32x384xbf16>, vector<384x128xbf16>, vector<32x128xf32> -> vector<32x128xf32>
    %c2_60 = arith.constant 2 : index
    %c0_61 = arith.constant 0 : index
    %c0_62 = arith.constant 0 : index
    %123 = vector.load %arg5[%c2_60, %c0_61, %c0_62] : memref<22x1x128xf32, #tpu.memory_space<vmem>>, vector<1x1x128xf32>
    %124 = vector.shape_cast %123 : vector<1x1x128xf32> to vector<1x128xf32>
    %125 = vector.broadcast %124 : vector<1x128xf32> to vector<32x128xf32>
    %126 = arith.addf %122, %125 : vector<32x128xf32>
    %cst_63 = arith.constant 5.000000e-01 : f32
    %127 = vector.broadcast %cst_63 : f32 to vector<32x128xf32>
    %128 = arith.mulf %127, %126 : vector<32x128xf32>
    %cst_64 = arith.constant 4.471500e-02 : f32
    %129 = vector.broadcast %cst_64 : f32 to vector<32x128xf32>
    %130 = arith.mulf %129, %126 : vector<32x128xf32>
    %131 = arith.mulf %130, %126 : vector<32x128xf32>
    %132 = arith.mulf %131, %126 : vector<32x128xf32>
    %133 = arith.addf %126, %132 : vector<32x128xf32>
    %cst_65 = arith.constant 0.797884583 : f32
    %134 = vector.broadcast %cst_65 : f32 to vector<32x128xf32>
    %135 = arith.mulf %134, %133 : vector<32x128xf32>
    %136 = math.tanh %135 : vector<32x128xf32>
    %cst_66 = arith.constant 1.000000e+00 : f32
    %137 = vector.broadcast %cst_66 : f32 to vector<32x128xf32>
    %138 = arith.addf %137, %136 : vector<32x128xf32>
    %139 = arith.mulf %128, %138 : vector<32x128xf32>
    %c2_i32_67 = arith.constant 2 : i32
    %140 = vector.broadcast %c2_i32_67 : i32 to vector<32x128xi32>
    %141 = arith.cmpi sge, %1, %140 : vector<32x128xi32>
    %c2_i32_68 = arith.constant 2 : i32
    %142 = tpu.dynamic_rotate %139 by %c2_i32_68 dim 0 : vector<32x128xf32>, i32 -> vector<32x128xf32>
    %cst_69 = arith.constant 0.000000e+00 : f32
    %143 = vector.broadcast %cst_69 : f32 to vector<32x128xf32>
    %144 = arith.select %141, %142, %143 : vector<32x128xi1>, vector<32x128xf32>
    %c14_i32_70 = arith.constant 14 : i32
    %145 = vector.broadcast %c14_i32_70 : i32 to vector<32x128xi32>
    %146 = arith.cmpi slt, %1, %145 : vector<32x128xi32>
    %c30_i32_71 = arith.constant 30 : i32
    %147 = tpu.dynamic_rotate %139 by %c30_i32_71 dim 0 : vector<32x128xf32>, i32 -> vector<32x128xf32>
    %cst_72 = arith.constant 0.000000e+00 : f32
    %148 = vector.broadcast %cst_72 : f32 to vector<32x128xf32>
    %149 = arith.select %146, %147, %148 : vector<32x128xi1>, vector<32x128xf32>
    %150 = tpu.concatenate %144, %139, %149 in 1 : vector<32x128xf32>, vector<32x128xf32>, vector<32x128xf32> -> vector<32x384xf32>
    %151 = arith.truncf %150 : vector<32x384xf32> to vector<32x384xbf16>
    %c3 = arith.constant 3 : index
    %c0_73 = arith.constant 0 : index
    %c0_74 = arith.constant 0 : index
    %152 = vector.load %arg4[%c3, %c0_73, %c0_74] : memref<22x384x128xbf16, #tpu.memory_space<vmem>>, vector<1x384x128xbf16>
    %153 = vector.shape_cast %152 : vector<1x384x128xbf16> to vector<384x128xbf16>
    %cst_75 = arith.constant dense<0.000000e+00> : vector<32x128xf32>
    %154 = tpu.matmul %151, %153, %cst_75 {dimension_numbers = #tpu.dot_dimension_numbers<[1], [0], [0], [1], [0, 0, 1, 1], [], []>} : vector<32x384xbf16>, vector<384x128xbf16>, vector<32x128xf32> -> vector<32x128xf32>
    %c3_76 = arith.constant 3 : index
    %c0_77 = arith.constant 0 : index
    %c0_78 = arith.constant 0 : index
    %155 = vector.load %arg5[%c3_76, %c0_77, %c0_78] : memref<22x1x128xf32, #tpu.memory_space<vmem>>, vector<1x1x128xf32>
    %156 = vector.shape_cast %155 : vector<1x1x128xf32> to vector<1x128xf32>
    %157 = vector.broadcast %156 : vector<1x128xf32> to vector<32x128xf32>
    %158 = arith.addf %154, %157 : vector<32x128xf32>
    %159 = arith.addf %158, %94 : vector<32x128xf32>
    %c0_79 = arith.constant 0 : index
    %c0_80 = arith.constant 0 : index
    %160 = vector.load %arg9[%c0_79, %c0_80] : memref<32x128xf32, #tpu.memory_space<vmem>>, vector<32x128xf32>
    tpu.vector_store %arg9[%c0_79, %c0_80], %159 {strides = array<i32>} : memref<32x128xf32, #tpu.memory_space<vmem>>, vector<32x128xf32>,
    %c0_81 = arith.constant 0 : index
    %c0_82 = arith.constant 0 : index
    %161 = vector.load %arg9[%c0_81, %c0_82] : memref<32x128xf32, #tpu.memory_space<vmem>>, vector<32x128xf32>
    %cst_83 = arith.constant 5.000000e-01 : f32
    %162 = vector.broadcast %cst_83 : f32 to vector<32x128xf32>
    %163 = arith.mulf %162, %161 : vector<32x128xf32>
    %cst_84 = arith.constant 4.471500e-02 : f32
    %164 = vector.broadcast %cst_84 : f32 to vector<32x128xf32>
    %165 = arith.mulf %164, %161 : vector<32x128xf32>
    %166 = arith.mulf %165, %161 : vector<32x128xf32>
    %167 = arith.mulf %166, %161 : vector<32x128xf32>
    %168 = arith.addf %161, %167 : vector<32x128xf32>
    %cst_85 = arith.constant 0.797884583 : f32
    %169 = vector.broadcast %cst_85 : f32 to vector<32x128xf32>
    %170 = arith.mulf %169, %168 : vector<32x128xf32>
    %171 = math.tanh %170 : vector<32x128xf32>
    %cst_86 = arith.constant 1.000000e+00 : f32
    %172 = vector.broadcast %cst_86 : f32 to vector<32x128xf32>
    %173 = arith.addf %172, %171 : vector<32x128xf32>
    %174 = arith.mulf %163, %173 : vector<32x128xf32>
    %c4_i32 = arith.constant 4 : i32
    %175 = vector.broadcast %c4_i32 : i32 to vector<32x128xi32>
    %176 = arith.cmpi sge, %1, %175 : vector<32x128xi32>
    %c4_i32_87 = arith.constant 4 : i32
    %177 = tpu.dynamic_rotate %174 by %c4_i32_87 dim 0 : vector<32x128xf32>, i32 -> vector<32x128xf32>
    %cst_88 = arith.constant 0.000000e+00 : f32
    %178 = vector.broadcast %cst_88 : f32 to vector<32x128xf32>
    %179 = arith.select %176, %177, %178 : vector<32x128xi1>, vector<32x128xf32>
    %c12_i32 = arith.constant 12 : i32
    %180 = vector.broadcast %c12_i32 : i32 to vector<32x128xi32>
    %181 = arith.cmpi slt, %1, %180 : vector<32x128xi32>
    %c28_i32 = arith.constant 28 : i32
    %182 = tpu.dynamic_rotate %174 by %c28_i32 dim 0 : vector<32x128xf32>, i32 -> vector<32x128xf32>
    %cst_89 = arith.constant 0.000000e+00 : f32
    %183 = vector.broadcast %cst_89 : f32 to vector<32x128xf32>
    %184 = arith.select %181, %182, %183 : vector<32x128xi1>, vector<32x128xf32>
    %185 = tpu.concatenate %179, %174, %184 in 1 : vector<32x128xf32>, vector<32x128xf32>, vector<32x128xf32> -> vector<32x384xf32>
    %186 = arith.truncf %185 : vector<32x384xf32> to vector<32x384xbf16>
    %c4 = arith.constant 4 : index
    %c0_90 = arith.constant 0 : index
    %c0_91 = arith.constant 0 : index
    %187 = vector.load %arg4[%c4, %c0_90, %c0_91] : memref<22x384x128xbf16, #tpu.memory_space<vmem>>, vector<1x384x128xbf16>
    %188 = vector.shape_cast %187 : vector<1x384x128xbf16> to vector<384x128xbf16>
    %cst_92 = arith.constant dense<0.000000e+00> : vector<32x128xf32>
    %189 = tpu.matmul %186, %188, %cst_92 {dimension_numbers = #tpu.dot_dimension_numbers<[1], [0], [0], [1], [0, 0, 1, 1], [], []>} : vector<32x384xbf16>, vector<384x128xbf16>, vector<32x128xf32> -> vector<32x128xf32>
    %c4_93 = arith.constant 4 : index
    %c0_94 = arith.constant 0 : index
    %c0_95 = arith.constant 0 : index
    %190 = vector.load %arg5[%c4_93, %c0_94, %c0_95] : memref<22x1x128xf32, #tpu.memory_space<vmem>>, vector<1x1x128xf32>
    %191 = vector.shape_cast %190 : vector<1x1x128xf32> to vector<1x128xf32>
    %192 = vector.broadcast %191 : vector<1x128xf32> to vector<32x128xf32>
    %193 = arith.addf %189, %192 : vector<32x128xf32>
    %cst_96 = arith.constant 5.000000e-01 : f32
    %194 = vector.broadcast %cst_96 : f32 to vector<32x128xf32>
    %195 = arith.mulf %194, %193 : vector<32x128xf32>
    %cst_97 = arith.constant 4.471500e-02 : f32
    %196 = vector.broadcast %cst_97 : f32 to vector<32x128xf32>
    %197 = arith.mulf %196, %193 : vector<32x128xf32>
    %198 = arith.mulf %197, %193 : vector<32x128xf32>
    %199 = arith.mulf %198, %193 : vector<32x128xf32>
    %200 = arith.addf %193, %199 : vector<32x128xf32>
    %cst_98 = arith.constant 0.797884583 : f32
    %201 = vector.broadcast %cst_98 : f32 to vector<32x128xf32>
    %202 = arith.mulf %201, %200 : vector<32x128xf32>
    %203 = math.tanh %202 : vector<32x128xf32>
    %cst_99 = arith.constant 1.000000e+00 : f32
    %204 = vector.broadcast %cst_99 : f32 to vector<32x128xf32>
    %205 = arith.addf %204, %203 : vector<32x128xf32>
    %206 = arith.mulf %195, %205 : vector<32x128xf32>
    %c4_i32_100 = arith.constant 4 : i32
    %207 = vector.broadcast %c4_i32_100 : i32 to vector<32x128xi32>
    %208 = arith.cmpi sge, %1, %207 : vector<32x128xi32>
    %c4_i32_101 = arith.constant 4 : i32
    %209 = tpu.dynamic_rotate %206 by %c4_i32_101 dim 0 : vector<32x128xf32>, i32 -> vector<32x128xf32>
    %cst_102 = arith.constant 0.000000e+00 : f32
    %210 = vector.broadcast %cst_102 : f32 to vector<32x128xf32>
    %211 = arith.select %208, %209, %210 : vector<32x128xi1>, vector<32x128xf32>
    %c12_i32_103 = arith.constant 12 : i32
    %212 = vector.broadcast %c12_i32_103 : i32 to vector<32x128xi32>
    %213 = arith.cmpi slt, %1, %212 : vector<32x128xi32>
    %c28_i32_104 = arith.constant 28 : i32
    %214 = tpu.dynamic_rotate %206 by %c28_i32_104 dim 0 : vector<32x128xf32>, i32 -> vector<32x128xf32>
    %cst_105 = arith.constant 0.000000e+00 : f32
    %215 = vector.broadcast %cst_105 : f32 to vector<32x128xf32>
    %216 = arith.select %213, %214, %215 : vector<32x128xi1>, vector<32x128xf32>
    %217 = tpu.concatenate %211, %206, %216 in 1 : vector<32x128xf32>, vector<32x128xf32>, vector<32x128xf32> -> vector<32x384xf32>
    %218 = arith.truncf %217 : vector<32x384xf32> to vector<32x384xbf16>
    %c5 = arith.constant 5 : index
    %c0_106 = arith.constant 0 : index
    %c0_107 = arith.constant 0 : index
    %219 = vector.load %arg4[%c5, %c0_106, %c0_107] : memref<22x384x128xbf16, #tpu.memory_space<vmem>>, vector<1x384x128xbf16>
    %220 = vector.shape_cast %219 : vector<1x384x128xbf16> to vector<384x128xbf16>
    %cst_108 = arith.constant dense<0.000000e+00> : vector<32x128xf32>
    %221 = tpu.matmul %218, %220, %cst_108 {dimension_numbers = #tpu.dot_dimension_numbers<[1], [0], [0], [1], [0, 0, 1, 1], [], []>} : vector<32x384xbf16>, vector<384x128xbf16>, vector<32x128xf32> -> vector<32x128xf32>
    %c5_109 = arith.constant 5 : index
    %c0_110 = arith.constant 0 : index
    %c0_111 = arith.constant 0 : index
    %222 = vector.load %arg5[%c5_109, %c0_110, %c0_111] : memref<22x1x128xf32, #tpu.memory_space<vmem>>, vector<1x1x128xf32>
    %223 = vector.shape_cast %222 : vector<1x1x128xf32> to vector<1x128xf32>
    %224 = vector.broadcast %223 : vector<1x128xf32> to vector<32x128xf32>
    %225 = arith.addf %221, %224 : vector<32x128xf32>
    %226 = arith.addf %225, %161 : vector<32x128xf32>
    %c0_112 = arith.constant 0 : index
    %c0_113 = arith.constant 0 : index
    %227 = vector.load %arg9[%c0_112, %c0_113] : memref<32x128xf32, #tpu.memory_space<vmem>>, vector<32x128xf32>
    tpu.vector_store %arg9[%c0_112, %c0_113], %226 {strides = array<i32>} : memref<32x128xf32, #tpu.memory_space<vmem>>, vector<32x128xf32>,
    %c0_114 = arith.constant 0 : index
    %c0_115 = arith.constant 0 : index
    %228 = vector.load %arg9[%c0_114, %c0_115] : memref<32x128xf32, #tpu.memory_space<vmem>>, vector<32x128xf32>
    %cst_116 = arith.constant 5.000000e-01 : f32
    %229 = vector.broadcast %cst_116 : f32 to vector<32x128xf32>
    %230 = arith.mulf %229, %228 : vector<32x128xf32>
    %cst_117 = arith.constant 4.471500e-02 : f32
    %231 = vector.broadcast %cst_117 : f32 to vector<32x128xf32>
    %232 = arith.mulf %231, %228 : vector<32x128xf32>
    %233 = arith.mulf %232, %228 : vector<32x128xf32>
    %234 = arith.mulf %233, %228 : vector<32x128xf32>
    %235 = arith.addf %228, %234 : vector<32x128xf32>
    %cst_118 = arith.constant 0.797884583 : f32
    %236 = vector.broadcast %cst_118 : f32 to vector<32x128xf32>
    %237 = arith.mulf %236, %235 : vector<32x128xf32>
    %238 = math.tanh %237 : vector<32x128xf32>
    %cst_119 = arith.constant 1.000000e+00 : f32
    %239 = vector.broadcast %cst_119 : f32 to vector<32x128xf32>
    %240 = arith.addf %239, %238 : vector<32x128xf32>
    %241 = arith.mulf %230, %240 : vector<32x128xf32>
    %c8_i32 = arith.constant 8 : i32
    %242 = vector.broadcast %c8_i32 : i32 to vector<32x128xi32>
    %243 = arith.cmpi sge, %1, %242 : vector<32x128xi32>
    %c8_i32_120 = arith.constant 8 : i32
    %244 = tpu.dynamic_rotate %241 by %c8_i32_120 dim 0 : vector<32x128xf32>, i32 -> vector<32x128xf32>
    %cst_121 = arith.constant 0.000000e+00 : f32
    %245 = vector.broadcast %cst_121 : f32 to vector<32x128xf32>
    %246 = arith.select %243, %244, %245 : vector<32x128xi1>, vector<32x128xf32>
    %c8_i32_122 = arith.constant 8 : i32
    %247 = vector.broadcast %c8_i32_122 : i32 to vector<32x128xi32>
    %248 = arith.cmpi slt, %1, %247 : vector<32x128xi32>
    %c24_i32 = arith.constant 24 : i32
    %249 = tpu.dynamic_rotate %241 by %c24_i32 dim 0 : vector<32x128xf32>, i32 -> vector<32x128xf32>
    %cst_123 = arith.constant 0.000000e+00 : f32
    %250 = vector.broadcast %cst_123 : f32 to vector<32x128xf32>
    %251 = arith.select %248, %249, %250 : vector<32x128xi1>, vector<32x128xf32>
    %252 = tpu.concatenate %246, %241, %251 in 1 : vector<32x128xf32>, vector<32x128xf32>, vector<32x128xf32> -> vector<32x384xf32>
    %253 = arith.truncf %252 : vector<32x384xf32> to vector<32x384xbf16>
    %c6 = arith.constant 6 : index
    %c0_124 = arith.constant 0 : index
    %c0_125 = arith.constant 0 : index
    %254 = vector.load %arg4[%c6, %c0_124, %c0_125] : memref<22x384x128xbf16, #tpu.memory_space<vmem>>, vector<1x384x128xbf16>
    %255 = vector.shape_cast %254 : vector<1x384x128xbf16> to vector<384x128xbf16>
    %cst_126 = arith.constant dense<0.000000e+00> : vector<32x128xf32>
    %256 = tpu.matmul %253, %255, %cst_126 {dimension_numbers = #tpu.dot_dimension_numbers<[1], [0], [0], [1], [0, 0, 1, 1], [], []>} : vector<32x384xbf16>, vector<384x128xbf16>, vector<32x128xf32> -> vector<32x128xf32>
    %c6_127 = arith.constant 6 : index
    %c0_128 = arith.constant 0 : index
    %c0_129 = arith.constant 0 : index
    %257 = vector.load %arg5[%c6_127, %c0_128, %c0_129] : memref<22x1x128xf32, #tpu.memory_space<vmem>>, vector<1x1x128xf32>
    %258 = vector.shape_cast %257 : vector<1x1x128xf32> to vector<1x128xf32>
    %259 = vector.broadcast %258 : vector<1x128xf32> to vector<32x128xf32>
    %260 = arith.addf %256, %259 : vector<32x128xf32>
    %cst_130 = arith.constant 5.000000e-01 : f32
    %261 = vector.broadcast %cst_130 : f32 to vector<32x128xf32>
    %262 = arith.mulf %261, %260 : vector<32x128xf32>
    %cst_131 = arith.constant 4.471500e-02 : f32
    %263 = vector.broadcast %cst_131 : f32 to vector<32x128xf32>
    %264 = arith.mulf %263, %260 : vector<32x128xf32>
    %265 = arith.mulf %264, %260 : vector<32x128xf32>
    %266 = arith.mulf %265, %260 : vector<32x128xf32>
    %267 = arith.addf %260, %266 : vector<32x128xf32>
    %cst_132 = arith.constant 0.797884583 : f32
    %268 = vector.broadcast %cst_132 : f32 to vector<32x128xf32>
    %269 = arith.mulf %268, %267 : vector<32x128xf32>
    %270 = math.tanh %269 : vector<32x128xf32>
    %cst_133 = arith.constant 1.000000e+00 : f32
    %271 = vector.broadcast %cst_133 : f32 to vector<32x128xf32>
    %272 = arith.addf %271, %270 : vector<32x128xf32>
    %273 = arith.mulf %262, %272 : vector<32x128xf32>
    %c8_i32_134 = arith.constant 8 : i32
    %274 = vector.broadcast %c8_i32_134 : i32 to vector<32x128xi32>
    %275 = arith.cmpi sge, %1, %274 : vector<32x128xi32>
    %c8_i32_135 = arith.constant 8 : i32
    %276 = tpu.dynamic_rotate %273 by %c8_i32_135 dim 0 : vector<32x128xf32>, i32 -> vector<32x128xf32>
    %cst_136 = arith.constant 0.000000e+00 : f32
    %277 = vector.broadcast %cst_136 : f32 to vector<32x128xf32>
    %278 = arith.select %275, %276, %277 : vector<32x128xi1>, vector<32x128xf32>
    %c8_i32_137 = arith.constant 8 : i32
    %279 = vector.broadcast %c8_i32_137 : i32 to vector<32x128xi32>
    %280 = arith.cmpi slt, %1, %279 : vector<32x128xi32>
    %c24_i32_138 = arith.constant 24 : i32
    %281 = tpu.dynamic_rotate %273 by %c24_i32_138 dim 0 : vector<32x128xf32>, i32 -> vector<32x128xf32>
    %cst_139 = arith.constant 0.000000e+00 : f32
    %282 = vector.broadcast %cst_139 : f32 to vector<32x128xf32>
    %283 = arith.select %280, %281, %282 : vector<32x128xi1>, vector<32x128xf32>
    %284 = tpu.concatenate %278, %273, %283 in 1 : vector<32x128xf32>, vector<32x128xf32>, vector<32x128xf32> -> vector<32x384xf32>
    %285 = arith.truncf %284 : vector<32x384xf32> to vector<32x384xbf16>
    %c7 = arith.constant 7 : index
    %c0_140 = arith.constant 0 : index
    %c0_141 = arith.constant 0 : index
    %286 = vector.load %arg4[%c7, %c0_140, %c0_141] : memref<22x384x128xbf16, #tpu.memory_space<vmem>>, vector<1x384x128xbf16>
    %287 = vector.shape_cast %286 : vector<1x384x128xbf16> to vector<384x128xbf16>
    %cst_142 = arith.constant dense<0.000000e+00> : vector<32x128xf32>
    %288 = tpu.matmul %285, %287, %cst_142 {dimension_numbers = #tpu.dot_dimension_numbers<[1], [0], [0], [1], [0, 0, 1, 1], [], []>} : vector<32x384xbf16>, vector<384x128xbf16>, vector<32x128xf32> -> vector<32x128xf32>
    %c7_143 = arith.constant 7 : index
    %c0_144 = arith.constant 0 : index
    %c0_145 = arith.constant 0 : index
    %289 = vector.load %arg5[%c7_143, %c0_144, %c0_145] : memref<22x1x128xf32, #tpu.memory_space<vmem>>, vector<1x1x128xf32>
    %290 = vector.shape_cast %289 : vector<1x1x128xf32> to vector<1x128xf32>
    %291 = vector.broadcast %290 : vector<1x128xf32> to vector<32x128xf32>
    %292 = arith.addf %288, %291 : vector<32x128xf32>
    %293 = arith.addf %292, %228 : vector<32x128xf32>
    %c0_146 = arith.constant 0 : index
    %c0_147 = arith.constant 0 : index
    %294 = vector.load %arg9[%c0_146, %c0_147] : memref<32x128xf32, #tpu.memory_space<vmem>>, vector<32x128xf32>
    tpu.vector_store %arg9[%c0_146, %c0_147], %293 {strides = array<i32>} : memref<32x128xf32, #tpu.memory_space<vmem>>, vector<32x128xf32>,
    %c0_148 = arith.constant 0 : index
    %c0_149 = arith.constant 0 : index
    %295 = vector.load %arg9[%c0_148, %c0_149] : memref<32x128xf32, #tpu.memory_space<vmem>>, vector<32x128xf32>
    %cst_150 = arith.constant 5.000000e-01 : f32
    %296 = vector.broadcast %cst_150 : f32 to vector<32x128xf32>
    %297 = arith.mulf %296, %295 : vector<32x128xf32>
    %cst_151 = arith.constant 4.471500e-02 : f32
    %298 = vector.broadcast %cst_151 : f32 to vector<32x128xf32>
    %299 = arith.mulf %298, %295 : vector<32x128xf32>
    %300 = arith.mulf %299, %295 : vector<32x128xf32>
    %301 = arith.mulf %300, %295 : vector<32x128xf32>
    %302 = arith.addf %295, %301 : vector<32x128xf32>
    %cst_152 = arith.constant 0.797884583 : f32
    %303 = vector.broadcast %cst_152 : f32 to vector<32x128xf32>
    %304 = arith.mulf %303, %302 : vector<32x128xf32>
    %305 = math.tanh %304 : vector<32x128xf32>
    %cst_153 = arith.constant 1.000000e+00 : f32
    %306 = vector.broadcast %cst_153 : f32 to vector<32x128xf32>
    %307 = arith.addf %306, %305 : vector<32x128xf32>
    %308 = arith.mulf %297, %307 : vector<32x128xf32>
    %309 = arith.truncf %308 : vector<32x128xf32> to vector<32x128xbf16>
    %c8 = arith.constant 8 : index
    %c128 = arith.constant 128 : index
    %c0_154 = arith.constant 0 : index
    %310 = vector.load %arg4[%c8, %c128, %c0_154] : memref<22x384x128xbf16, #tpu.memory_space<vmem>>, vector<1x128x128xbf16>
    %311 = vector.shape_cast %310 : vector<1x128x128xbf16> to vector<128x128xbf16>
    %cst_155 = arith.constant dense<0.000000e+00> : vector<32x128xf32>
    %312 = tpu.matmul %309, %311, %cst_155 {dimension_numbers = #tpu.dot_dimension_numbers<[1], [0], [0], [1], [0, 0, 1, 1], [], []>} : vector<32x128xbf16>, vector<128x128xbf16>, vector<32x128xf32> -> vector<32x128xf32>
    %c8_156 = arith.constant 8 : index
    %c0_157 = arith.constant 0 : index
    %c0_158 = arith.constant 0 : index
    %313 = vector.load %arg5[%c8_156, %c0_157, %c0_158] : memref<22x1x128xf32, #tpu.memory_space<vmem>>, vector<1x1x128xf32>
    %314 = vector.shape_cast %313 : vector<1x1x128xf32> to vector<1x128xf32>
    %315 = vector.broadcast %314 : vector<1x128xf32> to vector<32x128xf32>
    %316 = arith.addf %312, %315 : vector<32x128xf32>
    %cst_159 = arith.constant 5.000000e-01 : f32
    %317 = vector.broadcast %cst_159 : f32 to vector<32x128xf32>
    %318 = arith.mulf %317, %316 : vector<32x128xf32>
    %cst_160 = arith.constant 4.471500e-02 : f32
    %319 = vector.broadcast %cst_160 : f32 to vector<32x128xf32>
    %320 = arith.mulf %319, %316 : vector<32x128xf32>
    %321 = arith.mulf %320, %316 : vector<32x128xf32>
    %322 = arith.mulf %321, %316 : vector<32x128xf32>
    %323 = arith.addf %316, %322 : vector<32x128xf32>
    %cst_161 = arith.constant 0.797884583 : f32
    %324 = vector.broadcast %cst_161 : f32 to vector<32x128xf32>
    %325 = arith.mulf %324, %323 : vector<32x128xf32>
    %326 = math.tanh %325 : vector<32x128xf32>
    %cst_162 = arith.constant 1.000000e+00 : f32
    %327 = vector.broadcast %cst_162 : f32 to vector<32x128xf32>
    %328 = arith.addf %327, %326 : vector<32x128xf32>
    %329 = arith.mulf %318, %328 : vector<32x128xf32>
    %330 = arith.truncf %329 : vector<32x128xf32> to vector<32x128xbf16>
    %c9 = arith.constant 9 : index
    %c128_163 = arith.constant 128 : index
    %c0_164 = arith.constant 0 : index
    %331 = vector.load %arg4[%c9, %c128_163, %c0_164] : memref<22x384x128xbf16, #tpu.memory_space<vmem>>, vector<1x128x128xbf16>
    %332 = vector.shape_cast %331 : vector<1x128x128xbf16> to vector<128x128xbf16>
    %cst_165 = arith.constant dense<0.000000e+00> : vector<32x128xf32>
    %333 = tpu.matmul %330, %332, %cst_165 {dimension_numbers = #tpu.dot_dimension_numbers<[1], [0], [0], [1], [0, 0, 1, 1], [], []>} : vector<32x128xbf16>, vector<128x128xbf16>, vector<32x128xf32> -> vector<32x128xf32>
    %c9_166 = arith.constant 9 : index
    %c0_167 = arith.constant 0 : index
    %c0_168 = arith.constant 0 : index
    %334 = vector.load %arg5[%c9_166, %c0_167, %c0_168] : memref<22x1x128xf32, #tpu.memory_space<vmem>>, vector<1x1x128xf32>
    %335 = vector.shape_cast %334 : vector<1x1x128xf32> to vector<1x128xf32>
    %336 = vector.broadcast %335 : vector<1x128xf32> to vector<32x128xf32>
    %337 = arith.addf %333, %336 : vector<32x128xf32>
    %338 = arith.addf %337, %295 : vector<32x128xf32>
    %c0_169 = arith.constant 0 : index
    %c0_170 = arith.constant 0 : index
    %339 = vector.load %arg9[%c0_169, %c0_170] : memref<32x128xf32, #tpu.memory_space<vmem>>, vector<32x128xf32>
    tpu.vector_store %arg9[%c0_169, %c0_170], %338 {strides = array<i32>} : memref<32x128xf32, #tpu.memory_space<vmem>>, vector<32x128xf32>,
    %c0_171 = arith.constant 0 : index
    %c0_172 = arith.constant 0 : index
    %340 = vector.load %arg9[%c0_171, %c0_172] : memref<32x128xf32, #tpu.memory_space<vmem>>, vector<32x128xf32>
    %cst_173 = arith.constant 5.000000e-01 : f32
    %341 = vector.broadcast %cst_173 : f32 to vector<32x128xf32>
    %342 = arith.mulf %341, %340 : vector<32x128xf32>
    %cst_174 = arith.constant 4.471500e-02 : f32
    %343 = vector.broadcast %cst_174 : f32 to vector<32x128xf32>
    %344 = arith.mulf %343, %340 : vector<32x128xf32>
    %345 = arith.mulf %344, %340 : vector<32x128xf32>
    %346 = arith.mulf %345, %340 : vector<32x128xf32>
    %347 = arith.addf %340, %346 : vector<32x128xf32>
    %cst_175 = arith.constant 0.797884583 : f32
    %348 = vector.broadcast %cst_175 : f32 to vector<32x128xf32>
    %349 = arith.mulf %348, %347 : vector<32x128xf32>
    %350 = math.tanh %349 : vector<32x128xf32>
    %cst_176 = arith.constant 1.000000e+00 : f32
    %351 = vector.broadcast %cst_176 : f32 to vector<32x128xf32>
    %352 = arith.addf %351, %350 : vector<32x128xf32>
    %353 = arith.mulf %342, %352 : vector<32x128xf32>
    %354 = arith.truncf %353 : vector<32x128xf32> to vector<32x128xbf16>
    %c10 = arith.constant 10 : index
    %c128_177 = arith.constant 128 : index
    %c0_178 = arith.constant 0 : index
    %355 = vector.load %arg4[%c10, %c128_177, %c0_178] : memref<22x384x128xbf16, #tpu.memory_space<vmem>>, vector<1x128x128xbf16>
    %356 = vector.shape_cast %355 : vector<1x128x128xbf16> to vector<128x128xbf16>
    %cst_179 = arith.constant dense<0.000000e+00> : vector<32x128xf32>
    %357 = tpu.matmul %354, %356, %cst_179 {dimension_numbers = #tpu.dot_dimension_numbers<[1], [0], [0], [1], [0, 0, 1, 1], [], []>} : vector<32x128xbf16>, vector<128x128xbf16>, vector<32x128xf32> -> vector<32x128xf32>
    %c10_180 = arith.constant 10 : index
    %c0_181 = arith.constant 0 : index
    %c0_182 = arith.constant 0 : index
    %358 = vector.load %arg5[%c10_180, %c0_181, %c0_182] : memref<22x1x128xf32, #tpu.memory_space<vmem>>, vector<1x1x128xf32>
    %359 = vector.shape_cast %358 : vector<1x1x128xf32> to vector<1x128xf32>
    %360 = vector.broadcast %359 : vector<1x128xf32> to vector<32x128xf32>
    %361 = arith.addf %357, %360 : vector<32x128xf32>
    %cst_183 = arith.constant 5.000000e-01 : f32
    %362 = vector.broadcast %cst_183 : f32 to vector<32x128xf32>
    %363 = arith.mulf %362, %361 : vector<32x128xf32>
    %cst_184 = arith.constant 4.471500e-02 : f32
    %364 = vector.broadcast %cst_184 : f32 to vector<32x128xf32>
    %365 = arith.mulf %364, %361 : vector<32x128xf32>
    %366 = arith.mulf %365, %361 : vector<32x128xf32>
    %367 = arith.mulf %366, %361 : vector<32x128xf32>
    %368 = arith.addf %361, %367 : vector<32x128xf32>
    %cst_185 = arith.constant 0.797884583 : f32
    %369 = vector.broadcast %cst_185 : f32 to vector<32x128xf32>
    %370 = arith.mulf %369, %368 : vector<32x128xf32>
    %371 = math.tanh %370 : vector<32x128xf32>
    %cst_186 = arith.constant 1.000000e+00 : f32
    %372 = vector.broadcast %cst_186 : f32 to vector<32x128xf32>
    %373 = arith.addf %372, %371 : vector<32x128xf32>
    %374 = arith.mulf %363, %373 : vector<32x128xf32>
    %375 = arith.truncf %374 : vector<32x128xf32> to vector<32x128xbf16>
    %c11 = arith.constant 11 : index
    %c128_187 = arith.constant 128 : index
    %c0_188 = arith.constant 0 : index
    %376 = vector.load %arg4[%c11, %c128_187, %c0_188] : memref<22x384x128xbf16, #tpu.memory_space<vmem>>, vector<1x128x128xbf16>
    %377 = vector.shape_cast %376 : vector<1x128x128xbf16> to vector<128x128xbf16>
    %cst_189 = arith.constant dense<0.000000e+00> : vector<32x128xf32>
    %378 = tpu.matmul %375, %377, %cst_189 {dimension_numbers = #tpu.dot_dimension_numbers<[1], [0], [0], [1], [0, 0, 1, 1], [], []>} : vector<32x128xbf16>, vector<128x128xbf16>, vector<32x128xf32> -> vector<32x128xf32>
    %c11_190 = arith.constant 11 : index
    %c0_191 = arith.constant 0 : index
    %c0_192 = arith.constant 0 : index
    %379 = vector.load %arg5[%c11_190, %c0_191, %c0_192] : memref<22x1x128xf32, #tpu.memory_space<vmem>>, vector<1x1x128xf32>
    %380 = vector.shape_cast %379 : vector<1x1x128xf32> to vector<1x128xf32>
    %381 = vector.broadcast %380 : vector<1x128xf32> to vector<32x128xf32>
    %382 = arith.addf %378, %381 : vector<32x128xf32>
    %383 = arith.addf %382, %340 : vector<32x128xf32>
    %c0_193 = arith.constant 0 : index
    %c0_194 = arith.constant 0 : index
    %384 = vector.load %arg9[%c0_193, %c0_194] : memref<32x128xf32, #tpu.memory_space<vmem>>, vector<32x128xf32>
    tpu.vector_store %arg9[%c0_193, %c0_194], %383 {strides = array<i32>} : memref<32x128xf32, #tpu.memory_space<vmem>>, vector<32x128xf32>,
    %c0_195 = arith.constant 0 : index
    %c0_196 = arith.constant 0 : index
    %385 = vector.load %arg9[%c0_195, %c0_196] : memref<32x128xf32, #tpu.memory_space<vmem>>, vector<32x128xf32>
    %cst_197 = arith.constant 5.000000e-01 : f32
    %386 = vector.broadcast %cst_197 : f32 to vector<32x128xf32>
    %387 = arith.mulf %386, %385 : vector<32x128xf32>
    %cst_198 = arith.constant 4.471500e-02 : f32
    %388 = vector.broadcast %cst_198 : f32 to vector<32x128xf32>
    %389 = arith.mulf %388, %385 : vector<32x128xf32>
    %390 = arith.mulf %389, %385 : vector<32x128xf32>
    %391 = arith.mulf %390, %385 : vector<32x128xf32>
    %392 = arith.addf %385, %391 : vector<32x128xf32>
    %cst_199 = arith.constant 0.797884583 : f32
    %393 = vector.broadcast %cst_199 : f32 to vector<32x128xf32>
    %394 = arith.mulf %393, %392 : vector<32x128xf32>
    %395 = math.tanh %394 : vector<32x128xf32>
    %cst_200 = arith.constant 1.000000e+00 : f32
    %396 = vector.broadcast %cst_200 : f32 to vector<32x128xf32>
    %397 = arith.addf %396, %395 : vector<32x128xf32>
    %398 = arith.mulf %387, %397 : vector<32x128xf32>
    %399 = arith.truncf %398 : vector<32x128xf32> to vector<32x128xbf16>
    %c12 = arith.constant 12 : index
    %c128_201 = arith.constant 128 : index
    %c0_202 = arith.constant 0 : index
    %400 = vector.load %arg4[%c12, %c128_201, %c0_202] : memref<22x384x128xbf16, #tpu.memory_space<vmem>>, vector<1x128x128xbf16>
    %401 = vector.shape_cast %400 : vector<1x128x128xbf16> to vector<128x128xbf16>
    %cst_203 = arith.constant dense<0.000000e+00> : vector<32x128xf32>
    %402 = tpu.matmul %399, %401, %cst_203 {dimension_numbers = #tpu.dot_dimension_numbers<[1], [0], [0], [1], [0, 0, 1, 1], [], []>} : vector<32x128xbf16>, vector<128x128xbf16>, vector<32x128xf32> -> vector<32x128xf32>
    %c12_204 = arith.constant 12 : index
    %c0_205 = arith.constant 0 : index
    %c0_206 = arith.constant 0 : index
    %403 = vector.load %arg5[%c12_204, %c0_205, %c0_206] : memref<22x1x128xf32, #tpu.memory_space<vmem>>, vector<1x1x128xf32>
    %404 = vector.shape_cast %403 : vector<1x1x128xf32> to vector<1x128xf32>
    %405 = vector.broadcast %404 : vector<1x128xf32> to vector<32x128xf32>
    %406 = arith.addf %402, %405 : vector<32x128xf32>
    %cst_207 = arith.constant 5.000000e-01 : f32
    %407 = vector.broadcast %cst_207 : f32 to vector<32x128xf32>
    %408 = arith.mulf %407, %406 : vector<32x128xf32>
    %cst_208 = arith.constant 4.471500e-02 : f32
    %409 = vector.broadcast %cst_208 : f32 to vector<32x128xf32>
    %410 = arith.mulf %409, %406 : vector<32x128xf32>
    %411 = arith.mulf %410, %406 : vector<32x128xf32>
    %412 = arith.mulf %411, %406 : vector<32x128xf32>
    %413 = arith.addf %406, %412 : vector<32x128xf32>
    %cst_209 = arith.constant 0.797884583 : f32
    %414 = vector.broadcast %cst_209 : f32 to vector<32x128xf32>
    %415 = arith.mulf %414, %413 : vector<32x128xf32>
    %416 = math.tanh %415 : vector<32x128xf32>
    %cst_210 = arith.constant 1.000000e+00 : f32
    %417 = vector.broadcast %cst_210 : f32 to vector<32x128xf32>
    %418 = arith.addf %417, %416 : vector<32x128xf32>
    %419 = arith.mulf %408, %418 : vector<32x128xf32>
    %420 = arith.truncf %419 : vector<32x128xf32> to vector<32x128xbf16>
    %c13 = arith.constant 13 : index
    %c128_211 = arith.constant 128 : index
    %c0_212 = arith.constant 0 : index
    %421 = vector.load %arg4[%c13, %c128_211, %c0_212] : memref<22x384x128xbf16, #tpu.memory_space<vmem>>, vector<1x128x128xbf16>
    %422 = vector.shape_cast %421 : vector<1x128x128xbf16> to vector<128x128xbf16>
    %cst_213 = arith.constant dense<0.000000e+00> : vector<32x128xf32>
    %423 = tpu.matmul %420, %422, %cst_213 {dimension_numbers = #tpu.dot_dimension_numbers<[1], [0], [0], [1], [0, 0, 1, 1], [], []>} : vector<32x128xbf16>, vector<128x128xbf16>, vector<32x128xf32> -> vector<32x128xf32>
    %c13_214 = arith.constant 13 : index
    %c0_215 = arith.constant 0 : index
    %c0_216 = arith.constant 0 : index
    %424 = vector.load %arg5[%c13_214, %c0_215, %c0_216] : memref<22x1x128xf32, #tpu.memory_space<vmem>>, vector<1x1x128xf32>
    %425 = vector.shape_cast %424 : vector<1x1x128xf32> to vector<1x128xf32>
    %426 = vector.broadcast %425 : vector<1x128xf32> to vector<32x128xf32>
    %427 = arith.addf %423, %426 : vector<32x128xf32>
    %428 = arith.addf %427, %385 : vector<32x128xf32>
    %c0_217 = arith.constant 0 : index
    %c0_218 = arith.constant 0 : index
    %429 = vector.load %arg9[%c0_217, %c0_218] : memref<32x128xf32, #tpu.memory_space<vmem>>, vector<32x128xf32>
    tpu.vector_store %arg9[%c0_217, %c0_218], %428 {strides = array<i32>} : memref<32x128xf32, #tpu.memory_space<vmem>>, vector<32x128xf32>,
    %c0_219 = arith.constant 0 : index
    %c0_220 = arith.constant 0 : index
    %430 = vector.load %arg9[%c0_219, %c0_220] : memref<32x128xf32, #tpu.memory_space<vmem>>, vector<32x128xf32>
    %cst_221 = arith.constant 5.000000e-01 : f32
    %431 = vector.broadcast %cst_221 : f32 to vector<32x128xf32>
    %432 = arith.mulf %431, %430 : vector<32x128xf32>
    %cst_222 = arith.constant 4.471500e-02 : f32
    %433 = vector.broadcast %cst_222 : f32 to vector<32x128xf32>
    %434 = arith.mulf %433, %430 : vector<32x128xf32>
    %435 = arith.mulf %434, %430 : vector<32x128xf32>
    %436 = arith.mulf %435, %430 : vector<32x128xf32>
    %437 = arith.addf %430, %436 : vector<32x128xf32>
    %cst_223 = arith.constant 0.797884583 : f32
    %438 = vector.broadcast %cst_223 : f32 to vector<32x128xf32>
    %439 = arith.mulf %438, %437 : vector<32x128xf32>
    %440 = math.tanh %439 : vector<32x128xf32>
    %cst_224 = arith.constant 1.000000e+00 : f32
    %441 = vector.broadcast %cst_224 : f32 to vector<32x128xf32>
    %442 = arith.addf %441, %440 : vector<32x128xf32>
    %443 = arith.mulf %432, %442 : vector<32x128xf32>
    %444 = arith.truncf %443 : vector<32x128xf32> to vector<32x128xbf16>
    %c14 = arith.constant 14 : index
    %c128_225 = arith.constant 128 : index
    %c0_226 = arith.constant 0 : index
    %445 = vector.load %arg4[%c14, %c128_225, %c0_226] : memref<22x384x128xbf16, #tpu.memory_space<vmem>>, vector<1x128x128xbf16>
    %446 = vector.shape_cast %445 : vector<1x128x128xbf16> to vector<128x128xbf16>
    %cst_227 = arith.constant dense<0.000000e+00> : vector<32x128xf32>
    %447 = tpu.matmul %444, %446, %cst_227 {dimension_numbers = #tpu.dot_dimension_numbers<[1], [0], [0], [1], [0, 0, 1, 1], [], []>} : vector<32x128xbf16>, vector<128x128xbf16>, vector<32x128xf32> -> vector<32x128xf32>
    %c14_228 = arith.constant 14 : index
    %c0_229 = arith.constant 0 : index
    %c0_230 = arith.constant 0 : index
    %448 = vector.load %arg5[%c14_228, %c0_229, %c0_230] : memref<22x1x128xf32, #tpu.memory_space<vmem>>, vector<1x1x128xf32>
    %449 = vector.shape_cast %448 : vector<1x1x128xf32> to vector<1x128xf32>
    %450 = vector.broadcast %449 : vector<1x128xf32> to vector<32x128xf32>
    %451 = arith.addf %447, %450 : vector<32x128xf32>
    %cst_231 = arith.constant 5.000000e-01 : f32
    %452 = vector.broadcast %cst_231 : f32 to vector<32x128xf32>
    %453 = arith.mulf %452, %451 : vector<32x128xf32>
    %cst_232 = arith.constant 4.471500e-02 : f32
    %454 = vector.broadcast %cst_232 : f32 to vector<32x128xf32>
    %455 = arith.mulf %454, %451 : vector<32x128xf32>
    %456 = arith.mulf %455, %451 : vector<32x128xf32>
    %457 = arith.mulf %456, %451 : vector<32x128xf32>
    %458 = arith.addf %451, %457 : vector<32x128xf32>
    %cst_233 = arith.constant 0.797884583 : f32
    %459 = vector.broadcast %cst_233 : f32 to vector<32x128xf32>
    %460 = arith.mulf %459, %458 : vector<32x128xf32>
    %461 = math.tanh %460 : vector<32x128xf32>
    %cst_234 = arith.constant 1.000000e+00 : f32
    %462 = vector.broadcast %cst_234 : f32 to vector<32x128xf32>
    %463 = arith.addf %462, %461 : vector<32x128xf32>
    %464 = arith.mulf %453, %463 : vector<32x128xf32>
    %465 = arith.truncf %464 : vector<32x128xf32> to vector<32x128xbf16>
    %c15 = arith.constant 15 : index
    %c128_235 = arith.constant 128 : index
    %c0_236 = arith.constant 0 : index
    %466 = vector.load %arg4[%c15, %c128_235, %c0_236] : memref<22x384x128xbf16, #tpu.memory_space<vmem>>, vector<1x128x128xbf16>
    %467 = vector.shape_cast %466 : vector<1x128x128xbf16> to vector<128x128xbf16>
    %cst_237 = arith.constant dense<0.000000e+00> : vector<32x128xf32>
    %468 = tpu.matmul %465, %467, %cst_237 {dimension_numbers = #tpu.dot_dimension_numbers<[1], [0], [0], [1], [0, 0, 1, 1], [], []>} : vector<32x128xbf16>, vector<128x128xbf16>, vector<32x128xf32> -> vector<32x128xf32>
    %c15_238 = arith.constant 15 : index
    %c0_239 = arith.constant 0 : index
    %c0_240 = arith.constant 0 : index
    %469 = vector.load %arg5[%c15_238, %c0_239, %c0_240] : memref<22x1x128xf32, #tpu.memory_space<vmem>>, vector<1x1x128xf32>
    %470 = vector.shape_cast %469 : vector<1x1x128xf32> to vector<1x128xf32>
    %471 = vector.broadcast %470 : vector<1x128xf32> to vector<32x128xf32>
    %472 = arith.addf %468, %471 : vector<32x128xf32>
    %473 = arith.addf %472, %430 : vector<32x128xf32>
    %c0_241 = arith.constant 0 : index
    %c0_242 = arith.constant 0 : index
    %474 = vector.load %arg9[%c0_241, %c0_242] : memref<32x128xf32, #tpu.memory_space<vmem>>, vector<32x128xf32>
    tpu.vector_store %arg9[%c0_241, %c0_242], %473 {strides = array<i32>} : memref<32x128xf32, #tpu.memory_space<vmem>>, vector<32x128xf32>,
    %c0_243 = arith.constant 0 : index
    %c0_244 = arith.constant 0 : index
    %475 = vector.load %arg9[%c0_243, %c0_244] : memref<32x128xf32, #tpu.memory_space<vmem>>, vector<32x128xf32>
    %cst_245 = arith.constant 5.000000e-01 : f32
    %476 = vector.broadcast %cst_245 : f32 to vector<32x128xf32>
    %477 = arith.mulf %476, %475 : vector<32x128xf32>
    %cst_246 = arith.constant 4.471500e-02 : f32
    %478 = vector.broadcast %cst_246 : f32 to vector<32x128xf32>
    %479 = arith.mulf %478, %475 : vector<32x128xf32>
    %480 = arith.mulf %479, %475 : vector<32x128xf32>
    %481 = arith.mulf %480, %475 : vector<32x128xf32>
    %482 = arith.addf %475, %481 : vector<32x128xf32>
    %cst_247 = arith.constant 0.797884583 : f32
    %483 = vector.broadcast %cst_247 : f32 to vector<32x128xf32>
    %484 = arith.mulf %483, %482 : vector<32x128xf32>
    %485 = math.tanh %484 : vector<32x128xf32>
    %cst_248 = arith.constant 1.000000e+00 : f32
    %486 = vector.broadcast %cst_248 : f32 to vector<32x128xf32>
    %487 = arith.addf %486, %485 : vector<32x128xf32>
    %488 = arith.mulf %477, %487 : vector<32x128xf32>
    %489 = arith.truncf %488 : vector<32x128xf32> to vector<32x128xbf16>
    %c16 = arith.constant 16 : index
    %c128_249 = arith.constant 128 : index
    %c0_250 = arith.constant 0 : index
    %490 = vector.load %arg4[%c16, %c128_249, %c0_250] : memref<22x384x128xbf16, #tpu.memory_space<vmem>>, vector<1x128x128xbf16>
    %491 = vector.shape_cast %490 : vector<1x128x128xbf16> to vector<128x128xbf16>
    %cst_251 = arith.constant dense<0.000000e+00> : vector<32x128xf32>
    %492 = tpu.matmul %489, %491, %cst_251 {dimension_numbers = #tpu.dot_dimension_numbers<[1], [0], [0], [1], [0, 0, 1, 1], [], []>} : vector<32x128xbf16>, vector<128x128xbf16>, vector<32x128xf32> -> vector<32x128xf32>
    %c16_252 = arith.constant 16 : index
    %c0_253 = arith.constant 0 : index
    %c0_254 = arith.constant 0 : index
    %493 = vector.load %arg5[%c16_252, %c0_253, %c0_254] : memref<22x1x128xf32, #tpu.memory_space<vmem>>, vector<1x1x128xf32>
    %494 = vector.shape_cast %493 : vector<1x1x128xf32> to vector<1x128xf32>
    %495 = vector.broadcast %494 : vector<1x128xf32> to vector<32x128xf32>
    %496 = arith.addf %492, %495 : vector<32x128xf32>
    %cst_255 = arith.constant 5.000000e-01 : f32
    %497 = vector.broadcast %cst_255 : f32 to vector<32x128xf32>
    %498 = arith.mulf %497, %496 : vector<32x128xf32>
    %cst_256 = arith.constant 4.471500e-02 : f32
    %499 = vector.broadcast %cst_256 : f32 to vector<32x128xf32>
    %500 = arith.mulf %499, %496 : vector<32x128xf32>
    %501 = arith.mulf %500, %496 : vector<32x128xf32>
    %502 = arith.mulf %501, %496 : vector<32x128xf32>
    %503 = arith.addf %496, %502 : vector<32x128xf32>
    %cst_257 = arith.constant 0.797884583 : f32
    %504 = vector.broadcast %cst_257 : f32 to vector<32x128xf32>
    %505 = arith.mulf %504, %503 : vector<32x128xf32>
    %506 = math.tanh %505 : vector<32x128xf32>
    %cst_258 = arith.constant 1.000000e+00 : f32
    %507 = vector.broadcast %cst_258 : f32 to vector<32x128xf32>
    %508 = arith.addf %507, %506 : vector<32x128xf32>
    %509 = arith.mulf %498, %508 : vector<32x128xf32>
    %510 = arith.truncf %509 : vector<32x128xf32> to vector<32x128xbf16>
    %c17 = arith.constant 17 : index
    %c128_259 = arith.constant 128 : index
    %c0_260 = arith.constant 0 : index
    %511 = vector.load %arg4[%c17, %c128_259, %c0_260] : memref<22x384x128xbf16, #tpu.memory_space<vmem>>, vector<1x128x128xbf16>
    %512 = vector.shape_cast %511 : vector<1x128x128xbf16> to vector<128x128xbf16>
    %cst_261 = arith.constant dense<0.000000e+00> : vector<32x128xf32>
    %513 = tpu.matmul %510, %512, %cst_261 {dimension_numbers = #tpu.dot_dimension_numbers<[1], [0], [0], [1], [0, 0, 1, 1], [], []>} : vector<32x128xbf16>, vector<128x128xbf16>, vector<32x128xf32> -> vector<32x128xf32>
    %c17_262 = arith.constant 17 : index
    %c0_263 = arith.constant 0 : index
    %c0_264 = arith.constant 0 : index
    %514 = vector.load %arg5[%c17_262, %c0_263, %c0_264] : memref<22x1x128xf32, #tpu.memory_space<vmem>>, vector<1x1x128xf32>
    %515 = vector.shape_cast %514 : vector<1x1x128xf32> to vector<1x128xf32>
    %516 = vector.broadcast %515 : vector<1x128xf32> to vector<32x128xf32>
    %517 = arith.addf %513, %516 : vector<32x128xf32>
    %518 = arith.addf %517, %475 : vector<32x128xf32>
    %c0_265 = arith.constant 0 : index
    %c0_266 = arith.constant 0 : index
    %519 = vector.load %arg9[%c0_265, %c0_266] : memref<32x128xf32, #tpu.memory_space<vmem>>, vector<32x128xf32>
    tpu.vector_store %arg9[%c0_265, %c0_266], %518 {strides = array<i32>} : memref<32x128xf32, #tpu.memory_space<vmem>>, vector<32x128xf32>,
    %c0_267 = arith.constant 0 : index
    %c0_268 = arith.constant 0 : index
    %520 = vector.load %arg9[%c0_267, %c0_268] : memref<32x128xf32, #tpu.memory_space<vmem>>, vector<32x128xf32>
    %cst_269 = arith.constant 5.000000e-01 : f32
    %521 = vector.broadcast %cst_269 : f32 to vector<32x128xf32>
    %522 = arith.mulf %521, %520 : vector<32x128xf32>
    %cst_270 = arith.constant 4.471500e-02 : f32
    %523 = vector.broadcast %cst_270 : f32 to vector<32x128xf32>
    %524 = arith.mulf %523, %520 : vector<32x128xf32>
    %525 = arith.mulf %524, %520 : vector<32x128xf32>
    %526 = arith.mulf %525, %520 : vector<32x128xf32>
    %527 = arith.addf %520, %526 : vector<32x128xf32>
    %cst_271 = arith.constant 0.797884583 : f32
    %528 = vector.broadcast %cst_271 : f32 to vector<32x128xf32>
    %529 = arith.mulf %528, %527 : vector<32x128xf32>
    %530 = math.tanh %529 : vector<32x128xf32>
    %cst_272 = arith.constant 1.000000e+00 : f32
    %531 = vector.broadcast %cst_272 : f32 to vector<32x128xf32>
    %532 = arith.addf %531, %530 : vector<32x128xf32>
    %533 = arith.mulf %522, %532 : vector<32x128xf32>
    %534 = arith.truncf %533 : vector<32x128xf32> to vector<32x128xbf16>
    %c18 = arith.constant 18 : index
    %c128_273 = arith.constant 128 : index
    %c0_274 = arith.constant 0 : index
    %535 = vector.load %arg4[%c18, %c128_273, %c0_274] : memref<22x384x128xbf16, #tpu.memory_space<vmem>>, vector<1x128x128xbf16>
    %536 = vector.shape_cast %535 : vector<1x128x128xbf16> to vector<128x128xbf16>
    %cst_275 = arith.constant dense<0.000000e+00> : vector<32x128xf32>
    %537 = tpu.matmul %534, %536, %cst_275 {dimension_numbers = #tpu.dot_dimension_numbers<[1], [0], [0], [1], [0, 0, 1, 1], [], []>} : vector<32x128xbf16>, vector<128x128xbf16>, vector<32x128xf32> -> vector<32x128xf32>
    %c18_276 = arith.constant 18 : index
    %c0_277 = arith.constant 0 : index
    %c0_278 = arith.constant 0 : index
    %538 = vector.load %arg5[%c18_276, %c0_277, %c0_278] : memref<22x1x128xf32, #tpu.memory_space<vmem>>, vector<1x1x128xf32>
    %539 = vector.shape_cast %538 : vector<1x1x128xf32> to vector<1x128xf32>
    %540 = vector.broadcast %539 : vector<1x128xf32> to vector<32x128xf32>
    %541 = arith.addf %537, %540 : vector<32x128xf32>
    %cst_279 = arith.constant 5.000000e-01 : f32
    %542 = vector.broadcast %cst_279 : f32 to vector<32x128xf32>
    %543 = arith.mulf %542, %541 : vector<32x128xf32>
    %cst_280 = arith.constant 4.471500e-02 : f32
    %544 = vector.broadcast %cst_280 : f32 to vector<32x128xf32>
    %545 = arith.mulf %544, %541 : vector<32x128xf32>
    %546 = arith.mulf %545, %541 : vector<32x128xf32>
    %547 = arith.mulf %546, %541 : vector<32x128xf32>
    %548 = arith.addf %541, %547 : vector<32x128xf32>
    %cst_281 = arith.constant 0.797884583 : f32
    %549 = vector.broadcast %cst_281 : f32 to vector<32x128xf32>
    %550 = arith.mulf %549, %548 : vector<32x128xf32>
    %551 = math.tanh %550 : vector<32x128xf32>
    %cst_282 = arith.constant 1.000000e+00 : f32
    %552 = vector.broadcast %cst_282 : f32 to vector<32x128xf32>
    %553 = arith.addf %552, %551 : vector<32x128xf32>
    %554 = arith.mulf %543, %553 : vector<32x128xf32>
    %555 = arith.truncf %554 : vector<32x128xf32> to vector<32x128xbf16>
    %c19 = arith.constant 19 : index
    %c128_283 = arith.constant 128 : index
    %c0_284 = arith.constant 0 : index
    %556 = vector.load %arg4[%c19, %c128_283, %c0_284] : memref<22x384x128xbf16, #tpu.memory_space<vmem>>, vector<1x128x128xbf16>
    %557 = vector.shape_cast %556 : vector<1x128x128xbf16> to vector<128x128xbf16>
    %cst_285 = arith.constant dense<0.000000e+00> : vector<32x128xf32>
    %558 = tpu.matmul %555, %557, %cst_285 {dimension_numbers = #tpu.dot_dimension_numbers<[1], [0], [0], [1], [0, 0, 1, 1], [], []>} : vector<32x128xbf16>, vector<128x128xbf16>, vector<32x128xf32> -> vector<32x128xf32>
    %c19_286 = arith.constant 19 : index
    %c0_287 = arith.constant 0 : index
    %c0_288 = arith.constant 0 : index
    %559 = vector.load %arg5[%c19_286, %c0_287, %c0_288] : memref<22x1x128xf32, #tpu.memory_space<vmem>>, vector<1x1x128xf32>
    %560 = vector.shape_cast %559 : vector<1x1x128xf32> to vector<1x128xf32>
    %561 = vector.broadcast %560 : vector<1x128xf32> to vector<32x128xf32>
    %562 = arith.addf %558, %561 : vector<32x128xf32>
    %563 = arith.addf %562, %520 : vector<32x128xf32>
    %c0_289 = arith.constant 0 : index
    %c0_290 = arith.constant 0 : index
    %564 = vector.load %arg9[%c0_289, %c0_290] : memref<32x128xf32, #tpu.memory_space<vmem>>, vector<32x128xf32>
    tpu.vector_store %arg9[%c0_289, %c0_290], %563 {strides = array<i32>} : memref<32x128xf32, #tpu.memory_space<vmem>>, vector<32x128xf32>,
    %c0_291 = arith.constant 0 : index
    %c0_292 = arith.constant 0 : index
    %565 = vector.load %arg9[%c0_291, %c0_292] : memref<32x128xf32, #tpu.memory_space<vmem>>, vector<32x128xf32>
    %566 = arith.truncf %565 : vector<32x128xf32> to vector<32x128xbf16>
    %c0_293 = arith.constant 0 : index
    %c0_294 = arith.constant 0 : index
    %567 = vector.load %arg6[%c0_293, %c0_294] : memref<128x128xbf16, #tpu.memory_space<vmem>>, vector<128x128xbf16>
    %cst_295 = arith.constant dense<0.000000e+00> : vector<32x128xf32>
    %568 = tpu.matmul %566, %567, %cst_295 {dimension_numbers = #tpu.dot_dimension_numbers<[1], [0], [0], [1], [0, 0, 1, 1], [], []>} : vector<32x128xbf16>, vector<128x128xbf16>, vector<32x128xf32> -> vector<32x128xf32>
    %c0_296 = arith.constant 0 : index
    %c0_297 = arith.constant 0 : index
    %569 = vector.load %arg7[%c0_296, %c0_297] : memref<1x128xf32, #tpu.memory_space<vmem>>, vector<1x128xf32>
    %570 = vector.broadcast %569 : vector<1x128xf32> to vector<32x128xf32>
    %571 = arith.addf %568, %570 : vector<32x128xf32>
    %cst_298 = arith.constant 5.000000e-01 : f32
    %572 = vector.broadcast %cst_298 : f32 to vector<32x128xf32>
    %573 = arith.mulf %572, %565 : vector<32x128xf32>
    %cst_299 = arith.constant 4.471500e-02 : f32
    %574 = vector.broadcast %cst_299 : f32 to vector<32x128xf32>
    %575 = arith.mulf %574, %565 : vector<32x128xf32>
    %576 = arith.mulf %575, %565 : vector<32x128xf32>
    %577 = arith.mulf %576, %565 : vector<32x128xf32>
    %578 = arith.addf %565, %577 : vector<32x128xf32>
    %cst_300 = arith.constant 0.797884583 : f32
    %579 = vector.broadcast %cst_300 : f32 to vector<32x128xf32>
    %580 = arith.mulf %579, %578 : vector<32x128xf32>
    %581 = math.tanh %580 : vector<32x128xf32>
    %cst_301 = arith.constant 1.000000e+00 : f32
    %582 = vector.broadcast %cst_301 : f32 to vector<32x128xf32>
    %583 = arith.addf %582, %581 : vector<32x128xf32>
    %584 = arith.mulf %573, %583 : vector<32x128xf32>
    %585 = arith.truncf %584 : vector<32x128xf32> to vector<32x128xbf16>
    %c20 = arith.constant 20 : index
    %c128_302 = arith.constant 128 : index
    %c0_303 = arith.constant 0 : index
    %586 = vector.load %arg4[%c20, %c128_302, %c0_303] : memref<22x384x128xbf16, #tpu.memory_space<vmem>>, vector<1x128x128xbf16>
    %587 = vector.shape_cast %586 : vector<1x128x128xbf16> to vector<128x128xbf16>
    %cst_304 = arith.constant dense<0.000000e+00> : vector<32x128xf32>
    %588 = tpu.matmul %585, %587, %cst_304 {dimension_numbers = #tpu.dot_dimension_numbers<[1], [0], [0], [1], [0, 0, 1, 1], [], []>} : vector<32x128xbf16>, vector<128x128xbf16>, vector<32x128xf32> -> vector<32x128xf32>
    %c20_305 = arith.constant 20 : index
    %c0_306 = arith.constant 0 : index
    %c0_307 = arith.constant 0 : index
    %589 = vector.load %arg5[%c20_305, %c0_306, %c0_307] : memref<22x1x128xf32, #tpu.memory_space<vmem>>, vector<1x1x128xf32>
    %590 = vector.shape_cast %589 : vector<1x1x128xf32> to vector<1x128xf32>
    %591 = vector.broadcast %590 : vector<1x128xf32> to vector<32x128xf32>
    %592 = arith.addf %588, %591 : vector<32x128xf32>
    %cst_308 = arith.constant 5.000000e-01 : f32
    %593 = vector.broadcast %cst_308 : f32 to vector<32x128xf32>
    %594 = arith.mulf %593, %592 : vector<32x128xf32>
    %cst_309 = arith.constant 4.471500e-02 : f32
    %595 = vector.broadcast %cst_309 : f32 to vector<32x128xf32>
    %596 = arith.mulf %595, %592 : vector<32x128xf32>
    %597 = arith.mulf %596, %592 : vector<32x128xf32>
    %598 = arith.mulf %597, %592 : vector<32x128xf32>
    %599 = arith.addf %592, %598 : vector<32x128xf32>
    %cst_310 = arith.constant 0.797884583 : f32
    %600 = vector.broadcast %cst_310 : f32 to vector<32x128xf32>
    %601 = arith.mulf %600, %599 : vector<32x128xf32>
    %602 = math.tanh %601 : vector<32x128xf32>
    %cst_311 = arith.constant 1.000000e+00 : f32
    %603 = vector.broadcast %cst_311 : f32 to vector<32x128xf32>
    %604 = arith.addf %603, %602 : vector<32x128xf32>
    %605 = arith.mulf %594, %604 : vector<32x128xf32>
    %606 = arith.truncf %605 : vector<32x128xf32> to vector<32x128xbf16>
    %c21 = arith.constant 21 : index
    %c128_312 = arith.constant 128 : index
    %c0_313 = arith.constant 0 : index
    %607 = vector.load %arg4[%c21, %c128_312, %c0_313] : memref<22x384x128xbf16, #tpu.memory_space<vmem>>, vector<1x128x128xbf16>
    %608 = vector.shape_cast %607 : vector<1x128x128xbf16> to vector<128x128xbf16>
    %cst_314 = arith.constant dense<0.000000e+00> : vector<32x128xf32>
    %609 = tpu.matmul %606, %608, %cst_314 {dimension_numbers = #tpu.dot_dimension_numbers<[1], [0], [0], [1], [0, 0, 1, 1], [], []>} : vector<32x128xbf16>, vector<128x128xbf16>, vector<32x128xf32> -> vector<32x128xf32>
    %c21_315 = arith.constant 21 : index
    %c0_316 = arith.constant 0 : index
    %c0_317 = arith.constant 0 : index
    %610 = vector.load %arg5[%c21_315, %c0_316, %c0_317] : memref<22x1x128xf32, #tpu.memory_space<vmem>>, vector<1x1x128xf32>
    %611 = vector.shape_cast %610 : vector<1x1x128xf32> to vector<1x128xf32>
    %612 = vector.broadcast %611 : vector<1x128xf32> to vector<32x128xf32>
    %613 = arith.addf %609, %612 : vector<32x128xf32>
    %614 = arith.addf %613, %571 : vector<32x128xf32>
    %615 = vector.shape_cast %614 : vector<32x128xf32> to vector<2x16x128xf32>
    %c0_318 = arith.constant 0 : index
    %c0_319 = arith.constant 0 : index
    %c0_320 = arith.constant 0 : index
    %616 = vector.load %arg8[%c0_318, %c0_319, %c0_320] : memref<2x16x128xf32, #tpu.memory_space<vmem>>, vector<2x16x128xf32>
    tpu.vector_store %arg8[%c0_318, %c0_319, %c0_320], %615 {strides = array<i32>} : memref<2x16x128xf32, #tpu.memory_space<vmem>>, vector<2x16x128xf32>,
    return
  }
  func.func @transform_0(%arg0: i32) -> (i32, i32, i32) {
    %c0_i32 = arith.constant 0 : i32
    %c0_i32_0 = arith.constant 0 : i32
    %c0_i32_1 = arith.constant 0 : i32
    return %arg0, %c0_i32, %c0_i32_0 : i32, i32, i32
  }
  func.func @transform_1(%arg0: i32) -> (i32, i32) {
    %c0_i32 = arith.constant 0 : i32
    %c0_i32_0 = arith.constant 0 : i32
    %c0_i32_1 = arith.constant 0 : i32
    return %c0_i32, %c0_i32_0 : i32, i32
  }
  func.func @transform_2(%arg0: i32) -> (i32, i32) {
    %c0_i32 = arith.constant 0 : i32
    %c0_i32_0 = arith.constant 0 : i32
    %c0_i32_1 = arith.constant 0 : i32
    return %c0_i32, %c0_i32_0 : i32, i32
  }
  func.func @transform_3(%arg0: i32) -> (i32, i32, i32) {
    %c0_i32 = arith.constant 0 : i32
    %c0_i32_0 = arith.constant 0 : i32
    %c0_i32_1 = arith.constant 0 : i32
    %c0_i32_2 = arith.constant 0 : i32
    return %c0_i32, %c0_i32_0, %c0_i32_1 : i32, i32, i32
  }
  func.func @transform_4(%arg0: i32) -> (i32, i32, i32) {
    %c0_i32 = arith.constant 0 : i32
    %c0_i32_0 = arith.constant 0 : i32
    %c0_i32_1 = arith.constant 0 : i32
    %c0_i32_2 = arith.constant 0 : i32
    return %c0_i32, %c0_i32_0, %c0_i32_1 : i32, i32, i32
  }
  func.func @transform_5(%arg0: i32) -> (i32, i32) {
    %c0_i32 = arith.constant 0 : i32
    %c0_i32_0 = arith.constant 0 : i32
    %c0_i32_1 = arith.constant 0 : i32
    return %c0_i32, %c0_i32_0 : i32, i32
  }
  func.func @transform_6(%arg0: i32) -> (i32, i32) {
    %c0_i32 = arith.constant 0 : i32
    %c0_i32_0 = arith.constant 0 : i32
    %c0_i32_1 = arith.constant 0 : i32
    return %c0_i32, %c0_i32_0 : i32, i32
  }
  func.func @transform_7(%arg0: i32) -> (i32, i32, i32) {
    %c0_i32 = arith.constant 0 : i32
    %c0_i32_0 = arith.constant 0 : i32
    %c0_i32_1 = arith.constant 0 : i32
    return %arg0, %c0_i32, %c0_i32_0 : i32, i32, i32
  }
}

</mosaic_0001>

<llo_original>
// kernel: ts2vec_forward.1
$region0: #{ts2vec_forward.1}
  #allocation0 [shape = 'u32[]', space=smem, size = 0x4, offset = 0x4, fixed_abs, tag = 'smem constant byte address 0x4 - core index']
  #allocation1 [shape = 'u32[72,128]{1,0:T(1,128)}', space=vmem, size = 0x9000, scoped, tag = 'internal scratch']
  #allocation2 [shape = 'f32[32,128]{1,0:T(8,128)}', space=vmem, size = 0x4000, scoped, tag = 'scratch operand']
  %s0 = inlined_call_operand.vmem [shape: f32[2,16,8], index: 0, kind: input, shape index: {}]
  %s1 = inlined_call_operand.hbm [shape: bf16[8,128], index: 1, kind: input, shape index: {}]
  %s2 = inlined_call_operand.hbm [shape: f32[1,128], index: 2, kind: input, shape index: {}]
  %s3 = inlined_call_operand.hbm [shape: bf16[22,384,128], index: 3, kind: input, shape index: {}]
  %s4 = inlined_call_operand.hbm [shape: f32[22,1,128], index: 4, kind: input, shape index: {}]
  %s5 = inlined_call_operand.hbm [shape: bf16[128,128], index: 5, kind: input, shape index: {}]
  %s6 = inlined_call_operand.hbm [shape: f32[1,128], index: 6, kind: input, shape index: {}]
  %s7 = inlined_call_operand.hbm [shape: f32[2,16,128], index: 7, kind: output, shape index: {}]
  %s8 = sld [smem:[#allocation0]]
  $region62: #{ts2vec_forward.1} parent=0
    _
  %s10 = ssub.s32 1, %s8
  %s11 = scalar_select 0, %s10, %s8
  $region1: #{ts2vec_forward.1} parent=0
    #allocation3 [shape = 'u8[2048]{0}', space=vmem, size = 0x800, scoped, tag = 'input window, operand 1, single buffered']
    #allocation4 [shape = 's32[1]{0}', space=sflag, size = 0x4, scoped, tag = 'scoped memory for ts2vec_forward.1']
    #allocation5 [shape = 's32[1]{0}', space=sflag, size = 0x4, scoped, tag = 'scoped memory for ts2vec_forward.1']
    #allocation6 [shape = 'u8[512]{0}', space=vmem, size = 0x400, scoped, tag = 'input window, operand 2, single buffered']
    #allocation7 [shape = 's32[1]{0}', space=sflag, size = 0x4, scoped, tag = 'scoped memory for ts2vec_forward.1']
    #allocation8 [shape = 'u8[2162688]{0}', space=vmem, size = 0x210000, scoped, tag = 'input window, operand 3, single buffered']
    #allocation9 [shape = 'u8[11264]{0}', space=vmem, size = 0x2c00, scoped, tag = 'input window, operand 4, single buffered']
    #allocation10 [shape = 's32[1]{0}', space=sflag, size = 0x4, scoped, tag = 'scoped memory for ts2vec_forward.1']
    #allocation11 [shape = 'u8[32768]{0}', space=vmem, size = 0x8000, scoped, tag = 'input window, operand 5, single buffered']
    #allocation12 [shape = 'u8[512]{0}', space=vmem, size = 0x400, scoped, tag = 'input window, operand 6, single buffered']
    #allocation13 [shape = 's32[1]{0}', space=sflag, size = 0x4, scoped, tag = 'scoped memory for ts2vec_forward.1']
    #allocation14 [shape = 'u8[16384]{0}', space=vmem, size = 0x4000, scoped, tag = 'output window, operand 0, single buffered']
    %12 = vsyncpa [#allocation4], 0
    %13 = vsyncpa [#allocation7], 0
    %14 = vsyncpa [#allocation10], 0
    %15 = vsyncpa [#allocation13], 0
    %16 = vsyncpa [#allocation5], 0
    // Predicated region
    $region2: #{ts2vec_forward.1} parent=1 // pred_check
      _
    $region3: #{ts2vec_forward.1} parent=1 // pred_check_branch
      %18 = sbr.rel (0) target = $region5
    $region4: #{ts2vec_forward.1} parent=1 // pred_region
      _
    $region5: #{ts2vec_forward.1} parent=1 // pred_fallthru
      _
    // Predicated region
    $region6: #{ts2vec_forward.1} parent=1 // pred_check
      _
    $region7: #{ts2vec_forward.1} parent=1 // pred_check_branch
      %20 = sbr.rel (0) target = $region9
    $region8: #{ts2vec_forward.1} parent=1 // pred_region
      %22 = vsyncadd [#allocation4], 0
      %s24 = sshll.u32 %s1, 4
      %s25 = int_to_ptr.hbm [resolvable:$true] %s24
      %s26 = sshll.u32 [#allocation3], 4
      %s27 = int_to_ptr.vmem [resolvable:$true] %s26
      %29 = dma.hbm_to_vmem [thread:$0]  %s25, 64, %s27, [#allocation4]
    $region9: #{ts2vec_forward.1} parent=1 // pred_fallthru
      _
    // Predicated region
    $region10: #{ts2vec_forward.1} parent=1 // pred_check
      _
    $region11: #{ts2vec_forward.1} parent=1 // pred_check_branch
      %31 = sbr.rel (0) target = $region13
    $region12: #{ts2vec_forward.1} parent=1 // pred_region
      %33 = vsyncadd [#allocation7], 0
      %s35 = sshll.u32 %s2, 4
      %s36 = int_to_ptr.hbm [resolvable:$true] %s35
      %s37 = sshll.u32 [#allocation6], 4
      %s38 = int_to_ptr.vmem [resolvable:$true] %s37
      %40 = dma.hbm_to_vmem [thread:$0]  %s36, 16, %s38, [#allocation7]
    $region13: #{ts2vec_forward.1} parent=1 // pred_fallthru
      _
    // Predicated region
    $region14: #{ts2vec_forward.1} parent=1 // pred_check
      _
    $region15: #{ts2vec_forward.1} parent=1 // pred_check_branch
      %42 = sbr.rel (0) target = $region17
    $region16: #{ts2vec_forward.1} parent=1 // pred_region
      %44 = vsyncadd [#allocation7], 0
      %s45 = sshll.u32 %s3, 4
      %s46 = int_to_ptr.hbm [resolvable:$true] %s45
      %s47 = sshll.u32 [#allocation8], 4
      %s48 = int_to_ptr.vmem [resolvable:$true] %s47
      %53 = dma.hbm_to_vmem [thread:$0]  %s46, 67584, %s48, [#allocation7], 64, 64, 4
    $region17: #{ts2vec_forward.1} parent=1 // pred_fallthru
      _
    // Predicated region
    $region18: #{ts2vec_forward.1} parent=1 // pred_check
      _
    $region19: #{ts2vec_forward.1} parent=1 // pred_check_branch
      %55 = sbr.rel (0) target = $region21
    $region20: #{ts2vec_forward.1} parent=1 // pred_region
      %57 = vsyncadd [#allocation10], 0
      %s58 = sshll.u32 %s4, 4
      %s59 = int_to_ptr.hbm [resolvable:$true] %s58
      %s60 = sshll.u32 [#allocation9], 4
      %s61 = int_to_ptr.vmem [resolvable:$true] %s60
      %66 = dma.hbm_to_vmem [thread:$0]  %s59, 352, %s61, [#allocation10], 16, 16, 1
    $region21: #{ts2vec_forward.1} parent=1 // pred_fallthru
      _
    // Predicated region
    $region22: #{ts2vec_forward.1} parent=1 // pred_check
      _
    $region23: #{ts2vec_forward.1} parent=1 // pred_check_branch
      %68 = sbr.rel (0) target = $region25
    $region24: #{ts2vec_forward.1} parent=1 // pred_region
      %70 = vsyncadd [#allocation10], 0
      %s71 = sshll.u32 %s5, 4
      %s72 = int_to_ptr.hbm [resolvable:$true] %s71
      %s73 = sshll.u32 [#allocation11], 4
      %s74 = int_to_ptr.vmem [resolvable:$true] %s73
      %79 = dma.hbm_to_vmem [thread:$0]  %s72, 1024, %s74, [#allocation10], 64, 64, 4
    $region25: #{ts2vec_forward.1} parent=1 // pred_fallthru
      _
    // Predicated region
    $region26: #{ts2vec_forward.1} parent=1 // pred_check
      _
    $region27: #{ts2vec_forward.1} parent=1 // pred_check_branch
      %81 = sbr.rel (0) target = $region29
    $region28: #{ts2vec_forward.1} parent=1 // pred_region
      %83 = vsyncadd [#allocation13], 0
      %s85 = sshll.u32 %s6, 4
      %s86 = int_to_ptr.hbm [resolvable:$true] %s85
      %s87 = sshll.u32 [#allocation12], 4
      %s88 = int_to_ptr.vmem [resolvable:$true] %s87
      %90 = dma.hbm_to_vmem [thread:$0]  %s86, 16, %s88, [#allocation13]
    $region29: #{ts2vec_forward.1} parent=1 // pred_fallthru
      _
    // Predicated region
    $region30: #{ts2vec_forward.1} parent=1 // pred_check
      _
    $region31: #{ts2vec_forward.1} parent=1 // pred_check_branch
      %92 = sbr.rel (0) target = $region33
    $region32: #{ts2vec_forward.1} parent=1 // pred_region
      %94 = dma.done [#allocation4], 64
    $region33: #{ts2vec_forward.1} parent=1 // pred_fallthru
      _
    // Predicated region
    $region34: #{ts2vec_forward.1} parent=1 // pred_check
      _
    $region35: #{ts2vec_forward.1} parent=1 // pred_check_branch
      %96 = sbr.rel (0) target = $region37
    $region36: #{ts2vec_forward.1} parent=1 // pred_region
      %98 = dma.done [#allocation7], 16
    $region37: #{ts2vec_forward.1} parent=1 // pred_fallthru
      _
    // Predicated region
    $region38: #{ts2vec_forward.1} parent=1 // pred_check
      _
    $region39: #{ts2vec_forward.1} parent=1 // pred_check_branch
      %100 = sbr.rel (0) target = $region41
    $region40: #{ts2vec_forward.1} parent=1 // pred_region
      %102 = dma.done [#allocation7], 67584
    $region41: #{ts2vec_forward.1} parent=1 // pred_fallthru
      _
    // Predicated region
    $region42: #{ts2vec_forward.1} parent=1 // pred_check
      _
    $region43: #{ts2vec_forward.1} parent=1 // pred_check_branch
      %104 = sbr.rel (0) target = $region45
    $region44: #{ts2vec_forward.1} parent=1 // pred_region
      %106 = dma.done [#allocation10], 352
    $region45: #{ts2vec_forward.1} parent=1 // pred_fallthru
      _
    // Predicated region
    $region46: #{ts2vec_forward.1} parent=1 // pred_check
      _
    $region47: #{ts2vec_forward.1} parent=1 // pred_check_branch
      %108 = sbr.rel (0) target = $region49
    $region48: #{ts2vec_forward.1} parent=1 // pred_region
      %110 = dma.done [#allocation10], 1024
    $region49: #{ts2vec_forward.1} parent=1 // pred_fallthru
      _
    // Predicated region
    $region50: #{ts2vec_forward.1} parent=1 // pred_check
      _
    $region51: #{ts2vec_forward.1} parent=1 // pred_check_branch
      %112 = sbr.rel (0) target = $region53
    $region52: #{ts2vec_forward.1} parent=1 // pred_region
      %114 = dma.done [#allocation13], 16
    $region53: #{ts2vec_forward.1} parent=1 // pred_fallthru
      _
    %v116 = vlaneseq
    %v117 = vshrl.u32 %v116, 7
    %v118 = vadd.s32 %v117, 8
    %v119 = vld [vmem:[%s0] sm:$0xff]
    %v120 = vld [vmem:[%s0 + $0x8] sm:$0xff]
    %v121 = vld [vmem:[%s0 + $0x10] sm:$0xff]
    %v122 = vld [vmem:[%s0 + $0x18] sm:$0xff]
    %vm123 = vcmp.ne.f32.partialorder %v119, %v119
    %vm124 = vcmp.ne.f32.partialorder %v120, %v120
    %vm125 = vcmp.ne.f32.partialorder %v121, %v121
    %vm126 = vcmp.ne.f32.partialorder %v122, %v122
    %v127 = vsel %vm123, 1.0, 0.0
    %v128 = vsel %vm124, 1.0, 0.0
    %v129 = vsel %vm125, 1.0, 0.0
    %v130 = vsel %vm126, 1.0, 0.0
    %vm131 = vcmask 64512
    %v132 = vsel %vm131, %v127, -inf
    %133 = vmax.xlane.f32.xlu0 %v132
    %v134 = vpop.xlane.xlu0 %133
    %v135 = vsel %vm131, %v128, -inf
    %136 = vmax.xlane.f32.xlu0 %v135
    %v137 = vpop.xlane.xlu0 %136
    %v138 = vsel %vm131, %v129, -inf
    %139 = vmax.xlane.f32.xlu0 %v138
    %v140 = vpop.xlane.xlu0 %139
    %v141 = vsel %vm131, %v130, -inf
    %142 = vmax.xlane.f32.xlu0 %v141
    %v143 = vpop.xlane.xlu0 %142
    %vm144 = vcmp.gt.f32.partialorder %v134, 0.0
    %vm145 = vcmp.gt.f32.partialorder %v137, 0.0
    %vm146 = vcmp.gt.f32.partialorder %v140, 0.0
    %vm147 = vcmp.gt.f32.partialorder %v143, 0.0
    %v148 = vsel %vm144, 1, 0
    %v149 = vsel %vm145, 1, 0
    %v150 = vsel %vm146, 1, 0
    %v151 = vsel %vm147, 1, 0
    %vm152 = vcmp.eq.s32.totalorder %v148, 1
    %vm153 = vcmp.eq.s32.totalorder %v149, 1
    %vm154 = vcmp.eq.s32.totalorder %v150, 1
    %vm155 = vcmp.eq.s32.totalorder %v151, 1
    %v156 = vsel %vm152, 0.0, %v119
    %v157 = vsel %vm153, 0.0, %v120
    %v158 = vsel %vm154, 0.0, %v121
    %v159 = vsel %vm155, 0.0, %v122
    %v160 = vpack.c.bf16 %v157, %v156
    %v161 = vpack.c.bf16 %v159, %v158
    %v162 = vld [vmem:[#allocation3] sm:$0xf]
    %v163 = vld [vmem:[#allocation6] sm:$0x1]
    %v165 = vperm.slane %v163, 0
    %v168 = vsel %vm131, %v160, 0
    %v171 = vsel %vm131, %v161, 0
    %vm173 = vcmask 1043456
    %v175 = vsel %vm173, %v162, 0
    %177 = vmatpush.bf16.msra.mxu0 0
    %178 = vmatpush.bf16.msra.mxu0 0
    %179 = vmatpush.bf16.msra.mxu0 0
    %180 = vmatpush.bf16.msra.mxu0 0
    %181 = vmatpush.bf16.msra.mxu0 0
    %182 = vmatpush.bf16.msra.mxu0 0
    %183 = vmatpush.bf16.msra.mxu0 0
    %184 = vmatpush.bf16.msra.mxu0 %v175
    %185 = vmatmul.bf16.gmra.mxu0 %v168
    %v186 = vpop.f32.mrf.mxu0
    %v187 = vadd.f32 %v165, %v186
    %v188 = vpop.f32.mrf.mxu0
    %v189 = vadd.f32 %v165, %v188
    %190 = vmatmul.bf16.gmra.mxu0 %v171
    %v191 = vpop.f32.mrf.mxu0
    %v192 = vadd.f32 %v165, %v191
    %v193 = vpop.f32.mrf.mxu0
    %v194 = vadd.f32 %v165, %v193
    %195 = vdwg.mxu0
    %v196 = vsel %vm152, 0.0, %v187
    %v197 = vsel %vm153, 0.0, %v189
    %v198 = vsel %vm154, 0.0, %v192
    %v199 = vsel %vm155, 0.0, %v194
    %200 = vst [vmem:[#allocation2] sm:$0xff] %v196
    %201 = vst [vmem:[#allocation2 + $0x8] sm:$0xff] %v197
    %202 = vst [vmem:[#allocation2 + $0x10] sm:$0xff] %v198
    %203 = vst [vmem:[#allocation2 + $0x18] sm:$0xff] %v199
    %v204 = vld [vmem:[#allocation2] sm:$0xff]
    %v205 = vld [vmem:[#allocation2 + $0x8] sm:$0xff]
    %v206 = vld [vmem:[#allocation2 + $0x10] sm:$0xff]
    %v207 = vld [vmem:[#allocation2 + $0x18] sm:$0xff]
    %v208 = vmul.f32 %v204, 0.5
    %v209 = vmul.f32 %v205, 0.5
    %v210 = vmul.f32 %v206, 0.5
    %v211 = vmul.f32 %v207, 0.5
    %v212 = vmul.f32 %v204, 0.044715
    %v213 = vmul.f32 %v205, 0.044715
    %v214 = vmul.f32 %v206, 0.044715
    %v215 = vmul.f32 %v207, 0.044715
    %v216 = vmul.f32 %v212, %v204
    %v217 = vmul.f32 %v213, %v205
    %v218 = vmul.f32 %v214, %v206
    %v219 = vmul.f32 %v215, %v207
    %v220 = vmul.f32 %v216, %v204
    %v221 = vmul.f32 %v217, %v205
    %v222 = vmul.f32 %v218, %v206
    %v223 = vmul.f32 %v219, %v207
    %v224 = vadd.f32 %v204, %v220
    %v225 = vadd.f32 %v205, %v221
    %v226 = vadd.f32 %v206, %v222
    %v227 = vadd.f32 %v207, %v223
    %v228 = vmul.f32 %v224, 0.7978846
    %v229 = vmul.f32 %v225, 0.7978846
    %v230 = vmul.f32 %v226, 0.7978846
    %v231 = vmul.f32 %v227, 0.7978846
    %v232 = vtanh.pop %v228
    %v233 = vtanh.pop %v229
    %v234 = vtanh.pop %v230
    %v235 = vtanh.pop %v231
    %v236 = vadd.f32 %v232, 1.0
    %v237 = vadd.f32 %v233, 1.0
    %v238 = vadd.f32 %v234, 1.0
    %v239 = vadd.f32 %v235, 1.0
    %v240 = vmul.f32 %v208, %v236
    %v241 = vmul.f32 %v209, %v237
    %v242 = vmul.f32 %v210, %v238
    %v243 = vmul.f32 %v211, %v239
    %vm244 = vcmp.ge.s32.totalorder %v117, 1
    %vm245 = vcmp.ge.s32.totalorder %v118, 1
    %v246 = vrot.slane %v240, 7
    %v247 = vrot.slane %v241, 7
    %v248 = vrot.slane %v242, 7
    %v249 = vrot.slane %v243, 7
    %vm250 = vcmp.lt.s32.totalorder %v117, 1
    %v251 = vsel %vm250, %v248, %v249
    %v252 = vsel %vm250, %v247, %v248
    %v253 = vsel %vm250, %v246, %v247
    %v254 = vsel %vm250, %v249, %v246
    %v255 = vsel %vm244, %v254, 0.0
    %v256 = vsel %vm245, %v253, 0.0
    %v257 = vsel %vm244, %v252, 0.0
    %v258 = vsel %vm245, %v251, 0.0
    %vm259 = vcmp.lt.s32.totalorder %v117, 15
    %vm260 = vcmp.lt.s32.totalorder %v118, 15
    %v261 = vrot.slane %v240, 1
    %v262 = vrot.slane %v241, 1
    %v263 = vrot.slane %v242, 1
    %v264 = vrot.slane %v243, 1
    %vm265 = vcmp.lt.s32.totalorder %v117, 7
    %v266 = vsel %vm265, %v263, %v264
    %v267 = vsel %vm265, %v262, %v263
    %v268 = vsel %vm265, %v261, %v262
    %v269 = vsel %vm265, %v264, %v261
    %v270 = vsel %vm259, %v268, 0.0
    %v271 = vsel %vm260, %v267, 0.0
    %v272 = vsel %vm259, %v266, 0.0
    %v273 = vsel %vm260, %v269, 0.0
    %v274 = vpack.c.bf16 %v256, %v255
    %v275 = vpack.c.bf16 %v241, %v240
    %v276 = vpack.c.bf16 %v271, %v270
    %v277 = vpack.c.bf16 %v258, %v257
    %v278 = vpack.c.bf16 %v243, %v242
    %v279 = vpack.c.bf16 %v273, %v272
    %v280 = vld [vmem:[#allocation8] sm:$0xf]
    %v281 = vld [vmem:[#allocation8 + $0x4] sm:$0xf]
    %v282 = vld [vmem:[#allocation8 + $0x8] sm:$0xf]
    %v283 = vld [vmem:[#allocation8 + $0xc] sm:$0xf]
    %v284 = vld [vmem:[#allocation8 + $0x10] sm:$0xf]
    %v285 = vld [vmem:[#allocation8 + $0x14] sm:$0xf]
    %v286 = vld [vmem:[#allocation8 + $0x18] sm:$0xf]
    %v287 = vld [vmem:[#allocation8 + $0x1c] sm:$0xf]
    %v288 = vld [vmem:[#allocation8 + $0x20] sm:$0xf]
    %v289 = vld [vmem:[#allocation8 + $0x24] sm:$0xf]
    %v290 = vld [vmem:[#allocation8 + $0x28] sm:$0xf]
    %v291 = vld [vmem:[#allocation8 + $0x2c] sm:$0xf]
    %v292 = vld [vmem:[#allocation8 + $0x30] sm:$0xf]
    %v293 = vld [vmem:[#allocation8 + $0x34] sm:$0xf]
    %v294 = vld [vmem:[#allocation8 + $0x38] sm:$0xf]
    %v295 = vld [vmem:[#allocation8 + $0x3c] sm:$0xf]
    %v296 = vld [vmem:[#allocation8 + $0x40] sm:$0xf]
    %v297 = vld [vmem:[#allocation8 + $0x44] sm:$0xf]
    %v298 = vld [vmem:[#allocation8 + $0x48] sm:$0xf]
    %v299 = vld [vmem:[#allocation8 + $0x4c] sm:$0xf]
    %v300 = vld [vmem:[#allocation8 + $0x50] sm:$0xf]
    %v301 = vld [vmem:[#allocation8 + $0x54] sm:$0xf]
    %v302 = vld [vmem:[#allocation8 + $0x58] sm:$0xf]
    %v303 = vld [vmem:[#allocation8 + $0x5c] sm:$0xf]
    %v304 = vld [vmem:[#allocation8 + $0x60] sm:$0xf]
    %v305 = vld [vmem:[#allocation8 + $0x64] sm:$0xf]
    %v306 = vld [vmem:[#allocation8 + $0x68] sm:$0xf]
    %v307 = vld [vmem:[#allocation8 + $0x6c] sm:$0xf]
    %v308 = vld [vmem:[#allocation8 + $0x70] sm:$0xf]
    %v309 = vld [vmem:[#allocation8 + $0x74] sm:$0xf]
    %v310 = vld [vmem:[#allocation8 + $0x78] sm:$0xf]
    %v311 = vld [vmem:[#allocation8 + $0x7c] sm:$0xf]
    %v312 = vld [vmem:[#allocation8 + $0x80] sm:$0xf]
    %v313 = vld [vmem:[#allocation8 + $0x84] sm:$0xf]
    %v314 = vld [vmem:[#allocation8 + $0x88] sm:$0xf]
    %v315 = vld [vmem:[#allocation8 + $0x8c] sm:$0xf]
    %v316 = vld [vmem:[#allocation8 + $0x90] sm:$0xf]
    %v317 = vld [vmem:[#allocation8 + $0x94] sm:$0xf]
    %v318 = vld [vmem:[#allocation8 + $0x98] sm:$0xf]
    %v319 = vld [vmem:[#allocation8 + $0x9c] sm:$0xf]
    %v320 = vld [vmem:[#allocation8 + $0xa0] sm:$0xf]
    %v321 = vld [vmem:[#allocation8 + $0xa4] sm:$0xf]
    %v322 = vld [vmem:[#allocation8 + $0xa8] sm:$0xf]
    %v323 = vld [vmem:[#allocation8 + $0xac] sm:$0xf]
    %v324 = vld [vmem:[#allocation8 + $0xb0] sm:$0xf]
    %v325 = vld [vmem:[#allocation8 + $0xb4] sm:$0xf]
    %v326 = vld [vmem:[#allocation8 + $0xb8] sm:$0xf]
    %v327 = vld [vmem:[#allocation8 + $0xbc] sm:$0xf]
    %v328 = vld [vmem:[#allocation9] sm:$0x1]
    %v330 = vperm.slane %v328, 0
    %v380 = vunpack.c.l.b16 %v280
    %v381 = vunpack.c.l.b16 %v281
    %v382 = vunpack.c.l.b16 %v282
    %v383 = vunpack.c.l.b16 %v283
    %v384 = vunpack.c.l.b16 %v284
    %v385 = vunpack.c.l.b16 %v285
    %v386 = vunpack.c.l.b16 %v286
    %v387 = vunpack.c.l.b16 %v287
    %v388 = vunpack.c.l.b16 %v288
    %v389 = vunpack.c.l.b16 %v289
    %v390 = vunpack.c.l.b16 %v290
    %v391 = vunpack.c.l.b16 %v291
    %v392 = vunpack.c.l.b16 %v292
    %v393 = vunpack.c.l.b16 %v293
    %v394 = vunpack.c.l.b16 %v294
    %v395 = vunpack.c.l.b16 %v295
    %v396 = vunpack.c.l.b16 %v296
    %v397 = vunpack.c.l.b16 %v297
    %v398 = vunpack.c.l.b16 %v298
    %v399 = vunpack.c.l.b16 %v299
    %v400 = vunpack.c.l.b16 %v300
    %v401 = vunpack.c.l.b16 %v301
    %v402 = vunpack.c.l.b16 %v302
    %v403 = vunpack.c.l.b16 %v303
    %v404 = vunpack.c.l.b16 %v304
    %v405 = vunpack.c.l.b16 %v305
    %v406 = vunpack.c.l.b16 %v306
    %v407 = vunpack.c.l.b16 %v307
    %v408 = vunpack.c.l.b16 %v308
    %v409 = vunpack.c.l.b16 %v309
    %v410 = vunpack.c.l.b16 %v310
    %v411 = vunpack.c.l.b16 %v311
    %v412 = vunpack.c.l.b16 %v312
    %v413 = vunpack.c.l.b16 %v313
    %v414 = vunpack.c.l.b16 %v314
    %v415 = vunpack.c.l.b16 %v315
    %v416 = vunpack.c.l.b16 %v316
    %v417 = vunpack.c.l.b16 %v317
    %v418 = vunpack.c.l.b16 %v318
    %v419 = vunpack.c.l.b16 %v319
    %v420 = vunpack.c.l.b16 %v320
    %v421 = vunpack.c.l.b16 %v321
    %v422 = vunpack.c.l.b16 %v322
    %v423 = vunpack.c.l.b16 %v323
    %v424 = vunpack.c.l.b16 %v324
    %v425 = vunpack.c.l.b16 %v325
    %v426 = vunpack.c.l.b16 %v326
    %v427 = vunpack.c.l.b16 %v327
    %v428 = vpack.c.b16 %v381, %v380
    %v429 = vpack.c.b16 %v383, %v382
    %v430 = vpack.c.b16 %v385, %v384
    %v431 = vpack.c.b16 %v387, %v386
    %v432 = vpack.c.b16 %v389, %v388
    %v433 = vpack.c.b16 %v391, %v390
    %v434 = vpack.c.b16 %v393, %v392
    %v435 = vpack.c.b16 %v395, %v394
    %v436 = vpack.c.b16 %v397, %v396
    %v437 = vpack.c.b16 %v399, %v398
    %v438 = vpack.c.b16 %v401, %v400
    %v439 = vpack.c.b16 %v403, %v402
    %v440 = vpack.c.b16 %v405, %v404
    %v441 = vpack.c.b16 %v407, %v406
    %v442 = vpack.c.b16 %v409, %v408
    %v443 = vpack.c.b16 %v411, %v410
    %v444 = vpack.c.b16 %v413, %v412
    %v445 = vpack.c.b16 %v415, %v414
    %v446 = vpack.c.b16 %v417, %v416
    %v447 = vpack.c.b16 %v419, %v418
    %v448 = vpack.c.b16 %v421, %v420
    %v449 = vpack.c.b16 %v423, %v422
    %v450 = vpack.c.b16 %v425, %v424
    %v451 = vpack.c.b16 %v427, %v426
    %476 = vmatpush.bf16.msra.mxu0 %v435
    %477 = vmatpush.bf16.msra.mxu0 %v434
    %478 = vmatpush.bf16.msra.mxu0 %v433
    %479 = vmatpush.bf16.msra.mxu0 %v432
    %480 = vmatpush.bf16.msra.mxu0 %v431
    %481 = vmatpush.bf16.msra.mxu0 %v430
    %482 = vmatpush.bf16.msra.mxu0 %v429
    %483 = vmatpush.bf16.msra.mxu0 %v428
    %484 = vmatmul.bf16.gmra.mxu0 %v274
    %v485 = vpop.f32.mrf.mxu0
    %v486 = vadd.f32 %v330, %v485
    %v487 = vpop.f32.mrf.mxu0
    %v488 = vadd.f32 %v330, %v487
    %489 = vmatmul.bf16.gmra.mxu0 %v277
    %v490 = vpop.f32.mrf.mxu0
    %v491 = vadd.f32 %v330, %v490
    %v492 = vpop.f32.mrf.mxu0
    %v493 = vadd.f32 %v330, %v492
    %494 = vdwg.mxu0
    %495 = vmatpush.bf16.msra.mxu0 %v443
    %496 = vmatpush.bf16.msra.mxu0 %v442
    %497 = vmatpush.bf16.msra.mxu0 %v441
    %498 = vmatpush.bf16.msra.mxu0 %v440
    %499 = vmatpush.bf16.msra.mxu0 %v439
    %500 = vmatpush.bf16.msra.mxu0 %v438
    %501 = vmatpush.bf16.msra.mxu0 %v437
    %502 = vmatpush.bf16.msra.mxu0 %v436
    %503 = vmatmul.bf16.gmra.mxu0 %v275
    %v504 = vpop.f32.mrf.mxu0
    %v505 = vadd.f32 %v486, %v504
    %v506 = vpop.f32.mrf.mxu0
    %v507 = vadd.f32 %v488, %v506
    %508 = vmatmul.bf16.gmra.mxu0 %v278
    %v509 = vpop.f32.mrf.mxu0
    %v510 = vadd.f32 %v491, %v509
    %v511 = vpop.f32.mrf.mxu0
    %v512 = vadd.f32 %v493, %v511
    %513 = vdwg.mxu0
    %514 = vmatpush.bf16.msra.mxu0 %v451
    %515 = vmatpush.bf16.msra.mxu0 %v450
    %516 = vmatpush.bf16.msra.mxu0 %v449
    %517 = vmatpush.bf16.msra.mxu0 %v448
    %518 = vmatpush.bf16.msra.mxu0 %v447
    %519 = vmatpush.bf16.msra.mxu0 %v446
    %520 = vmatpush.bf16.msra.mxu0 %v445
    %521 = vmatpush.bf16.msra.mxu0 %v444
    %522 = vmatmul.bf16.gmra.mxu0 %v276
    %v523 = vpop.f32.mrf.mxu0
    %v524 = vadd.f32 %v505, %v523
    %v525 = vpop.f32.mrf.mxu0
    %v526 = vadd.f32 %v507, %v525
    %527 = vmatmul.bf16.gmra.mxu0 %v279
    %v528 = vpop.f32.mrf.mxu0
    %v529 = vadd.f32 %v510, %v528
    %v530 = vpop.f32.mrf.mxu0
    %v531 = vadd.f32 %v512, %v530
    %532 = vdwg.mxu0
    %v533 = vmul.f32 %v524, 0.5
    %v534 = vmul.f32 %v526, 0.5
    %v535 = vmul.f32 %v529, 0.5
    %v536 = vmul.f32 %v531, 0.5
    %v537 = vmul.f32 %v524, 0.044715
    %v538 = vmul.f32 %v526, 0.044715
    %v539 = vmul.f32 %v529, 0.044715
    %v540 = vmul.f32 %v531, 0.044715
    %v541 = vmul.f32 %v537, %v524
    %v542 = vmul.f32 %v538, %v526
    %v543 = vmul.f32 %v539, %v529
    %v544 = vmul.f32 %v540, %v531
    %v545 = vmul.f32 %v541, %v524
    %v546 = vmul.f32 %v542, %v526
    %v547 = vmul.f32 %v543, %v529
    %v548 = vmul.f32 %v544, %v531
    %v549 = vadd.f32 %v524, %v545
    %v550 = vadd.f32 %v526, %v546
    %v551 = vadd.f32 %v529, %v547
    %v552 = vadd.f32 %v531, %v548
    %v553 = vmul.f32 %v549, 0.7978846
    %v554 = vmul.f32 %v550, 0.7978846
    %v555 = vmul.f32 %v551, 0.7978846
    %v556 = vmul.f32 %v552, 0.7978846
    %v557 = vtanh.pop %v553
    %v558 = vtanh.pop %v554
    %v559 = vtanh.pop %v555
    %v560 = vtanh.pop %v556
    %v561 = vadd.f32 %v557, 1.0
    %v562 = vadd.f32 %v558, 1.0
    %v563 = vadd.f32 %v559, 1.0
    %v564 = vadd.f32 %v560, 1.0
    %v565 = vmul.f32 %v533, %v561
    %v566 = vmul.f32 %v534, %v562
    %v567 = vmul.f32 %v535, %v563
    %v568 = vmul.f32 %v536, %v564
    %v569 = vrot.slane %v565, 7
    %v570 = vrot.slane %v566, 7
    %v571 = vrot.slane %v567, 7
    %v572 = vrot.slane %v568, 7
    %v573 = vsel %vm250, %v571, %v572
    %v574 = vsel %vm250, %v570, %v571
    %v575 = vsel %vm250, %v569, %v570
    %v576 = vsel %vm250, %v572, %v569
    %v577 = vsel %vm244, %v576, 0.0
    %v578 = vsel %vm245, %v575, 0.0
    %v579 = vsel %vm244, %v574, 0.0
    %v580 = vsel %vm245, %v573, 0.0
    %v581 = vrot.slane %v565, 1
    %v582 = vrot.slane %v566, 1
    %v583 = vrot.slane %v567, 1
    %v584 = vrot.slane %v568, 1
    %v585 = vsel %vm265, %v583, %v584
    %v586 = vsel %vm265, %v582, %v583
    %v587 = vsel %vm265, %v581, %v582
    %v588 = vsel %vm265, %v584, %v581
    %v589 = vsel %vm259, %v587, 0.0
    %v590 = vsel %vm260, %v586, 0.0
    %v591 = vsel %vm259, %v585, 0.0
    %v592 = vsel %vm260, %v588, 0.0
    %v593 = vpack.c.bf16 %v578, %v577
    %v594 = vpack.c.bf16 %v566, %v565
    %v595 = vpack.c.bf16 %v590, %v589
    %v596 = vpack.c.bf16 %v580, %v579
    %v597 = vpack.c.bf16 %v568, %v567
    %v598 = vpack.c.bf16 %v592, %v591
    %s599 = scalar_lea.vmem [#allocation8], 192
    %v600 = vld [vmem:[%s599] sm:$0xf]
    %v601 = vld [vmem:[%s599 + $0x4] sm:$0xf]
    %v602 = vld [vmem:[%s599 + $0x8] sm:$0xf]
    %v603 = vld [vmem:[%s599 + $0xc] sm:$0xf]
    %v604 = vld [vmem:[%s599 + $0x10] sm:$0xf]
    %v605 = vld [vmem:[%s599 + $0x14] sm:$0xf]
    %v606 = vld [vmem:[%s599 + $0x18] sm:$0xf]
    %v607 = vld [vmem:[%s599 + $0x1c] sm:$0xf]
    %v608 = vld [vmem:[%s599 + $0x20] sm:$0xf]
    %v609 = vld [vmem:[%s599 + $0x24] sm:$0xf]
    %v610 = vld [vmem:[%s599 + $0x28] sm:$0xf]
    %v611 = vld [vmem:[%s599 + $0x2c] sm:$0xf]
    %v612 = vld [vmem:[%s599 + $0x30] sm:$0xf]
    %v613 = vld [vmem:[%s599 + $0x34] sm:$0xf]
    %v614 = vld [vmem:[%s599 + $0x38] sm:$0xf]
    %v615 = vld [vmem:[%s599 + $0x3c] sm:$0xf]
    %v616 = vld [vmem:[%s599 + $0x40] sm:$0xf]
    %v617 = vld [vmem:[%s599 + $0x44] sm:$0xf]
    %v618 = vld [vmem:[%s599 + $0x48] sm:$0xf]
    %v619 = vld [vmem:[%s599 + $0x4c] sm:$0xf]
    %v620 = vld [vmem:[%s599 + $0x50] sm:$0xf]
    %v621 = vld [vmem:[%s599 + $0x54] sm:$0xf]
    %v622 = vld [vmem:[%s599 + $0x58] sm:$0xf]
    %v623 = vld [vmem:[%s599 + $0x5c] sm:$0xf]
    %v624 = vld [vmem:[%s599 + $0x60] sm:$0xf]
    %v625 = vld [vmem:[%s599 + $0x64] sm:$0xf]
    %v626 = vld [vmem:[%s599 + $0x68] sm:$0xf]
    %v627 = vld [vmem:[%s599 + $0x6c] sm:$0xf]
    %v628 = vld [vmem:[%s599 + $0x70] sm:$0xf]
    %v629 = vld [vmem:[%s599 + $0x74] sm:$0xf]
    %v630 = vld [vmem:[%s599 + $0x78] sm:$0xf]
    %v631 = vld [vmem:[%s599 + $0x7c] sm:$0xf]
    %v632 = vld [vmem:[%s599 + $0x80] sm:$0xf]
    %v633 = vld [vmem:[%s599 + $0x84] sm:$0xf]
    %v634 = vld [vmem:[%s599 + $0x88] sm:$0xf]
    %v635 = vld [vmem:[%s599 + $0x8c] sm:$0xf]
    %v636 = vld [vmem:[%s599 + $0x90] sm:$0xf]
    %v637 = vld [vmem:[%s599 + $0x94] sm:$0xf]
    %v638 = vld [vmem:[%s599 + $0x98] sm:$0xf]
    %v639 = vld [vmem:[%s599 + $0x9c] sm:$0xf]
    %v640 = vld [vmem:[%s599 + $0xa0] sm:$0xf]
    %v641 = vld [vmem:[%s599 + $0xa4] sm:$0xf]
    %v642 = vld [vmem:[%s599 + $0xa8] sm:$0xf]
    %v643 = vld [vmem:[%s599 + $0xac] sm:$0xf]
    %v644 = vld [vmem:[%s599 + $0xb0] sm:$0xf]
    %v645 = vld [vmem:[%s599 + $0xb4] sm:$0xf]
    %v646 = vld [vmem:[%s599 + $0xb8] sm:$0xf]
    %v647 = vld [vmem:[%s599 + $0xbc] sm:$0xf]
    %s648 = scalar_lea.vmem [#allocation9], 1
    %v649 = vld [vmem:[%s648] sm:$0x1]
    %v651 = vperm.slane %v649, 0
    %v701 = vunpack.c.l.b16 %v600
    %v702 = vunpack.c.l.b16 %v601
    %v703 = vunpack.c.l.b16 %v602
    %v704 = vunpack.c.l.b16 %v603
    %v705 = vunpack.c.l.b16 %v604
    %v706 = vunpack.c.l.b16 %v605
    %v707 = vunpack.c.l.b16 %v606
    %v708 = vunpack.c.l.b16 %v607
    %v709 = vunpack.c.l.b16 %v608
    %v710 = vunpack.c.l.b16 %v609
    %v711 = vunpack.c.l.b16 %v610
    %v712 = vunpack.c.l.b16 %v611
    %v713 = vunpack.c.l.b16 %v612
    %v714 = vunpack.c.l.b16 %v613
    %v715 = vunpack.c.l.b16 %v614
    %v716 = vunpack.c.l.b16 %v615
    %v717 = vunpack.c.l.b16 %v616
    %v718 = vunpack.c.l.b16 %v617
    %v719 = vunpack.c.l.b16 %v618
    %v720 = vunpack.c.l.b16 %v619
    %v721 = vunpack.c.l.b16 %v620
    %v722 = vunpack.c.l.b16 %v621
    %v723 = vunpack.c.l.b16 %v622
    %v724 = vunpack.c.l.b16 %v623
    %v725 = vunpack.c.l.b16 %v624
    %v726 = vunpack.c.l.b16 %v625
    %v727 = vunpack.c.l.b16 %v626
    %v728 = vunpack.c.l.b16 %v627
    %v729 = vunpack.c.l.b16 %v628
    %v730 = vunpack.c.l.b16 %v629
    %v731 = vunpack.c.l.b16 %v630
    %v732 = vunpack.c.l.b16 %v631
    %v733 = vunpack.c.l.b16 %v632
    %v734 = vunpack.c.l.b16 %v633
    %v735 = vunpack.c.l.b16 %v634
    %v736 = vunpack.c.l.b16 %v635
    %v737 = vunpack.c.l.b16 %v636
    %v738 = vunpack.c.l.b16 %v637
    %v739 = vunpack.c.l.b16 %v638
    %v740 = vunpack.c.l.b16 %v639
    %v741 = vunpack.c.l.b16 %v640
    %v742 = vunpack.c.l.b16 %v641
    %v743 = vunpack.c.l.b16 %v642
    %v744 = vunpack.c.l.b16 %v643
    %v745 = vunpack.c.l.b16 %v644
    %v746 = vunpack.c.l.b16 %v645
    %v747 = vunpack.c.l.b16 %v646
    %v748 = vunpack.c.l.b16 %v647
    %v749 = vpack.c.b16 %v702, %v701
    %v750 = vpack.c.b16 %v704, %v703
    %v751 = vpack.c.b16 %v706, %v705
    %v752 = vpack.c.b16 %v708, %v707
    %v753 = vpack.c.b16 %v710, %v709
    %v754 = vpack.c.b16 %v712, %v711
    %v755 = vpack.c.b16 %v714, %v713
    %v756 = vpack.c.b16 %v716, %v715
    %v757 = vpack.c.b16 %v718, %v717
    %v758 = vpack.c.b16 %v720, %v719
    %v759 = vpack.c.b16 %v722, %v721
    %v760 = vpack.c.b16 %v724, %v723
    %v761 = vpack.c.b16 %v726, %v725
    %v762 = vpack.c.b16 %v728, %v727
    %v763 = vpack.c.b16 %v730, %v729
    %v764 = vpack.c.b16 %v732, %v731
    %v765 = vpack.c.b16 %v734, %v733
    %v766 = vpack.c.b16 %v736, %v735
    %v767 = vpack.c.b16 %v738, %v737
    %v768 = vpack.c.b16 %v740, %v739
    %v769 = vpack.c.b16 %v742, %v741
    %v770 = vpack.c.b16 %v744, %v743
    %v771 = vpack.c.b16 %v746, %v745
    %v772 = vpack.c.b16 %v748, %v747
    %797 = vmatpush.bf16.msra.mxu0 %v756
    %798 = vmatpush.bf16.msra.mxu0 %v755
    %799 = vmatpush.bf16.msra.mxu0 %v754
    %800 = vmatpush.bf16.msra.mxu0 %v753
    %801 = vmatpush.bf16.msra.mxu0 %v752
    %802 = vmatpush.bf16.msra.mxu0 %v751
    %803 = vmatpush.bf16.msra.mxu0 %v750
    %804 = vmatpush.bf16.msra.mxu0 %v749
    %805 = vmatmul.bf16.gmra.mxu0 %v593
    %v806 = vpop.f32.mrf.mxu0
    %v807 = vadd.f32 %v651, %v806
    %v808 = vpop.f32.mrf.mxu0
    %v809 = vadd.f32 %v651, %v808
    %810 = vmatmul.bf16.gmra.mxu0 %v596
    %v811 = vpop.f32.mrf.mxu0
    %v812 = vadd.f32 %v651, %v811
    %v813 = vpop.f32.mrf.mxu0
    %v814 = vadd.f32 %v651, %v813
    %815 = vdwg.mxu0
    %816 = vmatpush.bf16.msra.mxu0 %v764
    %817 = vmatpush.bf16.msra.mxu0 %v763
    %818 = vmatpush.bf16.msra.mxu0 %v762
    %819 = vmatpush.bf16.msra.mxu0 %v761
    %820 = vmatpush.bf16.msra.mxu0 %v760
    %821 = vmatpush.bf16.msra.mxu0 %v759
    %822 = vmatpush.bf16.msra.mxu0 %v758
    %823 = vmatpush.bf16.msra.mxu0 %v757
    %824 = vmatmul.bf16.gmra.mxu0 %v594
    %v825 = vpop.f32.mrf.mxu0
    %v826 = vadd.f32 %v807, %v825
    %v827 = vpop.f32.mrf.mxu0
    %v828 = vadd.f32 %v809, %v827
    %829 = vmatmul.bf16.gmra.mxu0 %v597
    %v830 = vpop.f32.mrf.mxu0
    %v831 = vadd.f32 %v812, %v830
    %v832 = vpop.f32.mrf.mxu0
    %v833 = vadd.f32 %v814, %v832
    %834 = vdwg.mxu0
    %835 = vmatpush.bf16.msra.mxu0 %v772
    %836 = vmatpush.bf16.msra.mxu0 %v771
    %837 = vmatpush.bf16.msra.mxu0 %v770
    %838 = vmatpush.bf16.msra.mxu0 %v769
    %839 = vmatpush.bf16.msra.mxu0 %v768
    %840 = vmatpush.bf16.msra.mxu0 %v767
    %841 = vmatpush.bf16.msra.mxu0 %v766
    %842 = vmatpush.bf16.msra.mxu0 %v765
    %843 = vmatmul.bf16.gmra.mxu0 %v595
    %v844 = vpop.f32.mrf.mxu0
    %v845 = vadd.f32 %v826, %v844
    %v846 = vpop.f32.mrf.mxu0
    %v847 = vadd.f32 %v828, %v846
    %848 = vmatmul.bf16.gmra.mxu0 %v598
    %v849 = vpop.f32.mrf.mxu0
    %v850 = vadd.f32 %v831, %v849
    %v851 = vpop.f32.mrf.mxu0
    %v852 = vadd.f32 %v833, %v851
    %853 = vdwg.mxu0
    %v854 = vadd.f32 %v845, %v204
    %v855 = vadd.f32 %v847, %v205
    %v856 = vadd.f32 %v850, %v206
    %v857 = vadd.f32 %v852, %v207
    %858 = vst [vmem:[#allocation2] sm:$0xff] %v854
    %859 = vst [vmem:[#allocation2 + $0x8] sm:$0xff] %v855
    %860 = vst [vmem:[#allocation2 + $0x10] sm:$0xff] %v856
    %861 = vst [vmem:[#allocation2 + $0x18] sm:$0xff] %v857
    %v862 = vld [vmem:[#allocation2] sm:$0xff]
    %v863 = vld [vmem:[#allocation2 + $0x8] sm:$0xff]
    %v864 = vld [vmem:[#allocation2 + $0x10] sm:$0xff]
    %v865 = vld [vmem:[#allocation2 + $0x18] sm:$0xff]
    %v866 = vmul.f32 %v862, 0.5
    %v867 = vmul.f32 %v863, 0.5
    %v868 = vmul.f32 %v864, 0.5
    %v869 = vmul.f32 %v865, 0.5
    %v870 = vmul.f32 %v862, 0.044715
    %v871 = vmul.f32 %v863, 0.044715
    %v872 = vmul.f32 %v864, 0.044715
    %v873 = vmul.f32 %v865, 0.044715
    %v874 = vmul.f32 %v870, %v862
    %v875 = vmul.f32 %v871, %v863
    %v876 = vmul.f32 %v872, %v864
    %v877 = vmul.f32 %v873, %v865
    %v878 = vmul.f32 %v874, %v862
    %v879 = vmul.f32 %v875, %v863
    %v880 = vmul.f32 %v876, %v864
    %v881 = vmul.f32 %v877, %v865
    %v882 = vadd.f32 %v862, %v878
    %v883 = vadd.f32 %v863, %v879
    %v884 = vadd.f32 %v864, %v880
    %v885 = vadd.f32 %v865, %v881
    %v886 = vmul.f32 %v882, 0.7978846
    %v887 = vmul.f32 %v883, 0.7978846
    %v888 = vmul.f32 %v884, 0.7978846
    %v889 = vmul.f32 %v885, 0.7978846
    %v890 = vtanh.pop %v886
    %v891 = vtanh.pop %v887
    %v892 = vtanh.pop %v888
    %v893 = vtanh.pop %v889
    %v894 = vadd.f32 %v890, 1.0
    %v895 = vadd.f32 %v891, 1.0
    %v896 = vadd.f32 %v892, 1.0
    %v897 = vadd.f32 %v893, 1.0
    %v898 = vmul.f32 %v866, %v894
    %v899 = vmul.f32 %v867, %v895
    %v900 = vmul.f32 %v868, %v896
    %v901 = vmul.f32 %v869, %v897
    %vm902 = vcmp.ge.s32.totalorder %v117, 2
    %vm903 = vcmp.ge.s32.totalorder %v118, 2
    %v904 = vrot.slane %v898, 6
    %v905 = vrot.slane %v899, 6
    %v906 = vrot.slane %v900, 6
    %v907 = vrot.slane %v901, 6
    %vm908 = vcmp.lt.s32.totalorder %v117, 2
    %v909 = vsel %vm908, %v906, %v907
    %v910 = vsel %vm908, %v905, %v906
    %v911 = vsel %vm908, %v904, %v905
    %v912 = vsel %vm908, %v907, %v904
    %v913 = vsel %vm902, %v912, 0.0
    %v914 = vsel %vm903, %v911, 0.0
    %v915 = vsel %vm902, %v910, 0.0
    %v916 = vsel %vm903, %v909, 0.0
    %vm917 = vcmp.lt.s32.totalorder %v117, 14
    %vm918 = vcmp.lt.s32.totalorder %v118, 14
    %v919 = vrot.slane %v898, 2
    %v920 = vrot.slane %v899, 2
    %v921 = vrot.slane %v900, 2
    %v922 = vrot.slane %v901, 2
    %vm923 = vcmp.lt.s32.totalorder %v117, 6
    %v924 = vsel %vm923, %v921, %v922
    %v925 = vsel %vm923, %v920, %v921
    %v926 = vsel %vm923, %v919, %v920
    %v927 = vsel %vm923, %v922, %v919
    %v928 = vsel %vm917, %v926, 0.0
    %v929 = vsel %vm918, %v925, 0.0
    %v930 = vsel %vm917, %v924, 0.0
    %v931 = vsel %vm918, %v927, 0.0
    %v932 = vpack.c.bf16 %v914, %v913
    %v933 = vpack.c.bf16 %v899, %v898
    %v934 = vpack.c.bf16 %v929, %v928
    %v935 = vpack.c.bf16 %v916, %v915
    %v936 = vpack.c.bf16 %v901, %v900
    %v937 = vpack.c.bf16 %v931, %v930
    %s938 = scalar_lea.vmem [#allocation8], 384
    %v939 = vld [vmem:[%s938] sm:$0xf]
    %v940 = vld [vmem:[%s938 + $0x4] sm:$0xf]
    %v941 = vld [vmem:[%s938 + $0x8] sm:$0xf]
    %v942 = vld [vmem:[%s938 + $0xc] sm:$0xf]
    %v943 = vld [vmem:[%s938 + $0x10] sm:$0xf]
    %v944 = vld [vmem:[%s938 + $0x14] sm:$0xf]
    %v945 = vld [vmem:[%s938 + $0x18] sm:$0xf]
    %v946 = vld [vmem:[%s938 + $0x1c] sm:$0xf]
    %v947 = vld [vmem:[%s938 + $0x20] sm:$0xf]
    %v948 = vld [vmem:[%s938 + $0x24] sm:$0xf]
    %v949 = vld [vmem:[%s938 + $0x28] sm:$0xf]
    %v950 = vld [vmem:[%s938 + $0x2c] sm:$0xf]
    %v951 = vld [vmem:[%s938 + $0x30] sm:$0xf]
    %v952 = vld [vmem:[%s938 + $0x34] sm:$0xf]
    %v953 = vld [vmem:[%s938 + $0x38] sm:$0xf]
    %v954 = vld [vmem:[%s938 + $0x3c] sm:$0xf]
    %v955 = vld [vmem:[%s938 + $0x40] sm:$0xf]
    %v956 = vld [vmem:[%s938 + $0x44] sm:$0xf]
    %v957 = vld [vmem:[%s938 + $0x48] sm:$0xf]
    %v958 = vld [vmem:[%s938 + $0x4c] sm:$0xf]
    %v959 = vld [vmem:[%s938 + $0x50] sm:$0xf]
    %v960 = vld [vmem:[%s938 + $0x54] sm:$0xf]
    %v961 = vld [vmem:[%s938 + $0x58] sm:$0xf]
    %v962 = vld [vmem:[%s938 + $0x5c] sm:$0xf]
    %v963 = vld [vmem:[%s938 + $0x60] sm:$0xf]
    %v964 = vld [vmem:[%s938 + $0x64] sm:$0xf]
    %v965 = vld [vmem:[%s938 + $0x68] sm:$0xf]
    %v966 = vld [vmem:[%s938 + $0x6c] sm:$0xf]
    %v967 = vld [vmem:[%s938 + $0x70] sm:$0xf]
    %v968 = vld [vmem:[%s938 + $0x74] sm:$0xf]
    %v969 = vld [vmem:[%s938 + $0x78] sm:$0xf]
    %v970 = vld [vmem:[%s938 + $0x7c] sm:$0xf]
    %v971 = vld [vmem:[%s938 + $0x80] sm:$0xf]
    %v972 = vld [vmem:[%s938 + $0x84] sm:$0xf]
    %v973 = vld [vmem:[%s938 + $0x88] sm:$0xf]
    %v974 = vld [vmem:[%s938 + $0x8c] sm:$0xf]
    %v975 = vld [vmem:[%s938 + $0x90] sm:$0xf]
    %v976 = vld [vmem:[%s938 + $0x94] sm:$0xf]
    %v977 = vld [vmem:[%s938 + $0x98] sm:$0xf]
    %v978 = vld [vmem:[%s938 + $0x9c] sm:$0xf]
    %v979 = vld [vmem:[%s938 + $0xa0] sm:$0xf]
    %v980 = vld [vmem:[%s938 + $0xa4] sm:$0xf]
    %v981 = vld [vmem:[%s938 + $0xa8] sm:$0xf]
    %v982 = vld [vmem:[%s938 + $0xac] sm:$0xf]
    %v983 = vld [vmem:[%s938 + $0xb0] sm:$0xf]
    %v984 = vld [vmem:[%s938 + $0xb4] sm:$0xf]
    %v985 = vld [vmem:[%s938 + $0xb8] sm:$0xf]
    %v986 = vld [vmem:[%s938 + $0xbc] sm:$0xf]
    %s987 = scalar_lea.vmem [#allocation9], 2
    %v988 = vld [vmem:[%s987] sm:$0x1]
    %v990 = vperm.slane %v988, 0
    %v1040 = vunpack.c.l.b16 %v939
    %v1041 = vunpack.c.l.b16 %v940
    %v1042 = vunpack.c.l.b16 %v941
    %v1043 = vunpack.c.l.b16 %v942
    %v1044 = vunpack.c.l.b16 %v943
    %v1045 = vunpack.c.l.b16 %v944
    %v1046 = vunpack.c.l.b16 %v945
    %v1047 = vunpack.c.l.b16 %v946
    %v1048 = vunpack.c.l.b16 %v947
    %v1049 = vunpack.c.l.b16 %v948
    %v1050 = vunpack.c.l.b16 %v949
    %v1051 = vunpack.c.l.b16 %v950
    %v1052 = vunpack.c.l.b16 %v951
    %v1053 = vunpack.c.l.b16 %v952
    %v1054 = vunpack.c.l.b16 %v953
    %v1055 = vunpack.c.l.b16 %v954
    %v1056 = vunpack.c.l.b16 %v955
    %v1057 = vunpack.c.l.b16 %v956
    %v1058 = vunpack.c.l.b16 %v957
    %v1059 = vunpack.c.l.b16 %v958
    %v1060 = vunpack.c.l.b16 %v959
    %v1061 = vunpack.c.l.b16 %v960
    %v1062 = vunpack.c.l.b16 %v961
    %v1063 = vunpack.c.l.b16 %v962
    %v1064 = vunpack.c.l.b16 %v963
    %v1065 = vunpack.c.l.b16 %v964
    %v1066 = vunpack.c.l.b16 %v965
    %v1067 = vunpack.c.l.b16 %v966
    %v1068 = vunpack.c.l.b16 %v967
    %v1069 = vunpack.c.l.b16 %v968
    %v1070 = vunpack.c.l.b16 %v969
    %v1071 = vunpack.c.l.b16 %v970
    %v1072 = vunpack.c.l.b16 %v971
    %v1073 = vunpack.c.l.b16 %v972
    %v1074 = vunpack.c.l.b16 %v973
    %v1075 = vunpack.c.l.b16 %v974
    %v1076 = vunpack.c.l.b16 %v975
    %v1077 = vunpack.c.l.b16 %v976
    %v1078 = vunpack.c.l.b16 %v977
    %v1079 = vunpack.c.l.b16 %v978
    %v1080 = vunpack.c.l.b16 %v979
    %v1081 = vunpack.c.l.b16 %v980
    %v1082 = vunpack.c.l.b16 %v981
    %v1083 = vunpack.c.l.b16 %v982
    %v1084 = vunpack.c.l.b16 %v983
    %v1085 = vunpack.c.l.b16 %v984
    %v1086 = vunpack.c.l.b16 %v985
    %v1087 = vunpack.c.l.b16 %v986
    %v1088 = vpack.c.b16 %v1041, %v1040
    %v1089 = vpack.c.b16 %v1043, %v1042
    %v1090 = vpack.c.b16 %v1045, %v1044
    %v1091 = vpack.c.b16 %v1047, %v1046
    %v1092 = vpack.c.b16 %v1049, %v1048
    %v1093 = vpack.c.b16 %v1051, %v1050
    %v1094 = vpack.c.b16 %v1053, %v1052
    %v1095 = vpack.c.b16 %v1055, %v1054
    %v1096 = vpack.c.b16 %v1057, %v1056
    %v1097 = vpack.c.b16 %v1059, %v1058
    %v1098 = vpack.c.b16 %v1061, %v1060
    %v1099 = vpack.c.b16 %v1063, %v1062
    %v1100 = vpack.c.b16 %v1065, %v1064
    %v1101 = vpack.c.b16 %v1067, %v1066
    %v1102 = vpack.c.b16 %v1069, %v1068
    %v1103 = vpack.c.b16 %v1071, %v1070
    %v1104 = vpack.c.b16 %v1073, %v1072
    %v1105 = vpack.c.b16 %v1075, %v1074
    %v1106 = vpack.c.b16 %v1077, %v1076
    %v1107 = vpack.c.b16 %v1079, %v1078
    %v1108 = vpack.c.b16 %v1081, %v1080
    %v1109 = vpack.c.b16 %v1083, %v1082
    %v1110 = vpack.c.b16 %v1085, %v1084
    %v1111 = vpack.c.b16 %v1087, %v1086
    %1136 = vmatpush.bf16.msra.mxu0 %v1095
    %1137 = vmatpush.bf16.msra.mxu0 %v1094
    %1138 = vmatpush.bf16.msra.mxu0 %v1093
    %1139 = vmatpush.bf16.msra.mxu0 %v1092
    %1140 = vmatpush.bf16.msra.mxu0 %v1091
    %1141 = vmatpush.bf16.msra.mxu0 %v1090
    %1142 = vmatpush.bf16.msra.mxu0 %v1089
    %1143 = vmatpush.bf16.msra.mxu0 %v1088
    %1144 = vmatmul.bf16.gmra.mxu0 %v932
    %v1145 = vpop.f32.mrf.mxu0
    %v1146 = vadd.f32 %v990, %v1145
    %v1147 = vpop.f32.mrf.mxu0
    %v1148 = vadd.f32 %v990, %v1147
    %1149 = vmatmul.bf16.gmra.mxu0 %v935
    %v1150 = vpop.f32.mrf.mxu0
    %v1151 = vadd.f32 %v990, %v1150
    %v1152 = vpop.f32.mrf.mxu0
    %v1153 = vadd.f32 %v990, %v1152
    %1154 = vdwg.mxu0
    %1155 = vmatpush.bf16.msra.mxu0 %v1103
    %1156 = vmatpush.bf16.msra.mxu0 %v1102
    %1157 = vmatpush.bf16.msra.mxu0 %v1101
    %1158 = vmatpush.bf16.msra.mxu0 %v1100
    %1159 = vmatpush.bf16.msra.mxu0 %v1099
    %1160 = vmatpush.bf16.msra.mxu0 %v1098
    %1161 = vmatpush.bf16.msra.mxu0 %v1097
    %1162 = vmatpush.bf16.msra.mxu0 %v1096
    %1163 = vmatmul.bf16.gmra.mxu0 %v933
    %v1164 = vpop.f32.mrf.mxu0
    %v1165 = vadd.f32 %v1146, %v1164
    %v1166 = vpop.f32.mrf.mxu0
    %v1167 = vadd.f32 %v1148, %v1166
    %1168 = vmatmul.bf16.gmra.mxu0 %v936
    %v1169 = vpop.f32.mrf.mxu0
    %v1170 = vadd.f32 %v1151, %v1169
    %v1171 = vpop.f32.mrf.mxu0
    %v1172 = vadd.f32 %v1153, %v1171
    %1173 = vdwg.mxu0
    %1174 = vmatpush.bf16.msra.mxu0 %v1111
    %1175 = vmatpush.bf16.msra.mxu0 %v1110
    %1176 = vmatpush.bf16.msra.mxu0 %v1109
    %1177 = vmatpush.bf16.msra.mxu0 %v1108
    %1178 = vmatpush.bf16.msra.mxu0 %v1107
    %1179 = vmatpush.bf16.msra.mxu0 %v1106
    %1180 = vmatpush.bf16.msra.mxu0 %v1105
    %1181 = vmatpush.bf16.msra.mxu0 %v1104
    %1182 = vmatmul.bf16.gmra.mxu0 %v934
    %v1183 = vpop.f32.mrf.mxu0
    %v1184 = vadd.f32 %v1165, %v1183
    %v1185 = vpop.f32.mrf.mxu0
    %v1186 = vadd.f32 %v1167, %v1185
    %1187 = vmatmul.bf16.gmra.mxu0 %v937
    %v1188 = vpop.f32.mrf.mxu0
    %v1189 = vadd.f32 %v1170, %v1188
    %v1190 = vpop.f32.mrf.mxu0
    %v1191 = vadd.f32 %v1172, %v1190
    %1192 = vdwg.mxu0
    %v1193 = vmul.f32 %v1184, 0.5
    %v1194 = vmul.f32 %v1186, 0.5
    %v1195 = vmul.f32 %v1189, 0.5
    %v1196 = vmul.f32 %v1191, 0.5
    %v1197 = vmul.f32 %v1184, 0.044715
    %v1198 = vmul.f32 %v1186, 0.044715
    %v1199 = vmul.f32 %v1189, 0.044715
    %v1200 = vmul.f32 %v1191, 0.044715
    %v1201 = vmul.f32 %v1197, %v1184
    %v1202 = vmul.f32 %v1198, %v1186
    %v1203 = vmul.f32 %v1199, %v1189
    %v1204 = vmul.f32 %v1200, %v1191
    %v1205 = vmul.f32 %v1201, %v1184
    %v1206 = vmul.f32 %v1202, %v1186
    %v1207 = vmul.f32 %v1203, %v1189
    %v1208 = vmul.f32 %v1204, %v1191
    %v1209 = vadd.f32 %v1184, %v1205
    %v1210 = vadd.f32 %v1186, %v1206
    %v1211 = vadd.f32 %v1189, %v1207
    %v1212 = vadd.f32 %v1191, %v1208
    %v1213 = vmul.f32 %v1209, 0.7978846
    %v1214 = vmul.f32 %v1210, 0.7978846
    %v1215 = vmul.f32 %v1211, 0.7978846
    %v1216 = vmul.f32 %v1212, 0.7978846
    %v1217 = vtanh.pop %v1213
    %v1218 = vtanh.pop %v1214
    %v1219 = vtanh.pop %v1215
    %v1220 = vtanh.pop %v1216
    %v1221 = vadd.f32 %v1217, 1.0
    %v1222 = vadd.f32 %v1218, 1.0
    %v1223 = vadd.f32 %v1219, 1.0
    %v1224 = vadd.f32 %v1220, 1.0
    %v1225 = vmul.f32 %v1193, %v1221
    %v1226 = vmul.f32 %v1194, %v1222
    %v1227 = vmul.f32 %v1195, %v1223
    %v1228 = vmul.f32 %v1196, %v1224
    %v1229 = vrot.slane %v1225, 6
    %v1230 = vrot.slane %v1226, 6
    %v1231 = vrot.slane %v1227, 6
    %v1232 = vrot.slane %v1228, 6
    %v1233 = vsel %vm908, %v1231, %v1232
    %v1234 = vsel %vm908, %v1230, %v1231
    %v1235 = vsel %vm908, %v1229, %v1230
    %v1236 = vsel %vm908, %v1232, %v1229
    %v1237 = vsel %vm902, %v1236, 0.0
    %v1238 = vsel %vm903, %v1235, 0.0
    %v1239 = vsel %vm902, %v1234, 0.0
    %v1240 = vsel %vm903, %v1233, 0.0
    %v1241 = vrot.slane %v1225, 2
    %v1242 = vrot.slane %v1226, 2
    %v1243 = vrot.slane %v1227, 2
    %v1244 = vrot.slane %v1228, 2
    %v1245 = vsel %vm923, %v1243, %v1244
    %v1246 = vsel %vm923, %v1242, %v1243
    %v1247 = vsel %vm923, %v1241, %v1242
    %v1248 = vsel %vm923, %v1244, %v1241
    %v1249 = vsel %vm917, %v1247, 0.0
    %v1250 = vsel %vm918, %v1246, 0.0
    %v1251 = vsel %vm917, %v1245, 0.0
    %v1252 = vsel %vm918, %v1248, 0.0
    %v1253 = vpack.c.bf16 %v1238, %v1237
    %v1254 = vpack.c.bf16 %v1226, %v1225
    %v1255 = vpack.c.bf16 %v1250, %v1249
    %v1256 = vpack.c.bf16 %v1240, %v1239
    %v1257 = vpack.c.bf16 %v1228, %v1227
    %v1258 = vpack.c.bf16 %v1252, %v1251
    %s1259 = scalar_lea.vmem [#allocation8], 576
    %v1260 = vld [vmem:[%s1259] sm:$0xf]
    %v1261 = vld [vmem:[%s1259 + $0x4] sm:$0xf]
    %v1262 = vld [vmem:[%s1259 + $0x8] sm:$0xf]
    %v1263 = vld [vmem:[%s1259 + $0xc] sm:$0xf]
    %v1264 = vld [vmem:[%s1259 + $0x10] sm:$0xf]
    %v1265 = vld [vmem:[%s1259 + $0x14] sm:$0xf]
    %v1266 = vld [vmem:[%s1259 + $0x18] sm:$0xf]
    %v1267 = vld [vmem:[%s1259 + $0x1c] sm:$0xf]
    %v1268 = vld [vmem:[%s1259 + $0x20] sm:$0xf]
    %v1269 = vld [vmem:[%s1259 + $0x24] sm:$0xf]
    %v1270 = vld [vmem:[%s1259 + $0x28] sm:$0xf]
    %v1271 = vld [vmem:[%s1259 + $0x2c] sm:$0xf]
    %v1272 = vld [vmem:[%s1259 + $0x30] sm:$0xf]
    %v1273 = vld [vmem:[%s1259 + $0x34] sm:$0xf]
    %v1274 = vld [vmem:[%s1259 + $0x38] sm:$0xf]
    %v1275 = vld [vmem:[%s1259 + $0x3c] sm:$0xf]
    %v1276 = vld [vmem:[%s1259 + $0x40] sm:$0xf]
    %v1277 = vld [vmem:[%s1259 + $0x44] sm:$0xf]
    %v1278 = vld [vmem:[%s1259 + $0x48] sm:$0xf]
    %v1279 = vld [vmem:[%s1259 + $0x4c] sm:$0xf]
    %v1280 = vld [vmem:[%s1259 + $0x50] sm:$0xf]
    %v1281 = vld [vmem:[%s1259 + $0x54] sm:$0xf]
    %v1282 = vld [vmem:[%s1259 + $0x58] sm:$0xf]
    %v1283 = vld [vmem:[%s1259 + $0x5c] sm:$0xf]
    %v1284 = vld [vmem:[%s1259 + $0x60] sm:$0xf]
    %v1285 = vld [vmem:[%s1259 + $0x64] sm:$0xf]
    %v1286 = vld [vmem:[%s1259 + $0x68] sm:$0xf]
    %v1287 = vld [vmem:[%s1259 + $0x6c] sm:$0xf]
    %v1288 = vld [vmem:[%s1259 + $0x70] sm:$0xf]
    %v1289 = vld [vmem:[%s1259 + $0x74] sm:$0xf]
    %v1290 = vld [vmem:[%s1259 + $0x78] sm:$0xf]
    %v1291 = vld [vmem:[%s1259 + $0x7c] sm:$0xf]
    %v1292 = vld [vmem:[%s1259 + $0x80] sm:$0xf]
    %v1293 = vld [vmem:[%s1259 + $0x84] sm:$0xf]
    %v1294 = vld [vmem:[%s1259 + $0x88] sm:$0xf]
    %v1295 = vld [vmem:[%s1259 + $0x8c] sm:$0xf]
    %v1296 = vld [vmem:[%s1259 + $0x90] sm:$0xf]
    %v1297 = vld [vmem:[%s1259 + $0x94] sm:$0xf]
    %v1298 = vld [vmem:[%s1259 + $0x98] sm:$0xf]
    %v1299 = vld [vmem:[%s1259 + $0x9c] sm:$0xf]
    %v1300 = vld [vmem:[%s1259 + $0xa0] sm:$0xf]
    %v1301 = vld [vmem:[%s1259 + $0xa4] sm:$0xf]
    %v1302 = vld [vmem:[%s1259 + $0xa8] sm:$0xf]
    %v1303 = vld [vmem:[%s1259 + $0xac] sm:$0xf]
    %v1304 = vld [vmem:[%s1259 + $0xb0] sm:$0xf]
    %v1305 = vld [vmem:[%s1259 + $0xb4] sm:$0xf]
    %v1306 = vld [vmem:[%s1259 + $0xb8] sm:$0xf]
    %v1307 = vld [vmem:[%s1259 + $0xbc] sm:$0xf]
    %s1308 = scalar_lea.vmem [#allocation9], 3
    %v1309 = vld [vmem:[%s1308] sm:$0x1]
    %v1311 = vperm.slane %v1309, 0
    %v1361 = vunpack.c.l.b16 %v1260
    %v1362 = vunpack.c.l.b16 %v1261
    %v1363 = vunpack.c.l.b16 %v1262
    %v1364 = vunpack.c.l.b16 %v1263
    %v1365 = vunpack.c.l.b16 %v1264
    %v1366 = vunpack.c.l.b16 %v1265
    %v1367 = vunpack.c.l.b16 %v1266
    %v1368 = vunpack.c.l.b16 %v1267
    %v1369 = vunpack.c.l.b16 %v1268
    %v1370 = vunpack.c.l.b16 %v1269
    %v1371 = vunpack.c.l.b16 %v1270
    %v1372 = vunpack.c.l.b16 %v1271
    %v1373 = vunpack.c.l.b16 %v1272
    %v1374 = vunpack.c.l.b16 %v1273
    %v1375 = vunpack.c.l.b16 %v1274
    %v1376 = vunpack.c.l.b16 %v1275
    %v1377 = vunpack.c.l.b16 %v1276
    %v1378 = vunpack.c.l.b16 %v1277
    %v1379 = vunpack.c.l.b16 %v1278
    %v1380 = vunpack.c.l.b16 %v1279
    %v1381 = vunpack.c.l.b16 %v1280
    %v1382 = vunpack.c.l.b16 %v1281
    %v1383 = vunpack.c.l.b16 %v1282
    %v1384 = vunpack.c.l.b16 %v1283
    %v1385 = vunpack.c.l.b16 %v1284
    %v1386 = vunpack.c.l.b16 %v1285
    %v1387 = vunpack.c.l.b16 %v1286
    %v1388 = vunpack.c.l.b16 %v1287
    %v1389 = vunpack.c.l.b16 %v1288
    %v1390 = vunpack.c.l.b16 %v1289
    %v1391 = vunpack.c.l.b16 %v1290
    %v1392 = vunpack.c.l.b16 %v1291
    %v1393 = vunpack.c.l.b16 %v1292
    %v1394 = vunpack.c.l.b16 %v1293
    %v1395 = vunpack.c.l.b16 %v1294
    %v1396 = vunpack.c.l.b16 %v1295
    %v1397 = vunpack.c.l.b16 %v1296
    %v1398 = vunpack.c.l.b16 %v1297
    %v1399 = vunpack.c.l.b16 %v1298
    %v1400 = vunpack.c.l.b16 %v1299
    %v1401 = vunpack.c.l.b16 %v1300
    %v1402 = vunpack.c.l.b16 %v1301
    %v1403 = vunpack.c.l.b16 %v1302
    %v1404 = vunpack.c.l.b16 %v1303
    %v1405 = vunpack.c.l.b16 %v1304
    %v1406 = vunpack.c.l.b16 %v1305
    %v1407 = vunpack.c.l.b16 %v1306
    %v1408 = vunpack.c.l.b16 %v1307
    %v1409 = vpack.c.b16 %v1362, %v1361
    %v1410 = vpack.c.b16 %v1364, %v1363
    %v1411 = vpack.c.b16 %v1366, %v1365
    %v1412 = vpack.c.b16 %v1368, %v1367
    %v1413 = vpack.c.b16 %v1370, %v1369
    %v1414 = vpack.c.b16 %v1372, %v1371
    %v1415 = vpack.c.b16 %v1374, %v1373
    %v1416 = vpack.c.b16 %v1376, %v1375
    %v1417 = vpack.c.b16 %v1378, %v1377
    %v1418 = vpack.c.b16 %v1380, %v1379
    %v1419 = vpack.c.b16 %v1382, %v1381
    %v1420 = vpack.c.b16 %v1384, %v1383
    %v1421 = vpack.c.b16 %v1386, %v1385
    %v1422 = vpack.c.b16 %v1388, %v1387
    %v1423 = vpack.c.b16 %v1390, %v1389
    %v1424 = vpack.c.b16 %v1392, %v1391
    %v1425 = vpack.c.b16 %v1394, %v1393
    %v1426 = vpack.c.b16 %v1396, %v1395
    %v1427 = vpack.c.b16 %v1398, %v1397
    %v1428 = vpack.c.b16 %v1400, %v1399
    %v1429 = vpack.c.b16 %v1402, %v1401
    %v1430 = vpack.c.b16 %v1404, %v1403
    %v1431 = vpack.c.b16 %v1406, %v1405
    %v1432 = vpack.c.b16 %v1408, %v1407
    %1457 = vmatpush.bf16.msra.mxu0 %v1416
    %1458 = vmatpush.bf16.msra.mxu0 %v1415
    %1459 = vmatpush.bf16.msra.mxu0 %v1414
    %1460 = vmatpush.bf16.msra.mxu0 %v1413
    %1461 = vmatpush.bf16.msra.mxu0 %v1412
    %1462 = vmatpush.bf16.msra.mxu0 %v1411
    %1463 = vmatpush.bf16.msra.mxu0 %v1410
    %1464 = vmatpush.bf16.msra.mxu0 %v1409
    %1465 = vmatmul.bf16.gmra.mxu0 %v1253
    %v1466 = vpop.f32.mrf.mxu0
    %v1467 = vadd.f32 %v1311, %v1466
    %v1468 = vpop.f32.mrf.mxu0
    %v1469 = vadd.f32 %v1311, %v1468
    %1470 = vmatmul.bf16.gmra.mxu0 %v1256
    %v1471 = vpop.f32.mrf.mxu0
    %v1472 = vadd.f32 %v1311, %v1471
    %v1473 = vpop.f32.mrf.mxu0
    %v1474 = vadd.f32 %v1311, %v1473
    %1475 = vdwg.mxu0
    %1476 = vmatpush.bf16.msra.mxu0 %v1424
    %1477 = vmatpush.bf16.msra.mxu0 %v1423
    %1478 = vmatpush.bf16.msra.mxu0 %v1422
    %1479 = vmatpush.bf16.msra.mxu0 %v1421
    %1480 = vmatpush.bf16.msra.mxu0 %v1420
    %1481 = vmatpush.bf16.msra.mxu0 %v1419
    %1482 = vmatpush.bf16.msra.mxu0 %v1418
    %1483 = vmatpush.bf16.msra.mxu0 %v1417
    %1484 = vmatmul.bf16.gmra.mxu0 %v1254
    %v1485 = vpop.f32.mrf.mxu0
    %v1486 = vadd.f32 %v1467, %v1485
    %v1487 = vpop.f32.mrf.mxu0
    %v1488 = vadd.f32 %v1469, %v1487
    %1489 = vmatmul.bf16.gmra.mxu0 %v1257
    %v1490 = vpop.f32.mrf.mxu0
    %v1491 = vadd.f32 %v1472, %v1490
    %v1492 = vpop.f32.mrf.mxu0
    %v1493 = vadd.f32 %v1474, %v1492
    %1494 = vdwg.mxu0
    %1495 = vmatpush.bf16.msra.mxu0 %v1432
    %1496 = vmatpush.bf16.msra.mxu0 %v1431
    %1497 = vmatpush.bf16.msra.mxu0 %v1430
    %1498 = vmatpush.bf16.msra.mxu0 %v1429
    %1499 = vmatpush.bf16.msra.mxu0 %v1428
    %1500 = vmatpush.bf16.msra.mxu0 %v1427
    %1501 = vmatpush.bf16.msra.mxu0 %v1426
    %1502 = vmatpush.bf16.msra.mxu0 %v1425
    %1503 = vmatmul.bf16.gmra.mxu0 %v1255
    %v1504 = vpop.f32.mrf.mxu0
    %v1505 = vadd.f32 %v1486, %v1504
    %v1506 = vpop.f32.mrf.mxu0
    %v1507 = vadd.f32 %v1488, %v1506
    %1508 = vmatmul.bf16.gmra.mxu0 %v1258
    %v1509 = vpop.f32.mrf.mxu0
    %v1510 = vadd.f32 %v1491, %v1509
    %v1511 = vpop.f32.mrf.mxu0
    %v1512 = vadd.f32 %v1493, %v1511
    %1513 = vdwg.mxu0
    %v1514 = vadd.f32 %v1505, %v862
    %v1515 = vadd.f32 %v1507, %v863
    %v1516 = vadd.f32 %v1510, %v864
    %v1517 = vadd.f32 %v1512, %v865
    %1518 = vst [vmem:[#allocation2] sm:$0xff] %v1514
    %1519 = vst [vmem:[#allocation2 + $0x8] sm:$0xff] %v1515
    %1520 = vst [vmem:[#allocation2 + $0x10] sm:$0xff] %v1516
    %1521 = vst [vmem:[#allocation2 + $0x18] sm:$0xff] %v1517
    %v1522 = vld [vmem:[#allocation2] sm:$0xff]
    %v1523 = vld [vmem:[#allocation2 + $0x8] sm:$0xff]
    %v1524 = vld [vmem:[#allocation2 + $0x10] sm:$0xff]
    %v1525 = vld [vmem:[#allocation2 + $0x18] sm:$0xff]
    %v1526 = vmul.f32 %v1522, 0.5
    %v1527 = vmul.f32 %v1523, 0.5
    %v1528 = vmul.f32 %v1524, 0.5
    %v1529 = vmul.f32 %v1525, 0.5
    %v1530 = vmul.f32 %v1522, 0.044715
    %v1531 = vmul.f32 %v1523, 0.044715
    %v1532 = vmul.f32 %v1524, 0.044715
    %v1533 = vmul.f32 %v1525, 0.044715
    %v1534 = vmul.f32 %v1530, %v1522
    %v1535 = vmul.f32 %v1531, %v1523
    %v1536 = vmul.f32 %v1532, %v1524
    %v1537 = vmul.f32 %v1533, %v1525
    %v1538 = vmul.f32 %v1534, %v1522
    %v1539 = vmul.f32 %v1535, %v1523
    %v1540 = vmul.f32 %v1536, %v1524
    %v1541 = vmul.f32 %v1537, %v1525
    %v1542 = vadd.f32 %v1522, %v1538
    %v1543 = vadd.f32 %v1523, %v1539
    %v1544 = vadd.f32 %v1524, %v1540
    %v1545 = vadd.f32 %v1525, %v1541
    %v1546 = vmul.f32 %v1542, 0.7978846
    %v1547 = vmul.f32 %v1543, 0.7978846
    %v1548 = vmul.f32 %v1544, 0.7978846
    %v1549 = vmul.f32 %v1545, 0.7978846
    %v1550 = vtanh.pop %v1546
    %v1551 = vtanh.pop %v1547
    %v1552 = vtanh.pop %v1548
    %v1553 = vtanh.pop %v1549
    %v1554 = vadd.f32 %v1550, 1.0
    %v1555 = vadd.f32 %v1551, 1.0
    %v1556 = vadd.f32 %v1552, 1.0
    %v1557 = vadd.f32 %v1553, 1.0
    %v1558 = vmul.f32 %v1526, %v1554
    %v1559 = vmul.f32 %v1527, %v1555
    %v1560 = vmul.f32 %v1528, %v1556
    %v1561 = vmul.f32 %v1529, %v1557
    %vm1562 = vcmp.ge.s32.totalorder %v117, 4
    %vm1563 = vcmp.ge.s32.totalorder %v118, 4
    %v1564 = vrot.slane %v1558, 4
    %v1565 = vrot.slane %v1559, 4
    %v1566 = vrot.slane %v1560, 4
    %v1567 = vrot.slane %v1561, 4
    %vm1568 = vcmp.lt.s32.totalorder %v117, 4
    %v1569 = vsel %vm1568, %v1566, %v1567
    %v1570 = vsel %vm1568, %v1565, %v1566
    %v1571 = vsel %vm1568, %v1564, %v1565
    %v1572 = vsel %vm1568, %v1567, %v1564
    %v1573 = vsel %vm1562, %v1572, 0.0
    %v1574 = vsel %vm1563, %v1571, 0.0
    %v1575 = vsel %vm1562, %v1570, 0.0
    %v1576 = vsel %vm1563, %v1569, 0.0
    %vm1577 = vcmp.lt.s32.totalorder %v117, 12
    %vm1578 = vcmp.lt.s32.totalorder %v118, 12
    %v1579 = vsel %vm1577, %v1571, 0.0
    %v1580 = vsel %vm1578, %v1570, 0.0
    %v1581 = vsel %vm1577, %v1569, 0.0
    %v1582 = vsel %vm1578, %v1572, 0.0
    %v1583 = vpack.c.bf16 %v1574, %v1573
    %v1584 = vpack.c.bf16 %v1559, %v1558
    %v1585 = vpack.c.bf16 %v1580, %v1579
    %v1586 = vpack.c.bf16 %v1576, %v1575
    %v1587 = vpack.c.bf16 %v1561, %v1560
    %v1588 = vpack.c.bf16 %v1582, %v1581
    %s1589 = scalar_lea.vmem [#allocation8], 768
    %v1590 = vld [vmem:[%s1589] sm:$0xf]
    %v1591 = vld [vmem:[%s1589 + $0x4] sm:$0xf]
    %v1592 = vld [vmem:[%s1589 + $0x8] sm:$0xf]
    %v1593 = vld [vmem:[%s1589 + $0xc] sm:$0xf]
    %v1594 = vld [vmem:[%s1589 + $0x10] sm:$0xf]
    %v1595 = vld [vmem:[%s1589 + $0x14] sm:$0xf]
    %v1596 = vld [vmem:[%s1589 + $0x18] sm:$0xf]
    %v1597 = vld [vmem:[%s1589 + $0x1c] sm:$0xf]
    %v1598 = vld [vmem:[%s1589 + $0x20] sm:$0xf]
    %v1599 = vld [vmem:[%s1589 + $0x24] sm:$0xf]
    %v1600 = vld [vmem:[%s1589 + $0x28] sm:$0xf]
    %v1601 = vld [vmem:[%s1589 + $0x2c] sm:$0xf]
    %v1602 = vld [vmem:[%s1589 + $0x30] sm:$0xf]
    %v1603 = vld [vmem:[%s1589 + $0x34] sm:$0xf]
    %v1604 = vld [vmem:[%s1589 + $0x38] sm:$0xf]
    %v1605 = vld [vmem:[%s1589 + $0x3c] sm:$0xf]
    %v1606 = vld [vmem:[%s1589 + $0x40] sm:$0xf]
    %v1607 = vld [vmem:[%s1589 + $0x44] sm:$0xf]
    %v1608 = vld [vmem:[%s1589 + $0x48] sm:$0xf]
    %v1609 = vld [vmem:[%s1589 + $0x4c] sm:$0xf]
    %v1610 = vld [vmem:[%s1589 + $0x50] sm:$0xf]
    %v1611 = vld [vmem:[%s1589 + $0x54] sm:$0xf]
    %v1612 = vld [vmem:[%s1589 + $0x58] sm:$0xf]
    %v1613 = vld [vmem:[%s1589 + $0x5c] sm:$0xf]
    %v1614 = vld [vmem:[%s1589 + $0x60] sm:$0xf]
    %v1615 = vld [vmem:[%s1589 + $0x64] sm:$0xf]
    %v1616 = vld [vmem:[%s1589 + $0x68] sm:$0xf]
    %v1617 = vld [vmem:[%s1589 + $0x6c] sm:$0xf]
    %v1618 = vld [vmem:[%s1589 + $0x70] sm:$0xf]
    %v1619 = vld [vmem:[%s1589 + $0x74] sm:$0xf]
    %v1620 = vld [vmem:[%s1589 + $0x78] sm:$0xf]
    %v1621 = vld [vmem:[%s1589 + $0x7c] sm:$0xf]
    %v1622 = vld [vmem:[%s1589 + $0x80] sm:$0xf]
    %v1623 = vld [vmem:[%s1589 + $0x84] sm:$0xf]
    %v1624 = vld [vmem:[%s1589 + $0x88] sm:$0xf]
    %v1625 = vld [vmem:[%s1589 + $0x8c] sm:$0xf]
    %v1626 = vld [vmem:[%s1589 + $0x90] sm:$0xf]
    %v1627 = vld [vmem:[%s1589 + $0x94] sm:$0xf]
    %v1628 = vld [vmem:[%s1589 + $0x98] sm:$0xf]
    %v1629 = vld [vmem:[%s1589 + $0x9c] sm:$0xf]
    %v1630 = vld [vmem:[%s1589 + $0xa0] sm:$0xf]
    %v1631 = vld [vmem:[%s1589 + $0xa4] sm:$0xf]
    %v1632 = vld [vmem:[%s1589 + $0xa8] sm:$0xf]
    %v1633 = vld [vmem:[%s1589 + $0xac] sm:$0xf]
    %v1634 = vld [vmem:[%s1589 + $0xb0] sm:$0xf]
    %v1635 = vld [vmem:[%s1589 + $0xb4] sm:$0xf]
    %v1636 = vld [vmem:[%s1589 + $0xb8] sm:$0xf]
    %v1637 = vld [vmem:[%s1589 + $0xbc] sm:$0xf]
    %s1638 = scalar_lea.vmem [#allocation9], 4
    %v1639 = vld [vmem:[%s1638] sm:$0x1]
    %v1641 = vperm.slane %v1639, 0
    %v1691 = vunpack.c.l.b16 %v1590
    %v1692 = vunpack.c.l.b16 %v1591
    %v1693 = vunpack.c.l.b16 %v1592
    %v1694 = vunpack.c.l.b16 %v1593
    %v1695 = vunpack.c.l.b16 %v1594
    %v1696 = vunpack.c.l.b16 %v1595
    %v1697 = vunpack.c.l.b16 %v1596
    %v1698 = vunpack.c.l.b16 %v1597
    %v1699 = vunpack.c.l.b16 %v1598
    %v1700 = vunpack.c.l.b16 %v1599
    %v1701 = vunpack.c.l.b16 %v1600
    %v1702 = vunpack.c.l.b16 %v1601
    %v1703 = vunpack.c.l.b16 %v1602
    %v1704 = vunpack.c.l.b16 %v1603
    %v1705 = vunpack.c.l.b16 %v1604
    %v1706 = vunpack.c.l.b16 %v1605
    %v1707 = vunpack.c.l.b16 %v1606
    %v1708 = vunpack.c.l.b16 %v1607
    %v1709 = vunpack.c.l.b16 %v1608
    %v1710 = vunpack.c.l.b16 %v1609
    %v1711 = vunpack.c.l.b16 %v1610
    %v1712 = vunpack.c.l.b16 %v1611
    %v1713 = vunpack.c.l.b16 %v1612
    %v1714 = vunpack.c.l.b16 %v1613
    %v1715 = vunpack.c.l.b16 %v1614
    %v1716 = vunpack.c.l.b16 %v1615
    %v1717 = vunpack.c.l.b16 %v1616
    %v1718 = vunpack.c.l.b16 %v1617
    %v1719 = vunpack.c.l.b16 %v1618
    %v1720 = vunpack.c.l.b16 %v1619
    %v1721 = vunpack.c.l.b16 %v1620
    %v1722 = vunpack.c.l.b16 %v1621
    %v1723 = vunpack.c.l.b16 %v1622
    %v1724 = vunpack.c.l.b16 %v1623
    %v1725 = vunpack.c.l.b16 %v1624
    %v1726 = vunpack.c.l.b16 %v1625
    %v1727 = vunpack.c.l.b16 %v1626
    %v1728 = vunpack.c.l.b16 %v1627
    %v1729 = vunpack.c.l.b16 %v1628
    %v1730 = vunpack.c.l.b16 %v1629
    %v1731 = vunpack.c.l.b16 %v1630
    %v1732 = vunpack.c.l.b16 %v1631
    %v1733 = vunpack.c.l.b16 %v1632
    %v1734 = vunpack.c.l.b16 %v1633
    %v1735 = vunpack.c.l.b16 %v1634
    %v1736 = vunpack.c.l.b16 %v1635
    %v1737 = vunpack.c.l.b16 %v1636
    %v1738 = vunpack.c.l.b16 %v1637
    %v1739 = vpack.c.b16 %v1692, %v1691
    %v1740 = vpack.c.b16 %v1694, %v1693
    %v1741 = vpack.c.b16 %v1696, %v1695
    %v1742 = vpack.c.b16 %v1698, %v1697
    %v1743 = vpack.c.b16 %v1700, %v1699
    %v1744 = vpack.c.b16 %v1702, %v1701
    %v1745 = vpack.c.b16 %v1704, %v1703
    %v1746 = vpack.c.b16 %v1706, %v1705
    %v1747 = vpack.c.b16 %v1708, %v1707
    %v1748 = vpack.c.b16 %v1710, %v1709
    %v1749 = vpack.c.b16 %v1712, %v1711
    %v1750 = vpack.c.b16 %v1714, %v1713
    %v1751 = vpack.c.b16 %v1716, %v1715
    %v1752 = vpack.c.b16 %v1718, %v1717
    %v1753 = vpack.c.b16 %v1720, %v1719
    %v1754 = vpack.c.b16 %v1722, %v1721
    %v1755 = vpack.c.b16 %v1724, %v1723
    %v1756 = vpack.c.b16 %v1726, %v1725
    %v1757 = vpack.c.b16 %v1728, %v1727
    %v1758 = vpack.c.b16 %v1730, %v1729
    %v1759 = vpack.c.b16 %v1732, %v1731
    %v1760 = vpack.c.b16 %v1734, %v1733
    %v1761 = vpack.c.b16 %v1736, %v1735
    %v1762 = vpack.c.b16 %v1738, %v1737
    %1787 = vmatpush.bf16.msra.mxu0 %v1746
    %1788 = vmatpush.bf16.msra.mxu0 %v1745
    %1789 = vmatpush.bf16.msra.mxu0 %v1744
    %1790 = vmatpush.bf16.msra.mxu0 %v1743
    %1791 = vmatpush.bf16.msra.mxu0 %v1742
    %1792 = vmatpush.bf16.msra.mxu0 %v1741
    %1793 = vmatpush.bf16.msra.mxu0 %v1740
    %1794 = vmatpush.bf16.msra.mxu0 %v1739
    %1795 = vmatmul.bf16.gmra.mxu0 %v1583
    %v1796 = vpop.f32.mrf.mxu0
    %v1797 = vadd.f32 %v1641, %v1796
    %v1798 = vpop.f32.mrf.mxu0
    %v1799 = vadd.f32 %v1641, %v1798
    %1800 = vmatmul.bf16.gmra.mxu0 %v1586
    %v1801 = vpop.f32.mrf.mxu0
    %v1802 = vadd.f32 %v1641, %v1801
    %v1803 = vpop.f32.mrf.mxu0
    %v1804 = vadd.f32 %v1641, %v1803
    %1805 = vdwg.mxu0
    %1806 = vmatpush.bf16.msra.mxu0 %v1754
    %1807 = vmatpush.bf16.msra.mxu0 %v1753
    %1808 = vmatpush.bf16.msra.mxu0 %v1752
    %1809 = vmatpush.bf16.msra.mxu0 %v1751
    %1810 = vmatpush.bf16.msra.mxu0 %v1750
    %1811 = vmatpush.bf16.msra.mxu0 %v1749
    %1812 = vmatpush.bf16.msra.mxu0 %v1748
    %1813 = vmatpush.bf16.msra.mxu0 %v1747
    %1814 = vmatmul.bf16.gmra.mxu0 %v1584
    %v1815 = vpop.f32.mrf.mxu0
    %v1816 = vadd.f32 %v1797, %v1815
    %v1817 = vpop.f32.mrf.mxu0
    %v1818 = vadd.f32 %v1799, %v1817
    %1819 = vmatmul.bf16.gmra.mxu0 %v1587
    %v1820 = vpop.f32.mrf.mxu0
    %v1821 = vadd.f32 %v1802, %v1820
    %v1822 = vpop.f32.mrf.mxu0
    %v1823 = vadd.f32 %v1804, %v1822
    %1824 = vdwg.mxu0
    %1825 = vmatpush.bf16.msra.mxu0 %v1762
    %1826 = vmatpush.bf16.msra.mxu0 %v1761
    %1827 = vmatpush.bf16.msra.mxu0 %v1760
    %1828 = vmatpush.bf16.msra.mxu0 %v1759
    %1829 = vmatpush.bf16.msra.mxu0 %v1758
    %1830 = vmatpush.bf16.msra.mxu0 %v1757
    %1831 = vmatpush.bf16.msra.mxu0 %v1756
    %1832 = vmatpush.bf16.msra.mxu0 %v1755
    %1833 = vmatmul.bf16.gmra.mxu0 %v1585
    %v1834 = vpop.f32.mrf.mxu0
    %v1835 = vadd.f32 %v1816, %v1834
    %v1836 = vpop.f32.mrf.mxu0
    %v1837 = vadd.f32 %v1818, %v1836
    %1838 = vmatmul.bf16.gmra.mxu0 %v1588
    %v1839 = vpop.f32.mrf.mxu0
    %v1840 = vadd.f32 %v1821, %v1839
    %v1841 = vpop.f32.mrf.mxu0
    %v1842 = vadd.f32 %v1823, %v1841
    %1843 = vdwg.mxu0
    %v1844 = vmul.f32 %v1835, 0.5
    %v1845 = vmul.f32 %v1837, 0.5
    %v1846 = vmul.f32 %v1840, 0.5
    %v1847 = vmul.f32 %v1842, 0.5
    %v1848 = vmul.f32 %v1835, 0.044715
    %v1849 = vmul.f32 %v1837, 0.044715
    %v1850 = vmul.f32 %v1840, 0.044715
    %v1851 = vmul.f32 %v1842, 0.044715
    %v1852 = vmul.f32 %v1848, %v1835
    %v1853 = vmul.f32 %v1849, %v1837
    %v1854 = vmul.f32 %v1850, %v1840
    %v1855 = vmul.f32 %v1851, %v1842
    %v1856 = vmul.f32 %v1852, %v1835
    %v1857 = vmul.f32 %v1853, %v1837
    %v1858 = vmul.f32 %v1854, %v1840
    %v1859 = vmul.f32 %v1855, %v1842
    %v1860 = vadd.f32 %v1835, %v1856
    %v1861 = vadd.f32 %v1837, %v1857
    %v1862 = vadd.f32 %v1840, %v1858
    %v1863 = vadd.f32 %v1842, %v1859
    %v1864 = vmul.f32 %v1860, 0.7978846
    %v1865 = vmul.f32 %v1861, 0.7978846
    %v1866 = vmul.f32 %v1862, 0.7978846
    %v1867 = vmul.f32 %v1863, 0.7978846
    %v1868 = vtanh.pop %v1864
    %v1869 = vtanh.pop %v1865
    %v1870 = vtanh.pop %v1866
    %v1871 = vtanh.pop %v1867
    %v1872 = vadd.f32 %v1868, 1.0
    %v1873 = vadd.f32 %v1869, 1.0
    %v1874 = vadd.f32 %v1870, 1.0
    %v1875 = vadd.f32 %v1871, 1.0
    %v1876 = vmul.f32 %v1844, %v1872
    %v1877 = vmul.f32 %v1845, %v1873
    %v1878 = vmul.f32 %v1846, %v1874
    %v1879 = vmul.f32 %v1847, %v1875
    %v1880 = vrot.slane %v1876, 4
    %v1881 = vrot.slane %v1877, 4
    %v1882 = vrot.slane %v1878, 4
    %v1883 = vrot.slane %v1879, 4
    %v1884 = vsel %vm1568, %v1882, %v1883
    %v1885 = vsel %vm1568, %v1881, %v1882
    %v1886 = vsel %vm1568, %v1880, %v1881
    %v1887 = vsel %vm1568, %v1883, %v1880
    %v1888 = vsel %vm1562, %v1887, 0.0
    %v1889 = vsel %vm1563, %v1886, 0.0
    %v1890 = vsel %vm1562, %v1885, 0.0
    %v1891 = vsel %vm1563, %v1884, 0.0
    %v1892 = vsel %vm1577, %v1886, 0.0
    %v1893 = vsel %vm1578, %v1885, 0.0
    %v1894 = vsel %vm1577, %v1884, 0.0
    %v1895 = vsel %vm1578, %v1887, 0.0
    %v1896 = vpack.c.bf16 %v1889, %v1888
    %v1897 = vpack.c.bf16 %v1877, %v1876
    %v1898 = vpack.c.bf16 %v1893, %v1892
    %v1899 = vpack.c.bf16 %v1891, %v1890
    %v1900 = vpack.c.bf16 %v1879, %v1878
    %v1901 = vpack.c.bf16 %v1895, %v1894
    %s1902 = scalar_lea.vmem [#allocation8], 960
    %v1903 = vld [vmem:[%s1902] sm:$0xf]
    %v1904 = vld [vmem:[%s1902 + $0x4] sm:$0xf]
    %v1905 = vld [vmem:[%s1902 + $0x8] sm:$0xf]
    %v1906 = vld [vmem:[%s1902 + $0xc] sm:$0xf]
    %v1907 = vld [vmem:[%s1902 + $0x10] sm:$0xf]
    %v1908 = vld [vmem:[%s1902 + $0x14] sm:$0xf]
    %v1909 = vld [vmem:[%s1902 + $0x18] sm:$0xf]
    %v1910 = vld [vmem:[%s1902 + $0x1c] sm:$0xf]
    %v1911 = vld [vmem:[%s1902 + $0x20] sm:$0xf]
    %v1912 = vld [vmem:[%s1902 + $0x24] sm:$0xf]
    %v1913 = vld [vmem:[%s1902 + $0x28] sm:$0xf]
    %v1914 = vld [vmem:[%s1902 + $0x2c] sm:$0xf]
    %v1915 = vld [vmem:[%s1902 + $0x30] sm:$0xf]
    %v1916 = vld [vmem:[%s1902 + $0x34] sm:$0xf]
    %v1917 = vld [vmem:[%s1902 + $0x38] sm:$0xf]
    %v1918 = vld [vmem:[%s1902 + $0x3c] sm:$0xf]
    %v1919 = vld [vmem:[%s1902 + $0x40] sm:$0xf]
    %v1920 = vld [vmem:[%s1902 + $0x44] sm:$0xf]
    %v1921 = vld [vmem:[%s1902 + $0x48] sm:$0xf]
    %v1922 = vld [vmem:[%s1902 + $0x4c] sm:$0xf]
    %v1923 = vld [vmem:[%s1902 + $0x50] sm:$0xf]
    %v1924 = vld [vmem:[%s1902 + $0x54] sm:$0xf]
    %v1925 = vld [vmem:[%s1902 + $0x58] sm:$0xf]
    %v1926 = vld [vmem:[%s1902 + $0x5c] sm:$0xf]
    %v1927 = vld [vmem:[%s1902 + $0x60] sm:$0xf]
    %v1928 = vld [vmem:[%s1902 + $0x64] sm:$0xf]
    %v1929 = vld [vmem:[%s1902 + $0x68] sm:$0xf]
    %v1930 = vld [vmem:[%s1902 + $0x6c] sm:$0xf]
    %v1931 = vld [vmem:[%s1902 + $0x70] sm:$0xf]
    %v1932 = vld [vmem:[%s1902 + $0x74] sm:$0xf]
    %v1933 = vld [vmem:[%s1902 + $0x78] sm:$0xf]
    %v1934 = vld [vmem:[%s1902 + $0x7c] sm:$0xf]
    %v1935 = vld [vmem:[%s1902 + $0x80] sm:$0xf]
    %v1936 = vld [vmem:[%s1902 + $0x84] sm:$0xf]
    %v1937 = vld [vmem:[%s1902 + $0x88] sm:$0xf]
    %v1938 = vld [vmem:[%s1902 + $0x8c] sm:$0xf]
    %v1939 = vld [vmem:[%s1902 + $0x90] sm:$0xf]
    %v1940 = vld [vmem:[%s1902 + $0x94] sm:$0xf]
    %v1941 = vld [vmem:[%s1902 + $0x98] sm:$0xf]
    %v1942 = vld [vmem:[%s1902 + $0x9c] sm:$0xf]
    %v1943 = vld [vmem:[%s1902 + $0xa0] sm:$0xf]
    %v1944 = vld [vmem:[%s1902 + $0xa4] sm:$0xf]
    %v1945 = vld [vmem:[%s1902 + $0xa8] sm:$0xf]
    %v1946 = vld [vmem:[%s1902 + $0xac] sm:$0xf]
    %v1947 = vld [vmem:[%s1902 + $0xb0] sm:$0xf]
    %v1948 = vld [vmem:[%s1902 + $0xb4] sm:$0xf]
    %v1949 = vld [vmem:[%s1902 + $0xb8] sm:$0xf]
    %v1950 = vld [vmem:[%s1902 + $0xbc] sm:$0xf]
    %s1951 = scalar_lea.vmem [#allocation9], 5
    %v1952 = vld [vmem:[%s1951] sm:$0x1]
    %v1954 = vperm.slane %v1952, 0
    %v2004 = vunpack.c.l.b16 %v1903
    %v2005 = vunpack.c.l.b16 %v1904
    %v2006 = vunpack.c.l.b16 %v1905
    %v2007 = vunpack.c.l.b16 %v1906
    %v2008 = vunpack.c.l.b16 %v1907
    %v2009 = vunpack.c.l.b16 %v1908
    %v2010 = vunpack.c.l.b16 %v1909
    %v2011 = vunpack.c.l.b16 %v1910
    %v2012 = vunpack.c.l.b16 %v1911
    %v2013 = vunpack.c.l.b16 %v1912
    %v2014 = vunpack.c.l.b16 %v1913
    %v2015 = vunpack.c.l.b16 %v1914
    %v2016 = vunpack.c.l.b16 %v1915
    %v2017 = vunpack.c.l.b16 %v1916
    %v2018 = vunpack.c.l.b16 %v1917
    %v2019 = vunpack.c.l.b16 %v1918
    %v2020 = vunpack.c.l.b16 %v1919
    %v2021 = vunpack.c.l.b16 %v1920
    %v2022 = vunpack.c.l.b16 %v1921
    %v2023 = vunpack.c.l.b16 %v1922
    %v2024 = vunpack.c.l.b16 %v1923
    %v2025 = vunpack.c.l.b16 %v1924
    %v2026 = vunpack.c.l.b16 %v1925
    %v2027 = vunpack.c.l.b16 %v1926
    %v2028 = vunpack.c.l.b16 %v1927
    %v2029 = vunpack.c.l.b16 %v1928
    %v2030 = vunpack.c.l.b16 %v1929
    %v2031 = vunpack.c.l.b16 %v1930
    %v2032 = vunpack.c.l.b16 %v1931
    %v2033 = vunpack.c.l.b16 %v1932
    %v2034 = vunpack.c.l.b16 %v1933
    %v2035 = vunpack.c.l.b16 %v1934
    %v2036 = vunpack.c.l.b16 %v1935
    %v2037 = vunpack.c.l.b16 %v1936
    %v2038 = vunpack.c.l.b16 %v1937
    %v2039 = vunpack.c.l.b16 %v1938
    %v2040 = vunpack.c.l.b16 %v1939
    %v2041 = vunpack.c.l.b16 %v1940
    %v2042 = vunpack.c.l.b16 %v1941
    %v2043 = vunpack.c.l.b16 %v1942
    %v2044 = vunpack.c.l.b16 %v1943
    %v2045 = vunpack.c.l.b16 %v1944
    %v2046 = vunpack.c.l.b16 %v1945
    %v2047 = vunpack.c.l.b16 %v1946
    %v2048 = vunpack.c.l.b16 %v1947
    %v2049 = vunpack.c.l.b16 %v1948
    %v2050 = vunpack.c.l.b16 %v1949
    %v2051 = vunpack.c.l.b16 %v1950
    %v2052 = vpack.c.b16 %v2005, %v2004
    %v2053 = vpack.c.b16 %v2007, %v2006
    %v2054 = vpack.c.b16 %v2009, %v2008
    %v2055 = vpack.c.b16 %v2011, %v2010
    %v2056 = vpack.c.b16 %v2013, %v2012
    %v2057 = vpack.c.b16 %v2015, %v2014
    %v2058 = vpack.c.b16 %v2017, %v2016
    %v2059 = vpack.c.b16 %v2019, %v2018
    %v2060 = vpack.c.b16 %v2021, %v2020
    %v2061 = vpack.c.b16 %v2023, %v2022
    %v2062 = vpack.c.b16 %v2025, %v2024
    %v2063 = vpack.c.b16 %v2027, %v2026
    %v2064 = vpack.c.b16 %v2029, %v2028
    %v2065 = vpack.c.b16 %v2031, %v2030
    %v2066 = vpack.c.b16 %v2033, %v2032
    %v2067 = vpack.c.b16 %v2035, %v2034
    %v2068 = vpack.c.b16 %v2037, %v2036
    %v2069 = vpack.c.b16 %v2039, %v2038
    %v2070 = vpack.c.b16 %v2041, %v2040
    %v2071 = vpack.c.b16 %v2043, %v2042
    %v2072 = vpack.c.b16 %v2045, %v2044
    %v2073 = vpack.c.b16 %v2047, %v2046
    %v2074 = vpack.c.b16 %v2049, %v2048
    %v2075 = vpack.c.b16 %v2051, %v2050
    %2100 = vmatpush.bf16.msra.mxu0 %v2059
    %2101 = vmatpush.bf16.msra.mxu0 %v2058
    %2102 = vmatpush.bf16.msra.mxu0 %v2057
    %2103 = vmatpush.bf16.msra.mxu0 %v2056
    %2104 = vmatpush.bf16.msra.mxu0 %v2055
    %2105 = vmatpush.bf16.msra.mxu0 %v2054
    %2106 = vmatpush.bf16.msra.mxu0 %v2053
    %2107 = vmatpush.bf16.msra.mxu0 %v2052
    %2108 = vmatmul.bf16.gmra.mxu0 %v1896
    %v2109 = vpop.f32.mrf.mxu0
    %v2110 = vadd.f32 %v1954, %v2109
    %v2111 = vpop.f32.mrf.mxu0
    %v2112 = vadd.f32 %v1954, %v2111
    %2113 = vmatmul.bf16.gmra.mxu0 %v1899
    %v2114 = vpop.f32.mrf.mxu0
    %v2115 = vadd.f32 %v1954, %v2114
    %v2116 = vpop.f32.mrf.mxu0
    %v2117 = vadd.f32 %v1954, %v2116
    %2118 = vdwg.mxu0
    %2119 = vmatpush.bf16.msra.mxu0 %v2067
    %2120 = vmatpush.bf16.msra.mxu0 %v2066
    %2121 = vmatpush.bf16.msra.mxu0 %v2065
    %2122 = vmatpush.bf16.msra.mxu0 %v2064
    %2123 = vmatpush.bf16.msra.mxu0 %v2063
    %2124 = vmatpush.bf16.msra.mxu0 %v2062
    %2125 = vmatpush.bf16.msra.mxu0 %v2061
    %2126 = vmatpush.bf16.msra.mxu0 %v2060
    %2127 = vmatmul.bf16.gmra.mxu0 %v1897
    %v2128 = vpop.f32.mrf.mxu0
    %v2129 = vadd.f32 %v2110, %v2128
    %v2130 = vpop.f32.mrf.mxu0
    %v2131 = vadd.f32 %v2112, %v2130
    %2132 = vmatmul.bf16.gmra.mxu0 %v1900
    %v2133 = vpop.f32.mrf.mxu0
    %v2134 = vadd.f32 %v2115, %v2133
    %v2135 = vpop.f32.mrf.mxu0
    %v2136 = vadd.f32 %v2117, %v2135
    %2137 = vdwg.mxu0
    %2138 = vmatpush.bf16.msra.mxu0 %v2075
    %2139 = vmatpush.bf16.msra.mxu0 %v2074
    %2140 = vmatpush.bf16.msra.mxu0 %v2073
    %2141 = vmatpush.bf16.msra.mxu0 %v2072
    %2142 = vmatpush.bf16.msra.mxu0 %v2071
    %2143 = vmatpush.bf16.msra.mxu0 %v2070
    %2144 = vmatpush.bf16.msra.mxu0 %v2069
    %2145 = vmatpush.bf16.msra.mxu0 %v2068
    %2146 = vmatmul.bf16.gmra.mxu0 %v1898
    %v2147 = vpop.f32.mrf.mxu0
    %v2148 = vadd.f32 %v2129, %v2147
    %v2149 = vpop.f32.mrf.mxu0
    %v2150 = vadd.f32 %v2131, %v2149
    %2151 = vmatmul.bf16.gmra.mxu0 %v1901
    %v2152 = vpop.f32.mrf.mxu0
    %v2153 = vadd.f32 %v2134, %v2152
    %v2154 = vpop.f32.mrf.mxu0
    %v2155 = vadd.f32 %v2136, %v2154
    %2156 = vdwg.mxu0
    %v2157 = vadd.f32 %v2148, %v1522
    %v2158 = vadd.f32 %v2150, %v1523
    %v2159 = vadd.f32 %v2153, %v1524
    %v2160 = vadd.f32 %v2155, %v1525
    %2161 = vst [vmem:[#allocation2] sm:$0xff] %v2157
    %2162 = vst [vmem:[#allocation2 + $0x8] sm:$0xff] %v2158
    %2163 = vst [vmem:[#allocation2 + $0x10] sm:$0xff] %v2159
    %2164 = vst [vmem:[#allocation2 + $0x18] sm:$0xff] %v2160
    %v2165 = vld [vmem:[#allocation2] sm:$0xff]
    %v2166 = vld [vmem:[#allocation2 + $0x8] sm:$0xff]
    %v2167 = vld [vmem:[#allocation2 + $0x10] sm:$0xff]
    %v2168 = vld [vmem:[#allocation2 + $0x18] sm:$0xff]
    %v2169 = vmul.f32 %v2165, 0.5
    %v2170 = vmul.f32 %v2166, 0.5
    %v2171 = vmul.f32 %v2167, 0.5
    %v2172 = vmul.f32 %v2168, 0.5
    %v2173 = vmul.f32 %v2165, 0.044715
    %v2174 = vmul.f32 %v2166, 0.044715
    %v2175 = vmul.f32 %v2167, 0.044715
    %v2176 = vmul.f32 %v2168, 0.044715
    %v2177 = vmul.f32 %v2173, %v2165
    %v2178 = vmul.f32 %v2174, %v2166
    %v2179 = vmul.f32 %v2175, %v2167
    %v2180 = vmul.f32 %v2176, %v2168
    %v2181 = vmul.f32 %v2177, %v2165
    %v2182 = vmul.f32 %v2178, %v2166
    %v2183 = vmul.f32 %v2179, %v2167
    %v2184 = vmul.f32 %v2180, %v2168
    %v2185 = vadd.f32 %v2165, %v2181
    %v2186 = vadd.f32 %v2166, %v2182
    %v2187 = vadd.f32 %v2167, %v2183
    %v2188 = vadd.f32 %v2168, %v2184
    %v2189 = vmul.f32 %v2185, 0.7978846
    %v2190 = vmul.f32 %v2186, 0.7978846
    %v2191 = vmul.f32 %v2187, 0.7978846
    %v2192 = vmul.f32 %v2188, 0.7978846
    %v2193 = vtanh.pop %v2189
    %v2194 = vtanh.pop %v2190
    %v2195 = vtanh.pop %v2191
    %v2196 = vtanh.pop %v2192
    %v2197 = vadd.f32 %v2193, 1.0
    %v2198 = vadd.f32 %v2194, 1.0
    %v2199 = vadd.f32 %v2195, 1.0
    %v2200 = vadd.f32 %v2196, 1.0
    %v2201 = vmul.f32 %v2169, %v2197
    %v2202 = vmul.f32 %v2170, %v2198
    %v2203 = vmul.f32 %v2171, %v2199
    %v2204 = vmul.f32 %v2172, %v2200
    %vm2205 = vcmp.ge.s32.totalorder %v117, 8
    %vm2206 = vcmp.ge.s32.totalorder %v118, 8
    %v2207 = vsel %vm2205, %v2204, 0.0
    %v2208 = vsel %vm2206, %v2201, 0.0
    %v2209 = vsel %vm2205, %v2202, 0.0
    %v2210 = vsel %vm2206, %v2203, 0.0
    %vm2211 = vcmp.lt.s32.totalorder %v117, 8
    %vm2212 = vcmp.lt.s32.totalorder %v118, 8
    %v2213 = vsel %vm2211, %v2202, 0.0
    %v2214 = vsel %vm2212, %v2203, 0.0
    %v2215 = vsel %vm2211, %v2204, 0.0
    %v2216 = vsel %vm2212, %v2201, 0.0
    %v2217 = vpack.c.bf16 %v2208, %v2207
    %v2218 = vpack.c.bf16 %v2202, %v2201
    %v2219 = vpack.c.bf16 %v2214, %v2213
    %v2220 = vpack.c.bf16 %v2210, %v2209
    %v2221 = vpack.c.bf16 %v2204, %v2203
    %v2222 = vpack.c.bf16 %v2216, %v2215
    %s2223 = scalar_lea.vmem [#allocation8], 1152
    %v2224 = vld [vmem:[%s2223] sm:$0xf]
    %v2225 = vld [vmem:[%s2223 + $0x4] sm:$0xf]
    %v2226 = vld [vmem:[%s2223 + $0x8] sm:$0xf]
    %v2227 = vld [vmem:[%s2223 + $0xc] sm:$0xf]
    %v2228 = vld [vmem:[%s2223 + $0x10] sm:$0xf]
    %v2229 = vld [vmem:[%s2223 + $0x14] sm:$0xf]
    %v2230 = vld [vmem:[%s2223 + $0x18] sm:$0xf]
    %v2231 = vld [vmem:[%s2223 + $0x1c] sm:$0xf]
    %v2232 = vld [vmem:[%s2223 + $0x20] sm:$0xf]
    %v2233 = vld [vmem:[%s2223 + $0x24] sm:$0xf]
    %v2234 = vld [vmem:[%s2223 + $0x28] sm:$0xf]
    %v2235 = vld [vmem:[%s2223 + $0x2c] sm:$0xf]
    %v2236 = vld [vmem:[%s2223 + $0x30] sm:$0xf]
    %v2237 = vld [vmem:[%s2223 + $0x34] sm:$0xf]
    %v2238 = vld [vmem:[%s2223 + $0x38] sm:$0xf]
    %v2239 = vld [vmem:[%s2223 + $0x3c] sm:$0xf]
    %v2240 = vld [vmem:[%s2223 + $0x40] sm:$0xf]
    %v2241 = vld [vmem:[%s2223 + $0x44] sm:$0xf]
    %v2242 = vld [vmem:[%s2223 + $0x48] sm:$0xf]
    %v2243 = vld [vmem:[%s2223 + $0x4c] sm:$0xf]
    %v2244 = vld [vmem:[%s2223 + $0x50] sm:$0xf]
    %v2245 = vld [vmem:[%s2223 + $0x54] sm:$0xf]
    %v2246 = vld [vmem:[%s2223 + $0x58] sm:$0xf]
    %v2247 = vld [vmem:[%s2223 + $0x5c] sm:$0xf]
    %v2248 = vld [vmem:[%s2223 + $0x60] sm:$0xf]
    %v2249 = vld [vmem:[%s2223 + $0x64] sm:$0xf]
    %v2250 = vld [vmem:[%s2223 + $0x68] sm:$0xf]
    %v2251 = vld [vmem:[%s2223 + $0x6c] sm:$0xf]
    %v2252 = vld [vmem:[%s2223 + $0x70] sm:$0xf]
    %v2253 = vld [vmem:[%s2223 + $0x74] sm:$0xf]
    %v2254 = vld [vmem:[%s2223 + $0x78] sm:$0xf]
    %v2255 = vld [vmem:[%s2223 + $0x7c] sm:$0xf]
    %v2256 = vld [vmem:[%s2223 + $0x80] sm:$0xf]
    %v2257 = vld [vmem:[%s2223 + $0x84] sm:$0xf]
    %v2258 = vld [vmem:[%s2223 + $0x88] sm:$0xf]
    %v2259 = vld [vmem:[%s2223 + $0x8c] sm:$0xf]
    %v2260 = vld [vmem:[%s2223 + $0x90] sm:$0xf]
    %v2261 = vld [vmem:[%s2223 + $0x94] sm:$0xf]
    %v2262 = vld [vmem:[%s2223 + $0x98] sm:$0xf]
    %v2263 = vld [vmem:[%s2223 + $0x9c] sm:$0xf]
    %v2264 = vld [vmem:[%s2223 + $0xa0] sm:$0xf]
    %v2265 = vld [vmem:[%s2223 + $0xa4] sm:$0xf]
    %v2266 = vld [vmem:[%s2223 + $0xa8] sm:$0xf]
    %v2267 = vld [vmem:[%s2223 + $0xac] sm:$0xf]
    %v2268 = vld [vmem:[%s2223 + $0xb0] sm:$0xf]
    %v2269 = vld [vmem:[%s2223 + $0xb4] sm:$0xf]
    %v2270 = vld [vmem:[%s2223 + $0xb8] sm:$0xf]
    %v2271 = vld [vmem:[%s2223 + $0xbc] sm:$0xf]
    %s2272 = scalar_lea.vmem [#allocation9], 6
    %v2273 = vld [vmem:[%s2272] sm:$0x1]
    %v2275 = vperm.slane %v2273, 0
    %v2325 = vunpack.c.l.b16 %v2224
    %v2326 = vunpack.c.l.b16 %v2225
    %v2327 = vunpack.c.l.b16 %v2226
    %v2328 = vunpack.c.l.b16 %v2227
    %v2329 = vunpack.c.l.b16 %v2228
    %v2330 = vunpack.c.l.b16 %v2229
    %v2331 = vunpack.c.l.b16 %v2230
    %v2332 = vunpack.c.l.b16 %v2231
    %v2333 = vunpack.c.l.b16 %v2232
    %v2334 = vunpack.c.l.b16 %v2233
    %v2335 = vunpack.c.l.b16 %v2234
    %v2336 = vunpack.c.l.b16 %v2235
    %v2337 = vunpack.c.l.b16 %v2236
    %v2338 = vunpack.c.l.b16 %v2237
    %v2339 = vunpack.c.l.b16 %v2238
    %v2340 = vunpack.c.l.b16 %v2239
    %v2341 = vunpack.c.l.b16 %v2240
    %v2342 = vunpack.c.l.b16 %v2241
    %v2343 = vunpack.c.l.b16 %v2242
    %v2344 = vunpack.c.l.b16 %v2243
    %v2345 = vunpack.c.l.b16 %v2244
    %v2346 = vunpack.c.l.b16 %v2245
    %v2347 = vunpack.c.l.b16 %v2246
    %v2348 = vunpack.c.l.b16 %v2247
    %v2349 = vunpack.c.l.b16 %v2248
    %v2350 = vunpack.c.l.b16 %v2249
    %v2351 = vunpack.c.l.b16 %v2250
    %v2352 = vunpack.c.l.b16 %v2251
    %v2353 = vunpack.c.l.b16 %v2252
    %v2354 = vunpack.c.l.b16 %v2253
    %v2355 = vunpack.c.l.b16 %v2254
    %v2356 = vunpack.c.l.b16 %v2255
    %v2357 = vunpack.c.l.b16 %v2256
    %v2358 = vunpack.c.l.b16 %v2257
    %v2359 = vunpack.c.l.b16 %v2258
    %v2360 = vunpack.c.l.b16 %v2259
    %v2361 = vunpack.c.l.b16 %v2260
    %v2362 = vunpack.c.l.b16 %v2261
    %v2363 = vunpack.c.l.b16 %v2262
    %v2364 = vunpack.c.l.b16 %v2263
    %v2365 = vunpack.c.l.b16 %v2264
    %v2366 = vunpack.c.l.b16 %v2265
    %v2367 = vunpack.c.l.b16 %v2266
    %v2368 = vunpack.c.l.b16 %v2267
    %v2369 = vunpack.c.l.b16 %v2268
    %v2370 = vunpack.c.l.b16 %v2269
    %v2371 = vunpack.c.l.b16 %v2270
    %v2372 = vunpack.c.l.b16 %v2271
    %v2373 = vpack.c.b16 %v2326, %v2325
    %v2374 = vpack.c.b16 %v2328, %v2327
    %v2375 = vpack.c.b16 %v2330, %v2329
    %v2376 = vpack.c.b16 %v2332, %v2331
    %v2377 = vpack.c.b16 %v2334, %v2333
    %v2378 = vpack.c.b16 %v2336, %v2335
    %v2379 = vpack.c.b16 %v2338, %v2337
    %v2380 = vpack.c.b16 %v2340, %v2339
    %v2381 = vpack.c.b16 %v2342, %v2341
    %v2382 = vpack.c.b16 %v2344, %v2343
    %v2383 = vpack.c.b16 %v2346, %v2345
    %v2384 = vpack.c.b16 %v2348, %v2347
    %v2385 = vpack.c.b16 %v2350, %v2349
    %v2386 = vpack.c.b16 %v2352, %v2351
    %v2387 = vpack.c.b16 %v2354, %v2353
    %v2388 = vpack.c.b16 %v2356, %v2355
    %v2389 = vpack.c.b16 %v2358, %v2357
    %v2390 = vpack.c.b16 %v2360, %v2359
    %v2391 = vpack.c.b16 %v2362, %v2361
    %v2392 = vpack.c.b16 %v2364, %v2363
    %v2393 = vpack.c.b16 %v2366, %v2365
    %v2394 = vpack.c.b16 %v2368, %v2367
    %v2395 = vpack.c.b16 %v2370, %v2369
    %v2396 = vpack.c.b16 %v2372, %v2371
    %2421 = vmatpush.bf16.msra.mxu0 %v2380
    %2422 = vmatpush.bf16.msra.mxu0 %v2379
    %2423 = vmatpush.bf16.msra.mxu0 %v2378
    %2424 = vmatpush.bf16.msra.mxu0 %v2377
    %2425 = vmatpush.bf16.msra.mxu0 %v2376
    %2426 = vmatpush.bf16.msra.mxu0 %v2375
    %2427 = vmatpush.bf16.msra.mxu0 %v2374
    %2428 = vmatpush.bf16.msra.mxu0 %v2373
    %2429 = vmatmul.bf16.gmra.mxu0 %v2217
    %v2430 = vpop.f32.mrf.mxu0
    %v2431 = vadd.f32 %v2275, %v2430
    %v2432 = vpop.f32.mrf.mxu0
    %v2433 = vadd.f32 %v2275, %v2432
    %2434 = vmatmul.bf16.gmra.mxu0 %v2220
    %v2435 = vpop.f32.mrf.mxu0
    %v2436 = vadd.f32 %v2275, %v2435
    %v2437 = vpop.f32.mrf.mxu0
    %v2438 = vadd.f32 %v2275, %v2437
    %2439 = vdwg.mxu0
    %2440 = vmatpush.bf16.msra.mxu0 %v2388
    %2441 = vmatpush.bf16.msra.mxu0 %v2387
    %2442 = vmatpush.bf16.msra.mxu0 %v2386
    %2443 = vmatpush.bf16.msra.mxu0 %v2385
    %2444 = vmatpush.bf16.msra.mxu0 %v2384
    %2445 = vmatpush.bf16.msra.mxu0 %v2383
    %2446 = vmatpush.bf16.msra.mxu0 %v2382
    %2447 = vmatpush.bf16.msra.mxu0 %v2381
    %2448 = vmatmul.bf16.gmra.mxu0 %v2218
    %v2449 = vpop.f32.mrf.mxu0
    %v2450 = vadd.f32 %v2431, %v2449
    %v2451 = vpop.f32.mrf.mxu0
    %v2452 = vadd.f32 %v2433, %v2451
    %2453 = vmatmul.bf16.gmra.mxu0 %v2221
    %v2454 = vpop.f32.mrf.mxu0
    %v2455 = vadd.f32 %v2436, %v2454
    %v2456 = vpop.f32.mrf.mxu0
    %v2457 = vadd.f32 %v2438, %v2456
    %2458 = vdwg.mxu0
    %2459 = vmatpush.bf16.msra.mxu0 %v2396
    %2460 = vmatpush.bf16.msra.mxu0 %v2395
    %2461 = vmatpush.bf16.msra.mxu0 %v2394
    %2462 = vmatpush.bf16.msra.mxu0 %v2393
    %2463 = vmatpush.bf16.msra.mxu0 %v2392
    %2464 = vmatpush.bf16.msra.mxu0 %v2391
    %2465 = vmatpush.bf16.msra.mxu0 %v2390
    %2466 = vmatpush.bf16.msra.mxu0 %v2389
    %2467 = vmatmul.bf16.gmra.mxu0 %v2219
    %v2468 = vpop.f32.mrf.mxu0
    %v2469 = vadd.f32 %v2450, %v2468
    %v2470 = vpop.f32.mrf.mxu0
    %v2471 = vadd.f32 %v2452, %v2470
    %2472 = vmatmul.bf16.gmra.mxu0 %v2222
    %v2473 = vpop.f32.mrf.mxu0
    %v2474 = vadd.f32 %v2455, %v2473
    %v2475 = vpop.f32.mrf.mxu0
    %v2476 = vadd.f32 %v2457, %v2475
    %2477 = vdwg.mxu0
    %v2478 = vmul.f32 %v2469, 0.5
    %v2479 = vmul.f32 %v2471, 0.5
    %v2480 = vmul.f32 %v2474, 0.5
    %v2481 = vmul.f32 %v2476, 0.5
    %v2482 = vmul.f32 %v2469, 0.044715
    %v2483 = vmul.f32 %v2471, 0.044715
    %v2484 = vmul.f32 %v2474, 0.044715
    %v2485 = vmul.f32 %v2476, 0.044715
    %v2486 = vmul.f32 %v2482, %v2469
    %v2487 = vmul.f32 %v2483, %v2471
    %v2488 = vmul.f32 %v2484, %v2474
    %v2489 = vmul.f32 %v2485, %v2476
    %v2490 = vmul.f32 %v2486, %v2469
    %v2491 = vmul.f32 %v2487, %v2471
    %v2492 = vmul.f32 %v2488, %v2474
    %v2493 = vmul.f32 %v2489, %v2476
    %v2494 = vadd.f32 %v2469, %v2490
    %v2495 = vadd.f32 %v2471, %v2491
    %v2496 = vadd.f32 %v2474, %v2492
    %v2497 = vadd.f32 %v2476, %v2493
    %v2498 = vmul.f32 %v2494, 0.7978846
    %v2499 = vmul.f32 %v2495, 0.7978846
    %v2500 = vmul.f32 %v2496, 0.7978846
    %v2501 = vmul.f32 %v2497, 0.7978846
    %v2502 = vtanh.pop %v2498
    %v2503 = vtanh.pop %v2499
    %v2504 = vtanh.pop %v2500
    %v2505 = vtanh.pop %v2501
    %v2506 = vadd.f32 %v2502, 1.0
    %v2507 = vadd.f32 %v2503, 1.0
    %v2508 = vadd.f32 %v2504, 1.0
    %v2509 = vadd.f32 %v2505, 1.0
    %v2510 = vmul.f32 %v2478, %v2506
    %v2511 = vmul.f32 %v2479, %v2507
    %v2512 = vmul.f32 %v2480, %v2508
    %v2513 = vmul.f32 %v2481, %v2509
    %v2514 = vsel %vm2205, %v2513, 0.0
    %v2515 = vsel %vm2206, %v2510, 0.0
    %v2516 = vsel %vm2205, %v2511, 0.0
    %v2517 = vsel %vm2206, %v2512, 0.0
    %v2518 = vsel %vm2211, %v2511, 0.0
    %v2519 = vsel %vm2212, %v2512, 0.0
    %v2520 = vsel %vm2211, %v2513, 0.0
    %v2521 = vsel %vm2212, %v2510, 0.0
    %v2522 = vpack.c.bf16 %v2515, %v2514
    %v2523 = vpack.c.bf16 %v2511, %v2510
    %v2524 = vpack.c.bf16 %v2519, %v2518
    %v2525 = vpack.c.bf16 %v2517, %v2516
    %v2526 = vpack.c.bf16 %v2513, %v2512
    %v2527 = vpack.c.bf16 %v2521, %v2520
    %s2528 = scalar_lea.vmem [#allocation8], 1344
    %v2529 = vld [vmem:[%s2528] sm:$0xf]
    %v2530 = vld [vmem:[%s2528 + $0x4] sm:$0xf]
    %v2531 = vld [vmem:[%s2528 + $0x8] sm:$0xf]
    %v2532 = vld [vmem:[%s2528 + $0xc] sm:$0xf]
    %v2533 = vld [vmem:[%s2528 + $0x10] sm:$0xf]
    %v2534 = vld [vmem:[%s2528 + $0x14] sm:$0xf]
    %v2535 = vld [vmem:[%s2528 + $0x18] sm:$0xf]
    %v2536 = vld [vmem:[%s2528 + $0x1c] sm:$0xf]
    %v2537 = vld [vmem:[%s2528 + $0x20] sm:$0xf]
    %v2538 = vld [vmem:[%s2528 + $0x24] sm:$0xf]
    %v2539 = vld [vmem:[%s2528 + $0x28] sm:$0xf]
    %v2540 = vld [vmem:[%s2528 + $0x2c] sm:$0xf]
    %v2541 = vld [vmem:[%s2528 + $0x30] sm:$0xf]
    %v2542 = vld [vmem:[%s2528 + $0x34] sm:$0xf]
    %v2543 = vld [vmem:[%s2528 + $0x38] sm:$0xf]
    %v2544 = vld [vmem:[%s2528 + $0x3c] sm:$0xf]
    %v2545 = vld [vmem:[%s2528 + $0x40] sm:$0xf]
    %v2546 = vld [vmem:[%s2528 + $0x44] sm:$0xf]
    %v2547 = vld [vmem:[%s2528 + $0x48] sm:$0xf]
    %v2548 = vld [vmem:[%s2528 + $0x4c] sm:$0xf]
    %v2549 = vld [vmem:[%s2528 + $0x50] sm:$0xf]
    %v2550 = vld [vmem:[%s2528 + $0x54] sm:$0xf]
    %v2551 = vld [vmem:[%s2528 + $0x58] sm:$0xf]
    %v2552 = vld [vmem:[%s2528 + $0x5c] sm:$0xf]
    %v2553 = vld [vmem:[%s2528 + $0x60] sm:$0xf]
    %v2554 = vld [vmem:[%s2528 + $0x64] sm:$0xf]
    %v2555 = vld [vmem:[%s2528 + $0x68] sm:$0xf]
    %v2556 = vld [vmem:[%s2528 + $0x6c] sm:$0xf]
    %v2557 = vld [vmem:[%s2528 + $0x70] sm:$0xf]
    %v2558 = vld [vmem:[%s2528 + $0x74] sm:$0xf]
    %v2559 = vld [vmem:[%s2528 + $0x78] sm:$0xf]
    %v2560 = vld [vmem:[%s2528 + $0x7c] sm:$0xf]
    %v2561 = vld [vmem:[%s2528 + $0x80] sm:$0xf]
    %v2562 = vld [vmem:[%s2528 + $0x84] sm:$0xf]
    %v2563 = vld [vmem:[%s2528 + $0x88] sm:$0xf]
    %v2564 = vld [vmem:[%s2528 + $0x8c] sm:$0xf]
    %v2565 = vld [vmem:[%s2528 + $0x90] sm:$0xf]
    %v2566 = vld [vmem:[%s2528 + $0x94] sm:$0xf]
    %v2567 = vld [vmem:[%s2528 + $0x98] sm:$0xf]
    %v2568 = vld [vmem:[%s2528 + $0x9c] sm:$0xf]
    %v2569 = vld [vmem:[%s2528 + $0xa0] sm:$0xf]
    %v2570 = vld [vmem:[%s2528 + $0xa4] sm:$0xf]
    %v2571 = vld [vmem:[%s2528 + $0xa8] sm:$0xf]
    %v2572 = vld [vmem:[%s2528 + $0xac] sm:$0xf]
    %v2573 = vld [vmem:[%s2528 + $0xb0] sm:$0xf]
    %v2574 = vld [vmem:[%s2528 + $0xb4] sm:$0xf]
    %v2575 = vld [vmem:[%s2528 + $0xb8] sm:$0xf]
    %v2576 = vld [vmem:[%s2528 + $0xbc] sm:$0xf]
    %s2577 = scalar_lea.vmem [#allocation9], 7
    %v2578 = vld [vmem:[%s2577] sm:$0x1]
    %v2580 = vperm.slane %v2578, 0
    %v2630 = vunpack.c.l.b16 %v2529
    %v2631 = vunpack.c.l.b16 %v2530
    %v2632 = vunpack.c.l.b16 %v2531
    %v2633 = vunpack.c.l.b16 %v2532
    %v2634 = vunpack.c.l.b16 %v2533
    %v2635 = vunpack.c.l.b16 %v2534
    %v2636 = vunpack.c.l.b16 %v2535
    %v2637 = vunpack.c.l.b16 %v2536
    %v2638 = vunpack.c.l.b16 %v2537
    %v2639 = vunpack.c.l.b16 %v2538
    %v2640 = vunpack.c.l.b16 %v2539
    %v2641 = vunpack.c.l.b16 %v2540
    %v2642 = vunpack.c.l.b16 %v2541
    %v2643 = vunpack.c.l.b16 %v2542
    %v2644 = vunpack.c.l.b16 %v2543
    %v2645 = vunpack.c.l.b16 %v2544
    %v2646 = vunpack.c.l.b16 %v2545
    %v2647 = vunpack.c.l.b16 %v2546
    %v2648 = vunpack.c.l.b16 %v2547
    %v2649 = vunpack.c.l.b16 %v2548
    %v2650 = vunpack.c.l.b16 %v2549
    %v2651 = vunpack.c.l.b16 %v2550
    %v2652 = vunpack.c.l.b16 %v2551
    %v2653 = vunpack.c.l.b16 %v2552
    %v2654 = vunpack.c.l.b16 %v2553
    %v2655 = vunpack.c.l.b16 %v2554
    %v2656 = vunpack.c.l.b16 %v2555
    %v2657 = vunpack.c.l.b16 %v2556
    %v2658 = vunpack.c.l.b16 %v2557
    %v2659 = vunpack.c.l.b16 %v2558
    %v2660 = vunpack.c.l.b16 %v2559
    %v2661 = vunpack.c.l.b16 %v2560
    %v2662 = vunpack.c.l.b16 %v2561
    %v2663 = vunpack.c.l.b16 %v2562
    %v2664 = vunpack.c.l.b16 %v2563
    %v2665 = vunpack.c.l.b16 %v2564
    %v2666 = vunpack.c.l.b16 %v2565
    %v2667 = vunpack.c.l.b16 %v2566
    %v2668 = vunpack.c.l.b16 %v2567
    %v2669 = vunpack.c.l.b16 %v2568
    %v2670 = vunpack.c.l.b16 %v2569
    %v2671 = vunpack.c.l.b16 %v2570
    %v2672 = vunpack.c.l.b16 %v2571
    %v2673 = vunpack.c.l.b16 %v2572
    %v2674 = vunpack.c.l.b16 %v2573
    %v2675 = vunpack.c.l.b16 %v2574
    %v2676 = vunpack.c.l.b16 %v2575
    %v2677 = vunpack.c.l.b16 %v2576
    %v2678 = vpack.c.b16 %v2631, %v2630
    %v2679 = vpack.c.b16 %v2633, %v2632
    %v2680 = vpack.c.b16 %v2635, %v2634
    %v2681 = vpack.c.b16 %v2637, %v2636
    %v2682 = vpack.c.b16 %v2639, %v2638
    %v2683 = vpack.c.b16 %v2641, %v2640
    %v2684 = vpack.c.b16 %v2643, %v2642
    %v2685 = vpack.c.b16 %v2645, %v2644
    %v2686 = vpack.c.b16 %v2647, %v2646
    %v2687 = vpack.c.b16 %v2649, %v2648
    %v2688 = vpack.c.b16 %v2651, %v2650
    %v2689 = vpack.c.b16 %v2653, %v2652
    %v2690 = vpack.c.b16 %v2655, %v2654
    %v2691 = vpack.c.b16 %v2657, %v2656
    %v2692 = vpack.c.b16 %v2659, %v2658
    %v2693 = vpack.c.b16 %v2661, %v2660
    %v2694 = vpack.c.b16 %v2663, %v2662
    %v2695 = vpack.c.b16 %v2665, %v2664
    %v2696 = vpack.c.b16 %v2667, %v2666
    %v2697 = vpack.c.b16 %v2669, %v2668
    %v2698 = vpack.c.b16 %v2671, %v2670
    %v2699 = vpack.c.b16 %v2673, %v2672
    %v2700 = vpack.c.b16 %v2675, %v2674
    %v2701 = vpack.c.b16 %v2677, %v2676
    %2726 = vmatpush.bf16.msra.mxu0 %v2685
    %2727 = vmatpush.bf16.msra.mxu0 %v2684
    %2728 = vmatpush.bf16.msra.mxu0 %v2683
    %2729 = vmatpush.bf16.msra.mxu0 %v2682
    %2730 = vmatpush.bf16.msra.mxu0 %v2681
    %2731 = vmatpush.bf16.msra.mxu0 %v2680
    %2732 = vmatpush.bf16.msra.mxu0 %v2679
    %2733 = vmatpush.bf16.msra.mxu0 %v2678
    %2734 = vmatmul.bf16.gmra.mxu0 %v2522
    %v2735 = vpop.f32.mrf.mxu0
    %v2736 = vadd.f32 %v2580, %v2735
    %v2737 = vpop.f32.mrf.mxu0
    %v2738 = vadd.f32 %v2580, %v2737
    %2739 = vmatmul.bf16.gmra.mxu0 %v2525
    %v2740 = vpop.f32.mrf.mxu0
    %v2741 = vadd.f32 %v2580, %v2740
    %v2742 = vpop.f32.mrf.mxu0
    %v2743 = vadd.f32 %v2580, %v2742
    %2744 = vdwg.mxu0
    %2745 = vmatpush.bf16.msra.mxu0 %v2693
    %2746 = vmatpush.bf16.msra.mxu0 %v2692
    %2747 = vmatpush.bf16.msra.mxu0 %v2691
    %2748 = vmatpush.bf16.msra.mxu0 %v2690
    %2749 = vmatpush.bf16.msra.mxu0 %v2689
    %2750 = vmatpush.bf16.msra.mxu0 %v2688
    %2751 = vmatpush.bf16.msra.mxu0 %v2687
    %2752 = vmatpush.bf16.msra.mxu0 %v2686
    %2753 = vmatmul.bf16.gmra.mxu0 %v2523
    %v2754 = vpop.f32.mrf.mxu0
    %v2755 = vadd.f32 %v2736, %v2754
    %v2756 = vpop.f32.mrf.mxu0
    %v2757 = vadd.f32 %v2738, %v2756
    %2758 = vmatmul.bf16.gmra.mxu0 %v2526
    %v2759 = vpop.f32.mrf.mxu0
    %v2760 = vadd.f32 %v2741, %v2759
    %v2761 = vpop.f32.mrf.mxu0
    %v2762 = vadd.f32 %v2743, %v2761
    %2763 = vdwg.mxu0
    %2764 = vmatpush.bf16.msra.mxu0 %v2701
    %2765 = vmatpush.bf16.msra.mxu0 %v2700
    %2766 = vmatpush.bf16.msra.mxu0 %v2699
    %2767 = vmatpush.bf16.msra.mxu0 %v2698
    %2768 = vmatpush.bf16.msra.mxu0 %v2697
    %2769 = vmatpush.bf16.msra.mxu0 %v2696
    %2770 = vmatpush.bf16.msra.mxu0 %v2695
    %2771 = vmatpush.bf16.msra.mxu0 %v2694
    %2772 = vmatmul.bf16.gmra.mxu0 %v2524
    %v2773 = vpop.f32.mrf.mxu0
    %v2774 = vadd.f32 %v2755, %v2773
    %v2775 = vpop.f32.mrf.mxu0
    %v2776 = vadd.f32 %v2757, %v2775
    %2777 = vmatmul.bf16.gmra.mxu0 %v2527
    %v2778 = vpop.f32.mrf.mxu0
    %v2779 = vadd.f32 %v2760, %v2778
    %v2780 = vpop.f32.mrf.mxu0
    %v2781 = vadd.f32 %v2762, %v2780
    %2782 = vdwg.mxu0
    %v2783 = vadd.f32 %v2774, %v2165
    %v2784 = vadd.f32 %v2776, %v2166
    %v2785 = vadd.f32 %v2779, %v2167
    %v2786 = vadd.f32 %v2781, %v2168
    %2787 = vst [vmem:[#allocation2] sm:$0xff] %v2783
    %2788 = vst [vmem:[#allocation2 + $0x8] sm:$0xff] %v2784
    %2789 = vst [vmem:[#allocation2 + $0x10] sm:$0xff] %v2785
    %2790 = vst [vmem:[#allocation2 + $0x18] sm:$0xff] %v2786
    %v2791 = vld [vmem:[#allocation2] sm:$0xff]
    %v2792 = vld [vmem:[#allocation2 + $0x8] sm:$0xff]
    %v2793 = vld [vmem:[#allocation2 + $0x10] sm:$0xff]
    %v2794 = vld [vmem:[#allocation2 + $0x18] sm:$0xff]
    %v2795 = vmul.f32 %v2791, 0.5
    %v2796 = vmul.f32 %v2792, 0.5
    %v2797 = vmul.f32 %v2793, 0.5
    %v2798 = vmul.f32 %v2794, 0.5
    %v2799 = vmul.f32 %v2791, 0.044715
    %v2800 = vmul.f32 %v2792, 0.044715
    %v2801 = vmul.f32 %v2793, 0.044715
    %v2802 = vmul.f32 %v2794, 0.044715
    %v2803 = vmul.f32 %v2799, %v2791
    %v2804 = vmul.f32 %v2800, %v2792
    %v2805 = vmul.f32 %v2801, %v2793
    %v2806 = vmul.f32 %v2802, %v2794
    %v2807 = vmul.f32 %v2803, %v2791
    %v2808 = vmul.f32 %v2804, %v2792
    %v2809 = vmul.f32 %v2805, %v2793
    %v2810 = vmul.f32 %v2806, %v2794
    %v2811 = vadd.f32 %v2791, %v2807
    %v2812 = vadd.f32 %v2792, %v2808
    %v2813 = vadd.f32 %v2793, %v2809
    %v2814 = vadd.f32 %v2794, %v2810
    %v2815 = vmul.f32 %v2811, 0.7978846
    %v2816 = vmul.f32 %v2812, 0.7978846
    %v2817 = vmul.f32 %v2813, 0.7978846
    %v2818 = vmul.f32 %v2814, 0.7978846
    %v2819 = vtanh.pop %v2815
    %v2820 = vtanh.pop %v2816
    %v2821 = vtanh.pop %v2817
    %v2822 = vtanh.pop %v2818
    %v2823 = vadd.f32 %v2819, 1.0
    %v2824 = vadd.f32 %v2820, 1.0
    %v2825 = vadd.f32 %v2821, 1.0
    %v2826 = vadd.f32 %v2822, 1.0
    %v2827 = vmul.f32 %v2795, %v2823
    %v2828 = vmul.f32 %v2796, %v2824
    %v2829 = vmul.f32 %v2797, %v2825
    %v2830 = vmul.f32 %v2798, %v2826
    %v2831 = vpack.c.bf16 %v2828, %v2827
    %v2832 = vpack.c.bf16 %v2830, %v2829
    %s2833 = scalar_lea.vmem [#allocation8], 1536
    %v2834 = vld [vmem:[%s2833 + $0x40] sm:$0xf]
    %v2835 = vld [vmem:[%s2833 + $0x44] sm:$0xf]
    %v2836 = vld [vmem:[%s2833 + $0x48] sm:$0xf]
    %v2837 = vld [vmem:[%s2833 + $0x4c] sm:$0xf]
    %v2838 = vld [vmem:[%s2833 + $0x50] sm:$0xf]
    %v2839 = vld [vmem:[%s2833 + $0x54] sm:$0xf]
    %v2840 = vld [vmem:[%s2833 + $0x58] sm:$0xf]
    %v2841 = vld [vmem:[%s2833 + $0x5c] sm:$0xf]
    %v2842 = vld [vmem:[%s2833 + $0x60] sm:$0xf]
    %v2843 = vld [vmem:[%s2833 + $0x64] sm:$0xf]
    %v2844 = vld [vmem:[%s2833 + $0x68] sm:$0xf]
    %v2845 = vld [vmem:[%s2833 + $0x6c] sm:$0xf]
    %v2846 = vld [vmem:[%s2833 + $0x70] sm:$0xf]
    %v2847 = vld [vmem:[%s2833 + $0x74] sm:$0xf]
    %v2848 = vld [vmem:[%s2833 + $0x78] sm:$0xf]
    %v2849 = vld [vmem:[%s2833 + $0x7c] sm:$0xf]
    %s2850 = scalar_lea.vmem [#allocation9], 8
    %v2851 = vld [vmem:[%s2850] sm:$0x1]
    %v2853 = vperm.slane %v2851, 0
    %v2871 = vunpack.c.l.b16 %v2834
    %v2872 = vunpack.c.l.b16 %v2835
    %v2873 = vunpack.c.l.b16 %v2836
    %v2874 = vunpack.c.l.b16 %v2837
    %v2875 = vunpack.c.l.b16 %v2838
    %v2876 = vunpack.c.l.b16 %v2839
    %v2877 = vunpack.c.l.b16 %v2840
    %v2878 = vunpack.c.l.b16 %v2841
    %v2879 = vunpack.c.l.b16 %v2842
    %v2880 = vunpack.c.l.b16 %v2843
    %v2881 = vunpack.c.l.b16 %v2844
    %v2882 = vunpack.c.l.b16 %v2845
    %v2883 = vunpack.c.l.b16 %v2846
    %v2884 = vunpack.c.l.b16 %v2847
    %v2885 = vunpack.c.l.b16 %v2848
    %v2886 = vunpack.c.l.b16 %v2849
    %v2887 = vpack.c.b16 %v2872, %v2871
    %v2888 = vpack.c.b16 %v2874, %v2873
    %v2889 = vpack.c.b16 %v2876, %v2875
    %v2890 = vpack.c.b16 %v2878, %v2877
    %v2891 = vpack.c.b16 %v2880, %v2879
    %v2892 = vpack.c.b16 %v2882, %v2881
    %v2893 = vpack.c.b16 %v2884, %v2883
    %v2894 = vpack.c.b16 %v2886, %v2885
    %2903 = vmatpush.bf16.msra.mxu0 %v2894
    %2904 = vmatpush.bf16.msra.mxu0 %v2893
    %2905 = vmatpush.bf16.msra.mxu0 %v2892
    %2906 = vmatpush.bf16.msra.mxu0 %v2891
    %2907 = vmatpush.bf16.msra.mxu0 %v2890
    %2908 = vmatpush.bf16.msra.mxu0 %v2889
    %2909 = vmatpush.bf16.msra.mxu0 %v2888
    %2910 = vmatpush.bf16.msra.mxu0 %v2887
    %2911 = vmatmul.bf16.gmra.mxu0 %v2831
    %v2912 = vpop.f32.mrf.mxu0
    %v2913 = vadd.f32 %v2853, %v2912
    %v2914 = vpop.f32.mrf.mxu0
    %v2915 = vadd.f32 %v2853, %v2914
    %2916 = vmatmul.bf16.gmra.mxu0 %v2832
    %v2917 = vpop.f32.mrf.mxu0
    %v2918 = vadd.f32 %v2853, %v2917
    %v2919 = vpop.f32.mrf.mxu0
    %v2920 = vadd.f32 %v2853, %v2919
    %2921 = vdwg.mxu0
    %v2922 = vmul.f32 %v2913, 0.5
    %v2923 = vmul.f32 %v2915, 0.5
    %v2924 = vmul.f32 %v2918, 0.5
    %v2925 = vmul.f32 %v2920, 0.5
    %v2926 = vmul.f32 %v2913, 0.044715
    %v2927 = vmul.f32 %v2915, 0.044715
    %v2928 = vmul.f32 %v2918, 0.044715
    %v2929 = vmul.f32 %v2920, 0.044715
    %v2930 = vmul.f32 %v2926, %v2913
    %v2931 = vmul.f32 %v2927, %v2915
    %v2932 = vmul.f32 %v2928, %v2918
    %v2933 = vmul.f32 %v2929, %v2920
    %v2934 = vmul.f32 %v2930, %v2913
    %v2935 = vmul.f32 %v2931, %v2915
    %v2936 = vmul.f32 %v2932, %v2918
    %v2937 = vmul.f32 %v2933, %v2920
    %v2938 = vadd.f32 %v2913, %v2934
    %v2939 = vadd.f32 %v2915, %v2935
    %v2940 = vadd.f32 %v2918, %v2936
    %v2941 = vadd.f32 %v2920, %v2937
    %v2942 = vmul.f32 %v2938, 0.7978846
    %v2943 = vmul.f32 %v2939, 0.7978846
    %v2944 = vmul.f32 %v2940, 0.7978846
    %v2945 = vmul.f32 %v2941, 0.7978846
    %v2946 = vtanh.pop %v2942
    %v2947 = vtanh.pop %v2943
    %v2948 = vtanh.pop %v2944
    %v2949 = vtanh.pop %v2945
    %v2950 = vadd.f32 %v2946, 1.0
    %v2951 = vadd.f32 %v2947, 1.0
    %v2952 = vadd.f32 %v2948, 1.0
    %v2953 = vadd.f32 %v2949, 1.0
    %v2954 = vmul.f32 %v2922, %v2950
    %v2955 = vmul.f32 %v2923, %v2951
    %v2956 = vmul.f32 %v2924, %v2952
    %v2957 = vmul.f32 %v2925, %v2953
    %v2958 = vpack.c.bf16 %v2955, %v2954
    %v2959 = vpack.c.bf16 %v2957, %v2956
    %s2960 = scalar_lea.vmem [#allocation8], 1728
    %v2961 = vld [vmem:[%s2960 + $0x40] sm:$0xf]
    %v2962 = vld [vmem:[%s2960 + $0x44] sm:$0xf]
    %v2963 = vld [vmem:[%s2960 + $0x48] sm:$0xf]
    %v2964 = vld [vmem:[%s2960 + $0x4c] sm:$0xf]
    %v2965 = vld [vmem:[%s2960 + $0x50] sm:$0xf]
    %v2966 = vld [vmem:[%s2960 + $0x54] sm:$0xf]
    %v2967 = vld [vmem:[%s2960 + $0x58] sm:$0xf]
    %v2968 = vld [vmem:[%s2960 + $0x5c] sm:$0xf]
    %v2969 = vld [vmem:[%s2960 + $0x60] sm:$0xf]
    %v2970 = vld [vmem:[%s2960 + $0x64] sm:$0xf]
    %v2971 = vld [vmem:[%s2960 + $0x68] sm:$0xf]
    %v2972 = vld [vmem:[%s2960 + $0x6c] sm:$0xf]
    %v2973 = vld [vmem:[%s2960 + $0x70] sm:$0xf]
    %v2974 = vld [vmem:[%s2960 + $0x74] sm:$0xf]
    %v2975 = vld [vmem:[%s2960 + $0x78] sm:$0xf]
    %v2976 = vld [vmem:[%s2960 + $0x7c] sm:$0xf]
    %s2977 = scalar_lea.vmem [#allocation9], 9
    %v2978 = vld [vmem:[%s2977] sm:$0x1]
    %v2980 = vperm.slane %v2978, 0
    %v2998 = vunpack.c.l.b16 %v2961
    %v2999 = vunpack.c.l.b16 %v2962
    %v3000 = vunpack.c.l.b16 %v2963
    %v3001 = vunpack.c.l.b16 %v2964
    %v3002 = vunpack.c.l.b16 %v2965
    %v3003 = vunpack.c.l.b16 %v2966
    %v3004 = vunpack.c.l.b16 %v2967
    %v3005 = vunpack.c.l.b16 %v2968
    %v3006 = vunpack.c.l.b16 %v2969
    %v3007 = vunpack.c.l.b16 %v2970
    %v3008 = vunpack.c.l.b16 %v2971
    %v3009 = vunpack.c.l.b16 %v2972
    %v3010 = vunpack.c.l.b16 %v2973
    %v3011 = vunpack.c.l.b16 %v2974
    %v3012 = vunpack.c.l.b16 %v2975
    %v3013 = vunpack.c.l.b16 %v2976
    %v3014 = vpack.c.b16 %v2999, %v2998
    %v3015 = vpack.c.b16 %v3001, %v3000
    %v3016 = vpack.c.b16 %v3003, %v3002
    %v3017 = vpack.c.b16 %v3005, %v3004
    %v3018 = vpack.c.b16 %v3007, %v3006
    %v3019 = vpack.c.b16 %v3009, %v3008
    %v3020 = vpack.c.b16 %v3011, %v3010
    %v3021 = vpack.c.b16 %v3013, %v3012
    %3030 = vmatpush.bf16.msra.mxu0 %v3021
    %3031 = vmatpush.bf16.msra.mxu0 %v3020
    %3032 = vmatpush.bf16.msra.mxu0 %v3019
    %3033 = vmatpush.bf16.msra.mxu0 %v3018
    %3034 = vmatpush.bf16.msra.mxu0 %v3017
    %3035 = vmatpush.bf16.msra.mxu0 %v3016
    %3036 = vmatpush.bf16.msra.mxu0 %v3015
    %3037 = vmatpush.bf16.msra.mxu0 %v3014
    %3038 = vmatmul.bf16.gmra.mxu0 %v2958
    %v3039 = vpop.f32.mrf.mxu0
    %v3040 = vadd.f32 %v2980, %v3039
    %v3041 = vpop.f32.mrf.mxu0
    %v3042 = vadd.f32 %v2980, %v3041
    %3043 = vmatmul.bf16.gmra.mxu0 %v2959
    %v3044 = vpop.f32.mrf.mxu0
    %v3045 = vadd.f32 %v2980, %v3044
    %v3046 = vpop.f32.mrf.mxu0
    %v3047 = vadd.f32 %v2980, %v3046
    %3048 = vdwg.mxu0
    %v3049 = vadd.f32 %v3040, %v2791
    %v3050 = vadd.f32 %v3042, %v2792
    %v3051 = vadd.f32 %v3045, %v2793
    %v3052 = vadd.f32 %v3047, %v2794
    %3053 = vst [vmem:[#allocation2] sm:$0xff] %v3049
    %3054 = vst [vmem:[#allocation2 + $0x8] sm:$0xff] %v3050
    %3055 = vst [vmem:[#allocation2 + $0x10] sm:$0xff] %v3051
    %3056 = vst [vmem:[#allocation2 + $0x18] sm:$0xff] %v3052
    %v3057 = vld [vmem:[#allocation2] sm:$0xff]
    %v3058 = vld [vmem:[#allocation2 + $0x8] sm:$0xff]
    %v3059 = vld [vmem:[#allocation2 + $0x10] sm:$0xff]
    %v3060 = vld [vmem:[#allocation2 + $0x18] sm:$0xff]
    %v3061 = vmul.f32 %v3057, 0.5
    %v3062 = vmul.f32 %v3058, 0.5
    %v3063 = vmul.f32 %v3059, 0.5
    %v3064 = vmul.f32 %v3060, 0.5
    %v3065 = vmul.f32 %v3057, 0.044715
    %v3066 = vmul.f32 %v3058, 0.044715
    %v3067 = vmul.f32 %v3059, 0.044715
    %v3068 = vmul.f32 %v3060, 0.044715
    %v3069 = vmul.f32 %v3065, %v3057
    %v3070 = vmul.f32 %v3066, %v3058
    %v3071 = vmul.f32 %v3067, %v3059
    %v3072 = vmul.f32 %v3068, %v3060
    %v3073 = vmul.f32 %v3069, %v3057
    %v3074 = vmul.f32 %v3070, %v3058
    %v3075 = vmul.f32 %v3071, %v3059
    %v3076 = vmul.f32 %v3072, %v3060
    %v3077 = vadd.f32 %v3057, %v3073
    %v3078 = vadd.f32 %v3058, %v3074
    %v3079 = vadd.f32 %v3059, %v3075
    %v3080 = vadd.f32 %v3060, %v3076
    %v3081 = vmul.f32 %v3077, 0.7978846
    %v3082 = vmul.f32 %v3078, 0.7978846
    %v3083 = vmul.f32 %v3079, 0.7978846
    %v3084 = vmul.f32 %v3080, 0.7978846
    %v3085 = vtanh.pop %v3081
    %v3086 = vtanh.pop %v3082
    %v3087 = vtanh.pop %v3083
    %v3088 = vtanh.pop %v3084
    %v3089 = vadd.f32 %v3085, 1.0
    %v3090 = vadd.f32 %v3086, 1.0
    %v3091 = vadd.f32 %v3087, 1.0
    %v3092 = vadd.f32 %v3088, 1.0
    %v3093 = vmul.f32 %v3061, %v3089
    %v3094 = vmul.f32 %v3062, %v3090
    %v3095 = vmul.f32 %v3063, %v3091
    %v3096 = vmul.f32 %v3064, %v3092
    %v3097 = vpack.c.bf16 %v3094, %v3093
    %v3098 = vpack.c.bf16 %v3096, %v3095
    %s3099 = scalar_lea.vmem [#allocation8], 1920
    %v3100 = vld [vmem:[%s3099 + $0x40] sm:$0xf]
    %v3101 = vld [vmem:[%s3099 + $0x44] sm:$0xf]
    %v3102 = vld [vmem:[%s3099 + $0x48] sm:$0xf]
    %v3103 = vld [vmem:[%s3099 + $0x4c] sm:$0xf]
    %v3104 = vld [vmem:[%s3099 + $0x50] sm:$0xf]
    %v3105 = vld [vmem:[%s3099 + $0x54] sm:$0xf]
    %v3106 = vld [vmem:[%s3099 + $0x58] sm:$0xf]
    %v3107 = vld [vmem:[%s3099 + $0x5c] sm:$0xf]
    %v3108 = vld [vmem:[%s3099 + $0x60] sm:$0xf]
    %v3109 = vld [vmem:[%s3099 + $0x64] sm:$0xf]
    %v3110 = vld [vmem:[%s3099 + $0x68] sm:$0xf]
    %v3111 = vld [vmem:[%s3099 + $0x6c] sm:$0xf]
    %v3112 = vld [vmem:[%s3099 + $0x70] sm:$0xf]
    %v3113 = vld [vmem:[%s3099 + $0x74] sm:$0xf]
    %v3114 = vld [vmem:[%s3099 + $0x78] sm:$0xf]
    %v3115 = vld [vmem:[%s3099 + $0x7c] sm:$0xf]
    %s3116 = scalar_lea.vmem [#allocation9], 10
    %v3117 = vld [vmem:[%s3116] sm:$0x1]
    %v3119 = vperm.slane %v3117, 0
    %v3137 = vunpack.c.l.b16 %v3100
    %v3138 = vunpack.c.l.b16 %v3101
    %v3139 = vunpack.c.l.b16 %v3102
    %v3140 = vunpack.c.l.b16 %v3103
    %v3141 = vunpack.c.l.b16 %v3104
    %v3142 = vunpack.c.l.b16 %v3105
    %v3143 = vunpack.c.l.b16 %v3106
    %v3144 = vunpack.c.l.b16 %v3107
    %v3145 = vunpack.c.l.b16 %v3108
    %v3146 = vunpack.c.l.b16 %v3109
    %v3147 = vunpack.c.l.b16 %v3110
    %v3148 = vunpack.c.l.b16 %v3111
    %v3149 = vunpack.c.l.b16 %v3112
    %v3150 = vunpack.c.l.b16 %v3113
    %v3151 = vunpack.c.l.b16 %v3114
    %v3152 = vunpack.c.l.b16 %v3115
    %v3153 = vpack.c.b16 %v3138, %v3137
    %v3154 = vpack.c.b16 %v3140, %v3139
    %v3155 = vpack.c.b16 %v3142, %v3141
    %v3156 = vpack.c.b16 %v3144, %v3143
    %v3157 = vpack.c.b16 %v3146, %v3145
    %v3158 = vpack.c.b16 %v3148, %v3147
    %v3159 = vpack.c.b16 %v3150, %v3149
    %v3160 = vpack.c.b16 %v3152, %v3151
    %3169 = vmatpush.bf16.msra.mxu0 %v3160
    %3170 = vmatpush.bf16.msra.mxu0 %v3159
    %3171 = vmatpush.bf16.msra.mxu0 %v3158
    %3172 = vmatpush.bf16.msra.mxu0 %v3157
    %3173 = vmatpush.bf16.msra.mxu0 %v3156
    %3174 = vmatpush.bf16.msra.mxu0 %v3155
    %3175 = vmatpush.bf16.msra.mxu0 %v3154
    %3176 = vmatpush.bf16.msra.mxu0 %v3153
    %3177 = vmatmul.bf16.gmra.mxu0 %v3097
    %v3178 = vpop.f32.mrf.mxu0
    %v3179 = vadd.f32 %v3119, %v3178
    %v3180 = vpop.f32.mrf.mxu0
    %v3181 = vadd.f32 %v3119, %v3180
    %3182 = vmatmul.bf16.gmra.mxu0 %v3098
    %v3183 = vpop.f32.mrf.mxu0
    %v3184 = vadd.f32 %v3119, %v3183
    %v3185 = vpop.f32.mrf.mxu0
    %v3186 = vadd.f32 %v3119, %v3185
    %3187 = vdwg.mxu0
    %v3188 = vmul.f32 %v3179, 0.5
    %v3189 = vmul.f32 %v3181, 0.5
    %v3190 = vmul.f32 %v3184, 0.5
    %v3191 = vmul.f32 %v3186, 0.5
    %v3192 = vmul.f32 %v3179, 0.044715
    %v3193 = vmul.f32 %v3181, 0.044715
    %v3194 = vmul.f32 %v3184, 0.044715
    %v3195 = vmul.f32 %v3186, 0.044715
    %v3196 = vmul.f32 %v3192, %v3179
    %v3197 = vmul.f32 %v3193, %v3181
    %v3198 = vmul.f32 %v3194, %v3184
    %v3199 = vmul.f32 %v3195, %v3186
    %v3200 = vmul.f32 %v3196, %v3179
    %v3201 = vmul.f32 %v3197, %v3181
    %v3202 = vmul.f32 %v3198, %v3184
    %v3203 = vmul.f32 %v3199, %v3186
    %v3204 = vadd.f32 %v3179, %v3200
    %v3205 = vadd.f32 %v3181, %v3201
    %v3206 = vadd.f32 %v3184, %v3202
    %v3207 = vadd.f32 %v3186, %v3203
    %v3208 = vmul.f32 %v3204, 0.7978846
    %v3209 = vmul.f32 %v3205, 0.7978846
    %v3210 = vmul.f32 %v3206, 0.7978846
    %v3211 = vmul.f32 %v3207, 0.7978846
    %v3212 = vtanh.pop %v3208
    %v3213 = vtanh.pop %v3209
    %v3214 = vtanh.pop %v3210
    %v3215 = vtanh.pop %v3211
    %v3216 = vadd.f32 %v3212, 1.0
    %v3217 = vadd.f32 %v3213, 1.0
    %v3218 = vadd.f32 %v3214, 1.0
    %v3219 = vadd.f32 %v3215, 1.0
    %v3220 = vmul.f32 %v3188, %v3216
    %v3221 = vmul.f32 %v3189, %v3217
    %v3222 = vmul.f32 %v3190, %v3218
    %v3223 = vmul.f32 %v3191, %v3219
    %v3224 = vpack.c.bf16 %v3221, %v3220
    %v3225 = vpack.c.bf16 %v3223, %v3222
    %s3226 = scalar_lea.vmem [#allocation8], 2112
    %v3227 = vld [vmem:[%s3226 + $0x40] sm:$0xf]
    %v3228 = vld [vmem:[%s3226 + $0x44] sm:$0xf]
    %v3229 = vld [vmem:[%s3226 + $0x48] sm:$0xf]
    %v3230 = vld [vmem:[%s3226 + $0x4c] sm:$0xf]
    %v3231 = vld [vmem:[%s3226 + $0x50] sm:$0xf]
    %v3232 = vld [vmem:[%s3226 + $0x54] sm:$0xf]
    %v3233 = vld [vmem:[%s3226 + $0x58] sm:$0xf]
    %v3234 = vld [vmem:[%s3226 + $0x5c] sm:$0xf]
    %v3235 = vld [vmem:[%s3226 + $0x60] sm:$0xf]
    %v3236 = vld [vmem:[%s3226 + $0x64] sm:$0xf]
    %v3237 = vld [vmem:[%s3226 + $0x68] sm:$0xf]
    %v3238 = vld [vmem:[%s3226 + $0x6c] sm:$0xf]
    %v3239 = vld [vmem:[%s3226 + $0x70] sm:$0xf]
    %v3240 = vld [vmem:[%s3226 + $0x74] sm:$0xf]
    %v3241 = vld [vmem:[%s3226 + $0x78] sm:$0xf]
    %v3242 = vld [vmem:[%s3226 + $0x7c] sm:$0xf]
    %s3243 = scalar_lea.vmem [#allocation9], 11
    %v3244 = vld [vmem:[%s3243] sm:$0x1]
    %v3246 = vperm.slane %v3244, 0
    %v3264 = vunpack.c.l.b16 %v3227
    %v3265 = vunpack.c.l.b16 %v3228
    %v3266 = vunpack.c.l.b16 %v3229
    %v3267 = vunpack.c.l.b16 %v3230
    %v3268 = vunpack.c.l.b16 %v3231
    %v3269 = vunpack.c.l.b16 %v3232
    %v3270 = vunpack.c.l.b16 %v3233
    %v3271 = vunpack.c.l.b16 %v3234
    %v3272 = vunpack.c.l.b16 %v3235
    %v3273 = vunpack.c.l.b16 %v3236
    %v3274 = vunpack.c.l.b16 %v3237
    %v3275 = vunpack.c.l.b16 %v3238
    %v3276 = vunpack.c.l.b16 %v3239
    %v3277 = vunpack.c.l.b16 %v3240
    %v3278 = vunpack.c.l.b16 %v3241
    %v3279 = vunpack.c.l.b16 %v3242
    %v3280 = vpack.c.b16 %v3265, %v3264
    %v3281 = vpack.c.b16 %v3267, %v3266
    %v3282 = vpack.c.b16 %v3269, %v3268
    %v3283 = vpack.c.b16 %v3271, %v3270
    %v3284 = vpack.c.b16 %v3273, %v3272
    %v3285 = vpack.c.b16 %v3275, %v3274
    %v3286 = vpack.c.b16 %v3277, %v3276
    %v3287 = vpack.c.b16 %v3279, %v3278
    %3296 = vmatpush.bf16.msra.mxu0 %v3287
    %3297 = vmatpush.bf16.msra.mxu0 %v3286
    %3298 = vmatpush.bf16.msra.mxu0 %v3285
    %3299 = vmatpush.bf16.msra.mxu0 %v3284
    %3300 = vmatpush.bf16.msra.mxu0 %v3283
    %3301 = vmatpush.bf16.msra.mxu0 %v3282
    %3302 = vmatpush.bf16.msra.mxu0 %v3281
    %3303 = vmatpush.bf16.msra.mxu0 %v3280
    %3304 = vmatmul.bf16.gmra.mxu0 %v3224
    %v3305 = vpop.f32.mrf.mxu0
    %v3306 = vadd.f32 %v3246, %v3305
    %v3307 = vpop.f32.mrf.mxu0
    %v3308 = vadd.f32 %v3246, %v3307
    %3309 = vmatmul.bf16.gmra.mxu0 %v3225
    %v3310 = vpop.f32.mrf.mxu0
    %v3311 = vadd.f32 %v3246, %v3310
    %v3312 = vpop.f32.mrf.mxu0
    %v3313 = vadd.f32 %v3246, %v3312
    %3314 = vdwg.mxu0
    %v3315 = vadd.f32 %v3306, %v3057
    %v3316 = vadd.f32 %v3308, %v3058
    %v3317 = vadd.f32 %v3311, %v3059
    %v3318 = vadd.f32 %v3313, %v3060
    %3319 = vst [vmem:[#allocation2] sm:$0xff] %v3315
    %3320 = vst [vmem:[#allocation2 + $0x8] sm:$0xff] %v3316
    %3321 = vst [vmem:[#allocation2 + $0x10] sm:$0xff] %v3317
    %3322 = vst [vmem:[#allocation2 + $0x18] sm:$0xff] %v3318
    %v3323 = vld [vmem:[#allocation2] sm:$0xff]
    %v3324 = vld [vmem:[#allocation2 + $0x8] sm:$0xff]
    %v3325 = vld [vmem:[#allocation2 + $0x10] sm:$0xff]
    %v3326 = vld [vmem:[#allocation2 + $0x18] sm:$0xff]
    %v3327 = vmul.f32 %v3323, 0.5
    %v3328 = vmul.f32 %v3324, 0.5
    %v3329 = vmul.f32 %v3325, 0.5
    %v3330 = vmul.f32 %v3326, 0.5
    %v3331 = vmul.f32 %v3323, 0.044715
    %v3332 = vmul.f32 %v3324, 0.044715
    %v3333 = vmul.f32 %v3325, 0.044715
    %v3334 = vmul.f32 %v3326, 0.044715
    %v3335 = vmul.f32 %v3331, %v3323
    %v3336 = vmul.f32 %v3332, %v3324
    %v3337 = vmul.f32 %v3333, %v3325
    %v3338 = vmul.f32 %v3334, %v3326
    %v3339 = vmul.f32 %v3335, %v3323
    %v3340 = vmul.f32 %v3336, %v3324
    %v3341 = vmul.f32 %v3337, %v3325
    %v3342 = vmul.f32 %v3338, %v3326
    %v3343 = vadd.f32 %v3323, %v3339
    %v3344 = vadd.f32 %v3324, %v3340
    %v3345 = vadd.f32 %v3325, %v3341
    %v3346 = vadd.f32 %v3326, %v3342
    %v3347 = vmul.f32 %v3343, 0.7978846
    %v3348 = vmul.f32 %v3344, 0.7978846
    %v3349 = vmul.f32 %v3345, 0.7978846
    %v3350 = vmul.f32 %v3346, 0.7978846
    %v3351 = vtanh.pop %v3347
    %v3352 = vtanh.pop %v3348
    %v3353 = vtanh.pop %v3349
    %v3354 = vtanh.pop %v3350
    %v3355 = vadd.f32 %v3351, 1.0
    %v3356 = vadd.f32 %v3352, 1.0
    %v3357 = vadd.f32 %v3353, 1.0
    %v3358 = vadd.f32 %v3354, 1.0
    %v3359 = vmul.f32 %v3327, %v3355
    %v3360 = vmul.f32 %v3328, %v3356
    %v3361 = vmul.f32 %v3329, %v3357
    %v3362 = vmul.f32 %v3330, %v3358
    %v3363 = vpack.c.bf16 %v3360, %v3359
    %v3364 = vpack.c.bf16 %v3362, %v3361
    %s3365 = scalar_lea.vmem [#allocation8], 2304
    %v3366 = vld [vmem:[%s3365 + $0x40] sm:$0xf]
    %v3367 = vld [vmem:[%s3365 + $0x44] sm:$0xf]
    %v3368 = vld [vmem:[%s3365 + $0x48] sm:$0xf]
    %v3369 = vld [vmem:[%s3365 + $0x4c] sm:$0xf]
    %v3370 = vld [vmem:[%s3365 + $0x50] sm:$0xf]
    %v3371 = vld [vmem:[%s3365 + $0x54] sm:$0xf]
    %v3372 = vld [vmem:[%s3365 + $0x58] sm:$0xf]
    %v3373 = vld [vmem:[%s3365 + $0x5c] sm:$0xf]
    %v3374 = vld [vmem:[%s3365 + $0x60] sm:$0xf]
    %v3375 = vld [vmem:[%s3365 + $0x64] sm:$0xf]
    %v3376 = vld [vmem:[%s3365 + $0x68] sm:$0xf]
    %v3377 = vld [vmem:[%s3365 + $0x6c] sm:$0xf]
    %v3378 = vld [vmem:[%s3365 + $0x70] sm:$0xf]
    %v3379 = vld [vmem:[%s3365 + $0x74] sm:$0xf]
    %v3380 = vld [vmem:[%s3365 + $0x78] sm:$0xf]
    %v3381 = vld [vmem:[%s3365 + $0x7c] sm:$0xf]
    %s3382 = scalar_lea.vmem [#allocation9], 12
    %v3383 = vld [vmem:[%s3382] sm:$0x1]
    %v3385 = vperm.slane %v3383, 0
    %v3403 = vunpack.c.l.b16 %v3366
    %v3404 = vunpack.c.l.b16 %v3367
    %v3405 = vunpack.c.l.b16 %v3368
    %v3406 = vunpack.c.l.b16 %v3369
    %v3407 = vunpack.c.l.b16 %v3370
    %v3408 = vunpack.c.l.b16 %v3371
    %v3409 = vunpack.c.l.b16 %v3372
    %v3410 = vunpack.c.l.b16 %v3373
    %v3411 = vunpack.c.l.b16 %v3374
    %v3412 = vunpack.c.l.b16 %v3375
    %v3413 = vunpack.c.l.b16 %v3376
    %v3414 = vunpack.c.l.b16 %v3377
    %v3415 = vunpack.c.l.b16 %v3378
    %v3416 = vunpack.c.l.b16 %v3379
    %v3417 = vunpack.c.l.b16 %v3380
    %v3418 = vunpack.c.l.b16 %v3381
    %v3419 = vpack.c.b16 %v3404, %v3403
    %v3420 = vpack.c.b16 %v3406, %v3405
    %v3421 = vpack.c.b16 %v3408, %v3407
    %v3422 = vpack.c.b16 %v3410, %v3409
    %v3423 = vpack.c.b16 %v3412, %v3411
    %v3424 = vpack.c.b16 %v3414, %v3413
    %v3425 = vpack.c.b16 %v3416, %v3415
    %v3426 = vpack.c.b16 %v3418, %v3417
    %3435 = vmatpush.bf16.msra.mxu0 %v3426
    %3436 = vmatpush.bf16.msra.mxu0 %v3425
    %3437 = vmatpush.bf16.msra.mxu0 %v3424
    %3438 = vmatpush.bf16.msra.mxu0 %v3423
    %3439 = vmatpush.bf16.msra.mxu0 %v3422
    %3440 = vmatpush.bf16.msra.mxu0 %v3421
    %3441 = vmatpush.bf16.msra.mxu0 %v3420
    %3442 = vmatpush.bf16.msra.mxu0 %v3419
    %3443 = vmatmul.bf16.gmra.mxu0 %v3363
    %v3444 = vpop.f32.mrf.mxu0
    %v3445 = vadd.f32 %v3385, %v3444
    %v3446 = vpop.f32.mrf.mxu0
    %v3447 = vadd.f32 %v3385, %v3446
    %3448 = vmatmul.bf16.gmra.mxu0 %v3364
    %v3449 = vpop.f32.mrf.mxu0
    %v3450 = vadd.f32 %v3385, %v3449
    %v3451 = vpop.f32.mrf.mxu0
    %v3452 = vadd.f32 %v3385, %v3451
    %3453 = vdwg.mxu0
    %v3454 = vmul.f32 %v3445, 0.5
    %v3455 = vmul.f32 %v3447, 0.5
    %v3456 = vmul.f32 %v3450, 0.5
    %v3457 = vmul.f32 %v3452, 0.5
    %v3458 = vmul.f32 %v3445, 0.044715
    %v3459 = vmul.f32 %v3447, 0.044715
    %v3460 = vmul.f32 %v3450, 0.044715
    %v3461 = vmul.f32 %v3452, 0.044715
    %v3462 = vmul.f32 %v3458, %v3445
    %v3463 = vmul.f32 %v3459, %v3447
    %v3464 = vmul.f32 %v3460, %v3450
    %v3465 = vmul.f32 %v3461, %v3452
    %v3466 = vmul.f32 %v3462, %v3445
    %v3467 = vmul.f32 %v3463, %v3447
    %v3468 = vmul.f32 %v3464, %v3450
    %v3469 = vmul.f32 %v3465, %v3452
    %v3470 = vadd.f32 %v3445, %v3466
    %v3471 = vadd.f32 %v3447, %v3467
    %v3472 = vadd.f32 %v3450, %v3468
    %v3473 = vadd.f32 %v3452, %v3469
    %v3474 = vmul.f32 %v3470, 0.7978846
    %v3475 = vmul.f32 %v3471, 0.7978846
    %v3476 = vmul.f32 %v3472, 0.7978846
    %v3477 = vmul.f32 %v3473, 0.7978846
    %v3478 = vtanh.pop %v3474
    %v3479 = vtanh.pop %v3475
    %v3480 = vtanh.pop %v3476
    %v3481 = vtanh.pop %v3477
    %v3482 = vadd.f32 %v3478, 1.0
    %v3483 = vadd.f32 %v3479, 1.0
    %v3484 = vadd.f32 %v3480, 1.0
    %v3485 = vadd.f32 %v3481, 1.0
    %v3486 = vmul.f32 %v3454, %v3482
    %v3487 = vmul.f32 %v3455, %v3483
    %v3488 = vmul.f32 %v3456, %v3484
    %v3489 = vmul.f32 %v3457, %v3485
    %v3490 = vpack.c.bf16 %v3487, %v3486
    %v3491 = vpack.c.bf16 %v3489, %v3488
    %s3492 = scalar_lea.vmem [#allocation8], 2496
    %v3493 = vld [vmem:[%s3492 + $0x40] sm:$0xf]
    %v3494 = vld [vmem:[%s3492 + $0x44] sm:$0xf]
    %v3495 = vld [vmem:[%s3492 + $0x48] sm:$0xf]
    %v3496 = vld [vmem:[%s3492 + $0x4c] sm:$0xf]
    %v3497 = vld [vmem:[%s3492 + $0x50] sm:$0xf]
    %v3498 = vld [vmem:[%s3492 + $0x54] sm:$0xf]
    %v3499 = vld [vmem:[%s3492 + $0x58] sm:$0xf]
    %v3500 = vld [vmem:[%s3492 + $0x5c] sm:$0xf]
    %v3501 = vld [vmem:[%s3492 + $0x60] sm:$0xf]
    %v3502 = vld [vmem:[%s3492 + $0x64] sm:$0xf]
    %v3503 = vld [vmem:[%s3492 + $0x68] sm:$0xf]
    %v3504 = vld [vmem:[%s3492 + $0x6c] sm:$0xf]
    %v3505 = vld [vmem:[%s3492 + $0x70] sm:$0xf]
    %v3506 = vld [vmem:[%s3492 + $0x74] sm:$0xf]
    %v3507 = vld [vmem:[%s3492 + $0x78] sm:$0xf]
    %v3508 = vld [vmem:[%s3492 + $0x7c] sm:$0xf]
    %s3509 = scalar_lea.vmem [#allocation9], 13
    %v3510 = vld [vmem:[%s3509] sm:$0x1]
    %v3512 = vperm.slane %v3510, 0
    %v3530 = vunpack.c.l.b16 %v3493
    %v3531 = vunpack.c.l.b16 %v3494
    %v3532 = vunpack.c.l.b16 %v3495
    %v3533 = vunpack.c.l.b16 %v3496
    %v3534 = vunpack.c.l.b16 %v3497
    %v3535 = vunpack.c.l.b16 %v3498
    %v3536 = vunpack.c.l.b16 %v3499
    %v3537 = vunpack.c.l.b16 %v3500
    %v3538 = vunpack.c.l.b16 %v3501
    %v3539 = vunpack.c.l.b16 %v3502
    %v3540 = vunpack.c.l.b16 %v3503
    %v3541 = vunpack.c.l.b16 %v3504
    %v3542 = vunpack.c.l.b16 %v3505
    %v3543 = vunpack.c.l.b16 %v3506
    %v3544 = vunpack.c.l.b16 %v3507
    %v3545 = vunpack.c.l.b16 %v3508
    %v3546 = vpack.c.b16 %v3531, %v3530
    %v3547 = vpack.c.b16 %v3533, %v3532
    %v3548 = vpack.c.b16 %v3535, %v3534
    %v3549 = vpack.c.b16 %v3537, %v3536
    %v3550 = vpack.c.b16 %v3539, %v3538
    %v3551 = vpack.c.b16 %v3541, %v3540
    %v3552 = vpack.c.b16 %v3543, %v3542
    %v3553 = vpack.c.b16 %v3545, %v3544
    %3562 = vmatpush.bf16.msra.mxu0 %v3553
    %3563 = vmatpush.bf16.msra.mxu0 %v3552
    %3564 = vmatpush.bf16.msra.mxu0 %v3551
    %3565 = vmatpush.bf16.msra.mxu0 %v3550
    %3566 = vmatpush.bf16.msra.mxu0 %v3549
    %3567 = vmatpush.bf16.msra.mxu0 %v3548
    %3568 = vmatpush.bf16.msra.mxu0 %v3547
    %3569 = vmatpush.bf16.msra.mxu0 %v3546
    %3570 = vmatmul.bf16.gmra.mxu0 %v3490
    %v3571 = vpop.f32.mrf.mxu0
    %v3572 = vadd.f32 %v3512, %v3571
    %v3573 = vpop.f32.mrf.mxu0
    %v3574 = vadd.f32 %v3512, %v3573
    %3575 = vmatmul.bf16.gmra.mxu0 %v3491
    %v3576 = vpop.f32.mrf.mxu0
    %v3577 = vadd.f32 %v3512, %v3576
    %v3578 = vpop.f32.mrf.mxu0
    %v3579 = vadd.f32 %v3512, %v3578
    %3580 = vdwg.mxu0
    %v3581 = vadd.f32 %v3572, %v3323
    %v3582 = vadd.f32 %v3574, %v3324
    %v3583 = vadd.f32 %v3577, %v3325
    %v3584 = vadd.f32 %v3579, %v3326
    %3585 = vst [vmem:[#allocation2] sm:$0xff] %v3581
    %3586 = vst [vmem:[#allocation2 + $0x8] sm:$0xff] %v3582
    %3587 = vst [vmem:[#allocation2 + $0x10] sm:$0xff] %v3583
    %3588 = vst [vmem:[#allocation2 + $0x18] sm:$0xff] %v3584
    %v3589 = vld [vmem:[#allocation2] sm:$0xff]
    %v3590 = vld [vmem:[#allocation2 + $0x8] sm:$0xff]
    %v3591 = vld [vmem:[#allocation2 + $0x10] sm:$0xff]
    %v3592 = vld [vmem:[#allocation2 + $0x18] sm:$0xff]
    %v3593 = vmul.f32 %v3589, 0.5
    %v3594 = vmul.f32 %v3590, 0.5
    %v3595 = vmul.f32 %v3591, 0.5
    %v3596 = vmul.f32 %v3592, 0.5
    %v3597 = vmul.f32 %v3589, 0.044715
    %v3598 = vmul.f32 %v3590, 0.044715
    %v3599 = vmul.f32 %v3591, 0.044715
    %v3600 = vmul.f32 %v3592, 0.044715
    %v3601 = vmul.f32 %v3597, %v3589
    %v3602 = vmul.f32 %v3598, %v3590
    %v3603 = vmul.f32 %v3599, %v3591
    %v3604 = vmul.f32 %v3600, %v3592
    %v3605 = vmul.f32 %v3601, %v3589
    %v3606 = vmul.f32 %v3602, %v3590
    %v3607 = vmul.f32 %v3603, %v3591
    %v3608 = vmul.f32 %v3604, %v3592
    %v3609 = vadd.f32 %v3589, %v3605
    %v3610 = vadd.f32 %v3590, %v3606
    %v3611 = vadd.f32 %v3591, %v3607
    %v3612 = vadd.f32 %v3592, %v3608
    %v3613 = vmul.f32 %v3609, 0.7978846
    %v3614 = vmul.f32 %v3610, 0.7978846
    %v3615 = vmul.f32 %v3611, 0.7978846
    %v3616 = vmul.f32 %v3612, 0.7978846
    %v3617 = vtanh.pop %v3613
    %v3618 = vtanh.pop %v3614
    %v3619 = vtanh.pop %v3615
    %v3620 = vtanh.pop %v3616
    %v3621 = vadd.f32 %v3617, 1.0
    %v3622 = vadd.f32 %v3618, 1.0
    %v3623 = vadd.f32 %v3619, 1.0
    %v3624 = vadd.f32 %v3620, 1.0
    %v3625 = vmul.f32 %v3593, %v3621
    %v3626 = vmul.f32 %v3594, %v3622
    %v3627 = vmul.f32 %v3595, %v3623
    %v3628 = vmul.f32 %v3596, %v3624
    %v3629 = vpack.c.bf16 %v3626, %v3625
    %v3630 = vpack.c.bf16 %v3628, %v3627
    %s3631 = scalar_lea.vmem [#allocation8], 2688
    %v3632 = vld [vmem:[%s3631 + $0x40] sm:$0xf]
    %v3633 = vld [vmem:[%s3631 + $0x44] sm:$0xf]
    %v3634 = vld [vmem:[%s3631 + $0x48] sm:$0xf]
    %v3635 = vld [vmem:[%s3631 + $0x4c] sm:$0xf]
    %v3636 = vld [vmem:[%s3631 + $0x50] sm:$0xf]
    %v3637 = vld [vmem:[%s3631 + $0x54] sm:$0xf]
    %v3638 = vld [vmem:[%s3631 + $0x58] sm:$0xf]
    %v3639 = vld [vmem:[%s3631 + $0x5c] sm:$0xf]
    %v3640 = vld [vmem:[%s3631 + $0x60] sm:$0xf]
    %v3641 = vld [vmem:[%s3631 + $0x64] sm:$0xf]
    %v3642 = vld [vmem:[%s3631 + $0x68] sm:$0xf]
    %v3643 = vld [vmem:[%s3631 + $0x6c] sm:$0xf]
    %v3644 = vld [vmem:[%s3631 + $0x70] sm:$0xf]
    %v3645 = vld [vmem:[%s3631 + $0x74] sm:$0xf]
    %v3646 = vld [vmem:[%s3631 + $0x78] sm:$0xf]
    %v3647 = vld [vmem:[%s3631 + $0x7c] sm:$0xf]
    %s3648 = scalar_lea.vmem [#allocation9], 14
    %v3649 = vld [vmem:[%s3648] sm:$0x1]
    %v3651 = vperm.slane %v3649, 0
    %v3669 = vunpack.c.l.b16 %v3632
    %v3670 = vunpack.c.l.b16 %v3633
    %v3671 = vunpack.c.l.b16 %v3634
    %v3672 = vunpack.c.l.b16 %v3635
    %v3673 = vunpack.c.l.b16 %v3636
    %v3674 = vunpack.c.l.b16 %v3637
    %v3675 = vunpack.c.l.b16 %v3638
    %v3676 = vunpack.c.l.b16 %v3639
    %v3677 = vunpack.c.l.b16 %v3640
    %v3678 = vunpack.c.l.b16 %v3641
    %v3679 = vunpack.c.l.b16 %v3642
    %v3680 = vunpack.c.l.b16 %v3643
    %v3681 = vunpack.c.l.b16 %v3644
    %v3682 = vunpack.c.l.b16 %v3645
    %v3683 = vunpack.c.l.b16 %v3646
    %v3684 = vunpack.c.l.b16 %v3647
    %v3685 = vpack.c.b16 %v3670, %v3669
    %v3686 = vpack.c.b16 %v3672, %v3671
    %v3687 = vpack.c.b16 %v3674, %v3673
    %v3688 = vpack.c.b16 %v3676, %v3675
    %v3689 = vpack.c.b16 %v3678, %v3677
    %v3690 = vpack.c.b16 %v3680, %v3679
    %v3691 = vpack.c.b16 %v3682, %v3681
    %v3692 = vpack.c.b16 %v3684, %v3683
    %3701 = vmatpush.bf16.msra.mxu0 %v3692
    %3702 = vmatpush.bf16.msra.mxu0 %v3691
    %3703 = vmatpush.bf16.msra.mxu0 %v3690
    %3704 = vmatpush.bf16.msra.mxu0 %v3689
    %3705 = vmatpush.bf16.msra.mxu0 %v3688
    %3706 = vmatpush.bf16.msra.mxu0 %v3687
    %3707 = vmatpush.bf16.msra.mxu0 %v3686
    %3708 = vmatpush.bf16.msra.mxu0 %v3685
    %3709 = vmatmul.bf16.gmra.mxu0 %v3629
    %v3710 = vpop.f32.mrf.mxu0
    %v3711 = vadd.f32 %v3651, %v3710
    %v3712 = vpop.f32.mrf.mxu0
    %v3713 = vadd.f32 %v3651, %v3712
    %3714 = vmatmul.bf16.gmra.mxu0 %v3630
    %v3715 = vpop.f32.mrf.mxu0
    %v3716 = vadd.f32 %v3651, %v3715
    %v3717 = vpop.f32.mrf.mxu0
    %v3718 = vadd.f32 %v3651, %v3717
    %3719 = vdwg.mxu0
    %v3720 = vmul.f32 %v3711, 0.5
    %v3721 = vmul.f32 %v3713, 0.5
    %v3722 = vmul.f32 %v3716, 0.5
    %v3723 = vmul.f32 %v3718, 0.5
    %v3724 = vmul.f32 %v3711, 0.044715
    %v3725 = vmul.f32 %v3713, 0.044715
    %v3726 = vmul.f32 %v3716, 0.044715
    %v3727 = vmul.f32 %v3718, 0.044715
    %v3728 = vmul.f32 %v3724, %v3711
    %v3729 = vmul.f32 %v3725, %v3713
    %v3730 = vmul.f32 %v3726, %v3716
    %v3731 = vmul.f32 %v3727, %v3718
    %v3732 = vmul.f32 %v3728, %v3711
    %v3733 = vmul.f32 %v3729, %v3713
    %v3734 = vmul.f32 %v3730, %v3716
    %v3735 = vmul.f32 %v3731, %v3718
    %v3736 = vadd.f32 %v3711, %v3732
    %v3737 = vadd.f32 %v3713, %v3733
    %v3738 = vadd.f32 %v3716, %v3734
    %v3739 = vadd.f32 %v3718, %v3735
    %v3740 = vmul.f32 %v3736, 0.7978846
    %v3741 = vmul.f32 %v3737, 0.7978846
    %v3742 = vmul.f32 %v3738, 0.7978846
    %v3743 = vmul.f32 %v3739, 0.7978846
    %v3744 = vtanh.pop %v3740
    %v3745 = vtanh.pop %v3741
    %v3746 = vtanh.pop %v3742
    %v3747 = vtanh.pop %v3743
    %v3748 = vadd.f32 %v3744, 1.0
    %v3749 = vadd.f32 %v3745, 1.0
    %v3750 = vadd.f32 %v3746, 1.0
    %v3751 = vadd.f32 %v3747, 1.0
    %v3752 = vmul.f32 %v3720, %v3748
    %v3753 = vmul.f32 %v3721, %v3749
    %v3754 = vmul.f32 %v3722, %v3750
    %v3755 = vmul.f32 %v3723, %v3751
    %v3756 = vpack.c.bf16 %v3753, %v3752
    %v3757 = vpack.c.bf16 %v3755, %v3754
    %s3758 = scalar_lea.vmem [#allocation8], 2880
    %v3759 = vld [vmem:[%s3758 + $0x40] sm:$0xf]
    %v3760 = vld [vmem:[%s3758 + $0x44] sm:$0xf]
    %v3761 = vld [vmem:[%s3758 + $0x48] sm:$0xf]
    %v3762 = vld [vmem:[%s3758 + $0x4c] sm:$0xf]
    %v3763 = vld [vmem:[%s3758 + $0x50] sm:$0xf]
    %v3764 = vld [vmem:[%s3758 + $0x54] sm:$0xf]
    %v3765 = vld [vmem:[%s3758 + $0x58] sm:$0xf]
    %v3766 = vld [vmem:[%s3758 + $0x5c] sm:$0xf]
    %v3767 = vld [vmem:[%s3758 + $0x60] sm:$0xf]
    %v3768 = vld [vmem:[%s3758 + $0x64] sm:$0xf]
    %v3769 = vld [vmem:[%s3758 + $0x68] sm:$0xf]
    %v3770 = vld [vmem:[%s3758 + $0x6c] sm:$0xf]
    %v3771 = vld [vmem:[%s3758 + $0x70] sm:$0xf]
    %v3772 = vld [vmem:[%s3758 + $0x74] sm:$0xf]
    %v3773 = vld [vmem:[%s3758 + $0x78] sm:$0xf]
    %v3774 = vld [vmem:[%s3758 + $0x7c] sm:$0xf]
    %s3775 = scalar_lea.vmem [#allocation9], 15
    %v3776 = vld [vmem:[%s3775] sm:$0x1]
    %v3778 = vperm.slane %v3776, 0
    %v3796 = vunpack.c.l.b16 %v3759
    %v3797 = vunpack.c.l.b16 %v3760
    %v3798 = vunpack.c.l.b16 %v3761
    %v3799 = vunpack.c.l.b16 %v3762
    %v3800 = vunpack.c.l.b16 %v3763
    %v3801 = vunpack.c.l.b16 %v3764
    %v3802 = vunpack.c.l.b16 %v3765
    %v3803 = vunpack.c.l.b16 %v3766
    %v3804 = vunpack.c.l.b16 %v3767
    %v3805 = vunpack.c.l.b16 %v3768
    %v3806 = vunpack.c.l.b16 %v3769
    %v3807 = vunpack.c.l.b16 %v3770
    %v3808 = vunpack.c.l.b16 %v3771
    %v3809 = vunpack.c.l.b16 %v3772
    %v3810 = vunpack.c.l.b16 %v3773
    %v3811 = vunpack.c.l.b16 %v3774
    %v3812 = vpack.c.b16 %v3797, %v3796
    %v3813 = vpack.c.b16 %v3799, %v3798
    %v3814 = vpack.c.b16 %v3801, %v3800
    %v3815 = vpack.c.b16 %v3803, %v3802
    %v3816 = vpack.c.b16 %v3805, %v3804
    %v3817 = vpack.c.b16 %v3807, %v3806
    %v3818 = vpack.c.b16 %v3809, %v3808
    %v3819 = vpack.c.b16 %v3811, %v3810
    %3828 = vmatpush.bf16.msra.mxu0 %v3819
    %3829 = vmatpush.bf16.msra.mxu0 %v3818
    %3830 = vmatpush.bf16.msra.mxu0 %v3817
    %3831 = vmatpush.bf16.msra.mxu0 %v3816
    %3832 = vmatpush.bf16.msra.mxu0 %v3815
    %3833 = vmatpush.bf16.msra.mxu0 %v3814
    %3834 = vmatpush.bf16.msra.mxu0 %v3813
    %3835 = vmatpush.bf16.msra.mxu0 %v3812
    %3836 = vmatmul.bf16.gmra.mxu0 %v3756
    %v3837 = vpop.f32.mrf.mxu0
    %v3838 = vadd.f32 %v3778, %v3837
    %v3839 = vpop.f32.mrf.mxu0
    %v3840 = vadd.f32 %v3778, %v3839
    %3841 = vmatmul.bf16.gmra.mxu0 %v3757
    %v3842 = vpop.f32.mrf.mxu0
    %v3843 = vadd.f32 %v3778, %v3842
    %v3844 = vpop.f32.mrf.mxu0
    %v3845 = vadd.f32 %v3778, %v3844
    %3846 = vdwg.mxu0
    %v3847 = vadd.f32 %v3838, %v3589
    %v3848 = vadd.f32 %v3840, %v3590
    %v3849 = vadd.f32 %v3843, %v3591
    %v3850 = vadd.f32 %v3845, %v3592
    %3851 = vst [vmem:[#allocation2] sm:$0xff] %v3847
    %3852 = vst [vmem:[#allocation2 + $0x8] sm:$0xff] %v3848
    %3853 = vst [vmem:[#allocation2 + $0x10] sm:$0xff] %v3849
    %3854 = vst [vmem:[#allocation2 + $0x18] sm:$0xff] %v3850
    %v3855 = vld [vmem:[#allocation2] sm:$0xff]
    %v3856 = vld [vmem:[#allocation2 + $0x8] sm:$0xff]
    %v3857 = vld [vmem:[#allocation2 + $0x10] sm:$0xff]
    %v3858 = vld [vmem:[#allocation2 + $0x18] sm:$0xff]
    %v3859 = vmul.f32 %v3855, 0.5
    %v3860 = vmul.f32 %v3856, 0.5
    %v3861 = vmul.f32 %v3857, 0.5
    %v3862 = vmul.f32 %v3858, 0.5
    %v3863 = vmul.f32 %v3855, 0.044715
    %v3864 = vmul.f32 %v3856, 0.044715
    %v3865 = vmul.f32 %v3857, 0.044715
    %v3866 = vmul.f32 %v3858, 0.044715
    %v3867 = vmul.f32 %v3863, %v3855
    %v3868 = vmul.f32 %v3864, %v3856
    %v3869 = vmul.f32 %v3865, %v3857
    %v3870 = vmul.f32 %v3866, %v3858
    %v3871 = vmul.f32 %v3867, %v3855
    %v3872 = vmul.f32 %v3868, %v3856
    %v3873 = vmul.f32 %v3869, %v3857
    %v3874 = vmul.f32 %v3870, %v3858
    %v3875 = vadd.f32 %v3855, %v3871
    %v3876 = vadd.f32 %v3856, %v3872
    %v3877 = vadd.f32 %v3857, %v3873
    %v3878 = vadd.f32 %v3858, %v3874
    %v3879 = vmul.f32 %v3875, 0.7978846
    %v3880 = vmul.f32 %v3876, 0.7978846
    %v3881 = vmul.f32 %v3877, 0.7978846
    %v3882 = vmul.f32 %v3878, 0.7978846
    %v3883 = vtanh.pop %v3879
    %v3884 = vtanh.pop %v3880
    %v3885 = vtanh.pop %v3881
    %v3886 = vtanh.pop %v3882
    %v3887 = vadd.f32 %v3883, 1.0
    %v3888 = vadd.f32 %v3884, 1.0
    %v3889 = vadd.f32 %v3885, 1.0
    %v3890 = vadd.f32 %v3886, 1.0
    %v3891 = vmul.f32 %v3859, %v3887
    %v3892 = vmul.f32 %v3860, %v3888
    %v3893 = vmul.f32 %v3861, %v3889
    %v3894 = vmul.f32 %v3862, %v3890
    %v3895 = vpack.c.bf16 %v3892, %v3891
    %v3896 = vpack.c.bf16 %v3894, %v3893
    %s3897 = scalar_lea.vmem [#allocation8], 3072
    %v3898 = vld [vmem:[%s3897 + $0x40] sm:$0xf]
    %v3899 = vld [vmem:[%s3897 + $0x44] sm:$0xf]
    %v3900 = vld [vmem:[%s3897 + $0x48] sm:$0xf]
    %v3901 = vld [vmem:[%s3897 + $0x4c] sm:$0xf]
    %v3902 = vld [vmem:[%s3897 + $0x50] sm:$0xf]
    %v3903 = vld [vmem:[%s3897 + $0x54] sm:$0xf]
    %v3904 = vld [vmem:[%s3897 + $0x58] sm:$0xf]
    %v3905 = vld [vmem:[%s3897 + $0x5c] sm:$0xf]
    %v3906 = vld [vmem:[%s3897 + $0x60] sm:$0xf]
    %v3907 = vld [vmem:[%s3897 + $0x64] sm:$0xf]
    %v3908 = vld [vmem:[%s3897 + $0x68] sm:$0xf]
    %v3909 = vld [vmem:[%s3897 + $0x6c] sm:$0xf]
    %v3910 = vld [vmem:[%s3897 + $0x70] sm:$0xf]
    %v3911 = vld [vmem:[%s3897 + $0x74] sm:$0xf]
    %v3912 = vld [vmem:[%s3897 + $0x78] sm:$0xf]
    %v3913 = vld [vmem:[%s3897 + $0x7c] sm:$0xf]
    %s3914 = scalar_lea.vmem [#allocation9], 16
    %v3915 = vld [vmem:[%s3914] sm:$0x1]
    %v3917 = vperm.slane %v3915, 0
    %v3935 = vunpack.c.l.b16 %v3898
    %v3936 = vunpack.c.l.b16 %v3899
    %v3937 = vunpack.c.l.b16 %v3900
    %v3938 = vunpack.c.l.b16 %v3901
    %v3939 = vunpack.c.l.b16 %v3902
    %v3940 = vunpack.c.l.b16 %v3903
    %v3941 = vunpack.c.l.b16 %v3904
    %v3942 = vunpack.c.l.b16 %v3905
    %v3943 = vunpack.c.l.b16 %v3906
    %v3944 = vunpack.c.l.b16 %v3907
    %v3945 = vunpack.c.l.b16 %v3908
    %v3946 = vunpack.c.l.b16 %v3909
    %v3947 = vunpack.c.l.b16 %v3910
    %v3948 = vunpack.c.l.b16 %v3911
    %v3949 = vunpack.c.l.b16 %v3912
    %v3950 = vunpack.c.l.b16 %v3913
    %v3951 = vpack.c.b16 %v3936, %v3935
    %v3952 = vpack.c.b16 %v3938, %v3937
    %v3953 = vpack.c.b16 %v3940, %v3939
    %v3954 = vpack.c.b16 %v3942, %v3941
    %v3955 = vpack.c.b16 %v3944, %v3943
    %v3956 = vpack.c.b16 %v3946, %v3945
    %v3957 = vpack.c.b16 %v3948, %v3947
    %v3958 = vpack.c.b16 %v3950, %v3949
    %3967 = vmatpush.bf16.msra.mxu0 %v3958
    %3968 = vmatpush.bf16.msra.mxu0 %v3957
    %3969 = vmatpush.bf16.msra.mxu0 %v3956
    %3970 = vmatpush.bf16.msra.mxu0 %v3955
    %3971 = vmatpush.bf16.msra.mxu0 %v3954
    %3972 = vmatpush.bf16.msra.mxu0 %v3953
    %3973 = vmatpush.bf16.msra.mxu0 %v3952
    %3974 = vmatpush.bf16.msra.mxu0 %v3951
    %3975 = vmatmul.bf16.gmra.mxu0 %v3895
    %v3976 = vpop.f32.mrf.mxu0
    %v3977 = vadd.f32 %v3917, %v3976
    %v3978 = vpop.f32.mrf.mxu0
    %v3979 = vadd.f32 %v3917, %v3978
    %3980 = vmatmul.bf16.gmra.mxu0 %v3896
    %v3981 = vpop.f32.mrf.mxu0
    %v3982 = vadd.f32 %v3917, %v3981
    %v3983 = vpop.f32.mrf.mxu0
    %v3984 = vadd.f32 %v3917, %v3983
    %3985 = vdwg.mxu0
    %v3986 = vmul.f32 %v3977, 0.5
    %v3987 = vmul.f32 %v3979, 0.5
    %v3988 = vmul.f32 %v3982, 0.5
    %v3989 = vmul.f32 %v3984, 0.5
    %v3990 = vmul.f32 %v3977, 0.044715
    %v3991 = vmul.f32 %v3979, 0.044715
    %v3992 = vmul.f32 %v3982, 0.044715
    %v3993 = vmul.f32 %v3984, 0.044715
    %v3994 = vmul.f32 %v3990, %v3977
    %v3995 = vmul.f32 %v3991, %v3979
    %v3996 = vmul.f32 %v3992, %v3982
    %v3997 = vmul.f32 %v3993, %v3984
    %v3998 = vmul.f32 %v3994, %v3977
    %v3999 = vmul.f32 %v3995, %v3979
    %v4000 = vmul.f32 %v3996, %v3982
    %v4001 = vmul.f32 %v3997, %v3984
    %v4002 = vadd.f32 %v3977, %v3998
    %v4003 = vadd.f32 %v3979, %v3999
    %v4004 = vadd.f32 %v3982, %v4000
    %v4005 = vadd.f32 %v3984, %v4001
    %v4006 = vmul.f32 %v4002, 0.7978846
    %v4007 = vmul.f32 %v4003, 0.7978846
    %v4008 = vmul.f32 %v4004, 0.7978846
    %v4009 = vmul.f32 %v4005, 0.7978846
    %v4010 = vtanh.pop %v4006
    %v4011 = vtanh.pop %v4007
    %v4012 = vtanh.pop %v4008
    %v4013 = vtanh.pop %v4009
    %v4014 = vadd.f32 %v4010, 1.0
    %v4015 = vadd.f32 %v4011, 1.0
    %v4016 = vadd.f32 %v4012, 1.0
    %v4017 = vadd.f32 %v4013, 1.0
    %v4018 = vmul.f32 %v3986, %v4014
    %v4019 = vmul.f32 %v3987, %v4015
    %v4020 = vmul.f32 %v3988, %v4016
    %v4021 = vmul.f32 %v3989, %v4017
    %v4022 = vpack.c.bf16 %v4019, %v4018
    %v4023 = vpack.c.bf16 %v4021, %v4020
    %s4024 = scalar_lea.vmem [#allocation8], 3264
    %v4025 = vld [vmem:[%s4024 + $0x40] sm:$0xf]
    %v4026 = vld [vmem:[%s4024 + $0x44] sm:$0xf]
    %v4027 = vld [vmem:[%s4024 + $0x48] sm:$0xf]
    %v4028 = vld [vmem:[%s4024 + $0x4c] sm:$0xf]
    %v4029 = vld [vmem:[%s4024 + $0x50] sm:$0xf]
    %v4030 = vld [vmem:[%s4024 + $0x54] sm:$0xf]
    %v4031 = vld [vmem:[%s4024 + $0x58] sm:$0xf]
    %v4032 = vld [vmem:[%s4024 + $0x5c] sm:$0xf]
    %v4033 = vld [vmem:[%s4024 + $0x60] sm:$0xf]
    %v4034 = vld [vmem:[%s4024 + $0x64] sm:$0xf]
    %v4035 = vld [vmem:[%s4024 + $0x68] sm:$0xf]
    %v4036 = vld [vmem:[%s4024 + $0x6c] sm:$0xf]
    %v4037 = vld [vmem:[%s4024 + $0x70] sm:$0xf]
    %v4038 = vld [vmem:[%s4024 + $0x74] sm:$0xf]
    %v4039 = vld [vmem:[%s4024 + $0x78] sm:$0xf]
    %v4040 = vld [vmem:[%s4024 + $0x7c] sm:$0xf]
    %s4041 = scalar_lea.vmem [#allocation9], 17
    %v4042 = vld [vmem:[%s4041] sm:$0x1]
    %v4044 = vperm.slane %v4042, 0
    %v4062 = vunpack.c.l.b16 %v4025
    %v4063 = vunpack.c.l.b16 %v4026
    %v4064 = vunpack.c.l.b16 %v4027
    %v4065 = vunpack.c.l.b16 %v4028
    %v4066 = vunpack.c.l.b16 %v4029
    %v4067 = vunpack.c.l.b16 %v4030
    %v4068 = vunpack.c.l.b16 %v4031
    %v4069 = vunpack.c.l.b16 %v4032
    %v4070 = vunpack.c.l.b16 %v4033
    %v4071 = vunpack.c.l.b16 %v4034
    %v4072 = vunpack.c.l.b16 %v4035
    %v4073 = vunpack.c.l.b16 %v4036
    %v4074 = vunpack.c.l.b16 %v4037
    %v4075 = vunpack.c.l.b16 %v4038
    %v4076 = vunpack.c.l.b16 %v4039
    %v4077 = vunpack.c.l.b16 %v4040
    %v4078 = vpack.c.b16 %v4063, %v4062
    %v4079 = vpack.c.b16 %v4065, %v4064
    %v4080 = vpack.c.b16 %v4067, %v4066
    %v4081 = vpack.c.b16 %v4069, %v4068
    %v4082 = vpack.c.b16 %v4071, %v4070
    %v4083 = vpack.c.b16 %v4073, %v4072
    %v4084 = vpack.c.b16 %v4075, %v4074
    %v4085 = vpack.c.b16 %v4077, %v4076
    %4094 = vmatpush.bf16.msra.mxu0 %v4085
    %4095 = vmatpush.bf16.msra.mxu0 %v4084
    %4096 = vmatpush.bf16.msra.mxu0 %v4083
    %4097 = vmatpush.bf16.msra.mxu0 %v4082
    %4098 = vmatpush.bf16.msra.mxu0 %v4081
    %4099 = vmatpush.bf16.msra.mxu0 %v4080
    %4100 = vmatpush.bf16.msra.mxu0 %v4079
    %4101 = vmatpush.bf16.msra.mxu0 %v4078
    %4102 = vmatmul.bf16.gmra.mxu0 %v4022
    %v4103 = vpop.f32.mrf.mxu0
    %v4104 = vadd.f32 %v4044, %v4103
    %v4105 = vpop.f32.mrf.mxu0
    %v4106 = vadd.f32 %v4044, %v4105
    %4107 = vmatmul.bf16.gmra.mxu0 %v4023
    %v4108 = vpop.f32.mrf.mxu0
    %v4109 = vadd.f32 %v4044, %v4108
    %v4110 = vpop.f32.mrf.mxu0
    %v4111 = vadd.f32 %v4044, %v4110
    %4112 = vdwg.mxu0
    %v4113 = vadd.f32 %v4104, %v3855
    %v4114 = vadd.f32 %v4106, %v3856
    %v4115 = vadd.f32 %v4109, %v3857
    %v4116 = vadd.f32 %v4111, %v3858
    %4117 = vst [vmem:[#allocation2] sm:$0xff] %v4113
    %4118 = vst [vmem:[#allocation2 + $0x8] sm:$0xff] %v4114
    %4119 = vst [vmem:[#allocation2 + $0x10] sm:$0xff] %v4115
    %4120 = vst [vmem:[#allocation2 + $0x18] sm:$0xff] %v4116
    %v4121 = vld [vmem:[#allocation2] sm:$0xff]
    %v4122 = vld [vmem:[#allocation2 + $0x8] sm:$0xff]
    %v4123 = vld [vmem:[#allocation2 + $0x10] sm:$0xff]
    %v4124 = vld [vmem:[#allocation2 + $0x18] sm:$0xff]
    %v4125 = vmul.f32 %v4121, 0.5
    %v4126 = vmul.f32 %v4122, 0.5
    %v4127 = vmul.f32 %v4123, 0.5
    %v4128 = vmul.f32 %v4124, 0.5
    %v4129 = vmul.f32 %v4121, 0.044715
    %v4130 = vmul.f32 %v4122, 0.044715
    %v4131 = vmul.f32 %v4123, 0.044715
    %v4132 = vmul.f32 %v4124, 0.044715
    %v4133 = vmul.f32 %v4129, %v4121
    %v4134 = vmul.f32 %v4130, %v4122
    %v4135 = vmul.f32 %v4131, %v4123
    %v4136 = vmul.f32 %v4132, %v4124
    %v4137 = vmul.f32 %v4133, %v4121
    %v4138 = vmul.f32 %v4134, %v4122
    %v4139 = vmul.f32 %v4135, %v4123
    %v4140 = vmul.f32 %v4136, %v4124
    %v4141 = vadd.f32 %v4121, %v4137
    %v4142 = vadd.f32 %v4122, %v4138
    %v4143 = vadd.f32 %v4123, %v4139
    %v4144 = vadd.f32 %v4124, %v4140
    %v4145 = vmul.f32 %v4141, 0.7978846
    %v4146 = vmul.f32 %v4142, 0.7978846
    %v4147 = vmul.f32 %v4143, 0.7978846
    %v4148 = vmul.f32 %v4144, 0.7978846
    %v4149 = vtanh.pop %v4145
    %v4150 = vtanh.pop %v4146
    %v4151 = vtanh.pop %v4147
    %v4152 = vtanh.pop %v4148
    %v4153 = vadd.f32 %v4149, 1.0
    %v4154 = vadd.f32 %v4150, 1.0
    %v4155 = vadd.f32 %v4151, 1.0
    %v4156 = vadd.f32 %v4152, 1.0
    %v4157 = vmul.f32 %v4125, %v4153
    %v4158 = vmul.f32 %v4126, %v4154
    %v4159 = vmul.f32 %v4127, %v4155
    %v4160 = vmul.f32 %v4128, %v4156
    %v4161 = vpack.c.bf16 %v4158, %v4157
    %v4162 = vpack.c.bf16 %v4160, %v4159
    %s4163 = scalar_lea.vmem [#allocation8], 3456
    %v4164 = vld [vmem:[%s4163 + $0x40] sm:$0xf]
    %v4165 = vld [vmem:[%s4163 + $0x44] sm:$0xf]
    %v4166 = vld [vmem:[%s4163 + $0x48] sm:$0xf]
    %v4167 = vld [vmem:[%s4163 + $0x4c] sm:$0xf]
    %v4168 = vld [vmem:[%s4163 + $0x50] sm:$0xf]
    %v4169 = vld [vmem:[%s4163 + $0x54] sm:$0xf]
    %v4170 = vld [vmem:[%s4163 + $0x58] sm:$0xf]
    %v4171 = vld [vmem:[%s4163 + $0x5c] sm:$0xf]
    %v4172 = vld [vmem:[%s4163 + $0x60] sm:$0xf]
    %v4173 = vld [vmem:[%s4163 + $0x64] sm:$0xf]
    %v4174 = vld [vmem:[%s4163 + $0x68] sm:$0xf]
    %v4175 = vld [vmem:[%s4163 + $0x6c] sm:$0xf]
    %v4176 = vld [vmem:[%s4163 + $0x70] sm:$0xf]
    %v4177 = vld [vmem:[%s4163 + $0x74] sm:$0xf]
    %v4178 = vld [vmem:[%s4163 + $0x78] sm:$0xf]
    %v4179 = vld [vmem:[%s4163 + $0x7c] sm:$0xf]
    %s4180 = scalar_lea.vmem [#allocation9], 18
    %v4181 = vld [vmem:[%s4180] sm:$0x1]
    %v4183 = vperm.slane %v4181, 0
    %v4201 = vunpack.c.l.b16 %v4164
    %v4202 = vunpack.c.l.b16 %v4165
    %v4203 = vunpack.c.l.b16 %v4166
    %v4204 = vunpack.c.l.b16 %v4167
    %v4205 = vunpack.c.l.b16 %v4168
    %v4206 = vunpack.c.l.b16 %v4169
    %v4207 = vunpack.c.l.b16 %v4170
    %v4208 = vunpack.c.l.b16 %v4171
    %v4209 = vunpack.c.l.b16 %v4172
    %v4210 = vunpack.c.l.b16 %v4173
    %v4211 = vunpack.c.l.b16 %v4174
    %v4212 = vunpack.c.l.b16 %v4175
    %v4213 = vunpack.c.l.b16 %v4176
    %v4214 = vunpack.c.l.b16 %v4177
    %v4215 = vunpack.c.l.b16 %v4178
    %v4216 = vunpack.c.l.b16 %v4179
    %v4217 = vpack.c.b16 %v4202, %v4201
    %v4218 = vpack.c.b16 %v4204, %v4203
    %v4219 = vpack.c.b16 %v4206, %v4205
    %v4220 = vpack.c.b16 %v4208, %v4207
    %v4221 = vpack.c.b16 %v4210, %v4209
    %v4222 = vpack.c.b16 %v4212, %v4211
    %v4223 = vpack.c.b16 %v4214, %v4213
    %v4224 = vpack.c.b16 %v4216, %v4215
    %4233 = vmatpush.bf16.msra.mxu0 %v4224
    %4234 = vmatpush.bf16.msra.mxu0 %v4223
    %4235 = vmatpush.bf16.msra.mxu0 %v4222
    %4236 = vmatpush.bf16.msra.mxu0 %v4221
    %4237 = vmatpush.bf16.msra.mxu0 %v4220
    %4238 = vmatpush.bf16.msra.mxu0 %v4219
    %4239 = vmatpush.bf16.msra.mxu0 %v4218
    %4240 = vmatpush.bf16.msra.mxu0 %v4217
    %4241 = vmatmul.bf16.gmra.mxu0 %v4161
    %v4242 = vpop.f32.mrf.mxu0
    %v4243 = vadd.f32 %v4183, %v4242
    %v4244 = vpop.f32.mrf.mxu0
    %v4245 = vadd.f32 %v4183, %v4244
    %4246 = vmatmul.bf16.gmra.mxu0 %v4162
    %v4247 = vpop.f32.mrf.mxu0
    %v4248 = vadd.f32 %v4183, %v4247
    %v4249 = vpop.f32.mrf.mxu0
    %v4250 = vadd.f32 %v4183, %v4249
    %4251 = vdwg.mxu0
    %v4252 = vmul.f32 %v4243, 0.5
    %v4253 = vmul.f32 %v4245, 0.5
    %v4254 = vmul.f32 %v4248, 0.5
    %v4255 = vmul.f32 %v4250, 0.5
    %v4256 = vmul.f32 %v4243, 0.044715
    %v4257 = vmul.f32 %v4245, 0.044715
    %v4258 = vmul.f32 %v4248, 0.044715
    %v4259 = vmul.f32 %v4250, 0.044715
    %v4260 = vmul.f32 %v4256, %v4243
    %v4261 = vmul.f32 %v4257, %v4245
    %v4262 = vmul.f32 %v4258, %v4248
    %v4263 = vmul.f32 %v4259, %v4250
    %v4264 = vmul.f32 %v4260, %v4243
    %v4265 = vmul.f32 %v4261, %v4245
    %v4266 = vmul.f32 %v4262, %v4248
    %v4267 = vmul.f32 %v4263, %v4250
    %v4268 = vadd.f32 %v4243, %v4264
    %v4269 = vadd.f32 %v4245, %v4265
    %v4270 = vadd.f32 %v4248, %v4266
    %v4271 = vadd.f32 %v4250, %v4267
    %v4272 = vmul.f32 %v4268, 0.7978846
    %v4273 = vmul.f32 %v4269, 0.7978846
    %v4274 = vmul.f32 %v4270, 0.7978846
    %v4275 = vmul.f32 %v4271, 0.7978846
    %v4276 = vtanh.pop %v4272
    %v4277 = vtanh.pop %v4273
    %v4278 = vtanh.pop %v4274
    %v4279 = vtanh.pop %v4275
    %v4280 = vadd.f32 %v4276, 1.0
    %v4281 = vadd.f32 %v4277, 1.0
    %v4282 = vadd.f32 %v4278, 1.0
    %v4283 = vadd.f32 %v4279, 1.0
    %v4284 = vmul.f32 %v4252, %v4280
    %v4285 = vmul.f32 %v4253, %v4281
    %v4286 = vmul.f32 %v4254, %v4282
    %v4287 = vmul.f32 %v4255, %v4283
    %v4288 = vpack.c.bf16 %v4285, %v4284
    %v4289 = vpack.c.bf16 %v4287, %v4286
    %s4290 = scalar_lea.vmem [#allocation8], 3648
    %v4291 = vld [vmem:[%s4290 + $0x40] sm:$0xf]
    %v4292 = vld [vmem:[%s4290 + $0x44] sm:$0xf]
    %v4293 = vld [vmem:[%s4290 + $0x48] sm:$0xf]
    %v4294 = vld [vmem:[%s4290 + $0x4c] sm:$0xf]
    %v4295 = vld [vmem:[%s4290 + $0x50] sm:$0xf]
    %v4296 = vld [vmem:[%s4290 + $0x54] sm:$0xf]
    %v4297 = vld [vmem:[%s4290 + $0x58] sm:$0xf]
    %v4298 = vld [vmem:[%s4290 + $0x5c] sm:$0xf]
    %v4299 = vld [vmem:[%s4290 + $0x60] sm:$0xf]
    %v4300 = vld [vmem:[%s4290 + $0x64] sm:$0xf]
    %v4301 = vld [vmem:[%s4290 + $0x68] sm:$0xf]
    %v4302 = vld [vmem:[%s4290 + $0x6c] sm:$0xf]
    %v4303 = vld [vmem:[%s4290 + $0x70] sm:$0xf]
    %v4304 = vld [vmem:[%s4290 + $0x74] sm:$0xf]
    %v4305 = vld [vmem:[%s4290 + $0x78] sm:$0xf]
    %v4306 = vld [vmem:[%s4290 + $0x7c] sm:$0xf]
    %s4307 = scalar_lea.vmem [#allocation9], 19
    %v4308 = vld [vmem:[%s4307] sm:$0x1]
    %v4310 = vperm.slane %v4308, 0
    %v4328 = vunpack.c.l.b16 %v4291
    %v4329 = vunpack.c.l.b16 %v4292
    %v4330 = vunpack.c.l.b16 %v4293
    %v4331 = vunpack.c.l.b16 %v4294
    %v4332 = vunpack.c.l.b16 %v4295
    %v4333 = vunpack.c.l.b16 %v4296
    %v4334 = vunpack.c.l.b16 %v4297
    %v4335 = vunpack.c.l.b16 %v4298
    %v4336 = vunpack.c.l.b16 %v4299
    %v4337 = vunpack.c.l.b16 %v4300
    %v4338 = vunpack.c.l.b16 %v4301
    %v4339 = vunpack.c.l.b16 %v4302
    %v4340 = vunpack.c.l.b16 %v4303
    %v4341 = vunpack.c.l.b16 %v4304
    %v4342 = vunpack.c.l.b16 %v4305
    %v4343 = vunpack.c.l.b16 %v4306
    %v4344 = vpack.c.b16 %v4329, %v4328
    %v4345 = vpack.c.b16 %v4331, %v4330
    %v4346 = vpack.c.b16 %v4333, %v4332
    %v4347 = vpack.c.b16 %v4335, %v4334
    %v4348 = vpack.c.b16 %v4337, %v4336
    %v4349 = vpack.c.b16 %v4339, %v4338
    %v4350 = vpack.c.b16 %v4341, %v4340
    %v4351 = vpack.c.b16 %v4343, %v4342
    %4360 = vmatpush.bf16.msra.mxu0 %v4351
    %4361 = vmatpush.bf16.msra.mxu0 %v4350
    %4362 = vmatpush.bf16.msra.mxu0 %v4349
    %4363 = vmatpush.bf16.msra.mxu0 %v4348
    %4364 = vmatpush.bf16.msra.mxu0 %v4347
    %4365 = vmatpush.bf16.msra.mxu0 %v4346
    %4366 = vmatpush.bf16.msra.mxu0 %v4345
    %4367 = vmatpush.bf16.msra.mxu0 %v4344
    %4368 = vmatmul.bf16.gmra.mxu0 %v4288
    %v4369 = vpop.f32.mrf.mxu0
    %v4370 = vadd.f32 %v4310, %v4369
    %v4371 = vpop.f32.mrf.mxu0
    %v4372 = vadd.f32 %v4310, %v4371
    %4373 = vmatmul.bf16.gmra.mxu0 %v4289
    %v4374 = vpop.f32.mrf.mxu0
    %v4375 = vadd.f32 %v4310, %v4374
    %v4376 = vpop.f32.mrf.mxu0
    %v4377 = vadd.f32 %v4310, %v4376
    %4378 = vdwg.mxu0
    %v4379 = vadd.f32 %v4370, %v4121
    %v4380 = vadd.f32 %v4372, %v4122
    %v4381 = vadd.f32 %v4375, %v4123
    %v4382 = vadd.f32 %v4377, %v4124
    %4383 = vst [vmem:[#allocation2] sm:$0xff] %v4379
    %4384 = vst [vmem:[#allocation2 + $0x8] sm:$0xff] %v4380
    %4385 = vst [vmem:[#allocation2 + $0x10] sm:$0xff] %v4381
    %4386 = vst [vmem:[#allocation2 + $0x18] sm:$0xff] %v4382
    %v4387 = vld [vmem:[#allocation2] sm:$0xff]
    %v4388 = vld [vmem:[#allocation2 + $0x8] sm:$0xff]
    %v4389 = vld [vmem:[#allocation2 + $0x10] sm:$0xff]
    %v4390 = vld [vmem:[#allocation2 + $0x18] sm:$0xff]
    %v4391 = vpack.c.bf16 %v4388, %v4387
    %v4392 = vpack.c.bf16 %v4390, %v4389
    %v4393 = vld [vmem:[#allocation11] sm:$0xf]
    %v4394 = vld [vmem:[#allocation11 + $0x4] sm:$0xf]
    %v4395 = vld [vmem:[#allocation11 + $0x8] sm:$0xf]
    %v4396 = vld [vmem:[#allocation11 + $0xc] sm:$0xf]
    %v4397 = vld [vmem:[#allocation11 + $0x10] sm:$0xf]
    %v4398 = vld [vmem:[#allocation11 + $0x14] sm:$0xf]
    %v4399 = vld [vmem:[#allocation11 + $0x18] sm:$0xf]
    %v4400 = vld [vmem:[#allocation11 + $0x1c] sm:$0xf]
    %v4401 = vld [vmem:[#allocation11 + $0x20] sm:$0xf]
    %v4402 = vld [vmem:[#allocation11 + $0x24] sm:$0xf]
    %v4403 = vld [vmem:[#allocation11 + $0x28] sm:$0xf]
    %v4404 = vld [vmem:[#allocation11 + $0x2c] sm:$0xf]
    %v4405 = vld [vmem:[#allocation11 + $0x30] sm:$0xf]
    %v4406 = vld [vmem:[#allocation11 + $0x34] sm:$0xf]
    %v4407 = vld [vmem:[#allocation11 + $0x38] sm:$0xf]
    %v4408 = vld [vmem:[#allocation11 + $0x3c] sm:$0xf]
    %v4409 = vld [vmem:[#allocation12] sm:$0x1]
    %v4411 = vperm.slane %v4409, 0
    %v4429 = vunpack.c.l.b16 %v4393
    %v4430 = vunpack.c.l.b16 %v4394
    %v4431 = vunpack.c.l.b16 %v4395
    %v4432 = vunpack.c.l.b16 %v4396
    %v4433 = vunpack.c.l.b16 %v4397
    %v4434 = vunpack.c.l.b16 %v4398
    %v4435 = vunpack.c.l.b16 %v4399
    %v4436 = vunpack.c.l.b16 %v4400
    %v4437 = vunpack.c.l.b16 %v4401
    %v4438 = vunpack.c.l.b16 %v4402
    %v4439 = vunpack.c.l.b16 %v4403
    %v4440 = vunpack.c.l.b16 %v4404
    %v4441 = vunpack.c.l.b16 %v4405
    %v4442 = vunpack.c.l.b16 %v4406
    %v4443 = vunpack.c.l.b16 %v4407
    %v4444 = vunpack.c.l.b16 %v4408
    %v4445 = vpack.c.b16 %v4430, %v4429
    %v4446 = vpack.c.b16 %v4432, %v4431
    %v4447 = vpack.c.b16 %v4434, %v4433
    %v4448 = vpack.c.b16 %v4436, %v4435
    %v4449 = vpack.c.b16 %v4438, %v4437
    %v4450 = vpack.c.b16 %v4440, %v4439
    %v4451 = vpack.c.b16 %v4442, %v4441
    %v4452 = vpack.c.b16 %v4444, %v4443
    %4461 = vmatpush.bf16.msra.mxu0 %v4452
    %4462 = vmatpush.bf16.msra.mxu0 %v4451
    %4463 = vmatpush.bf16.msra.mxu0 %v4450
    %4464 = vmatpush.bf16.msra.mxu0 %v4449
    %4465 = vmatpush.bf16.msra.mxu0 %v4448
    %4466 = vmatpush.bf16.msra.mxu0 %v4447
    %4467 = vmatpush.bf16.msra.mxu0 %v4446
    %4468 = vmatpush.bf16.msra.mxu0 %v4445
    %4469 = vmatmul.bf16.gmra.mxu0 %v4391
    %v4470 = vpop.f32.mrf.mxu0
    %v4471 = vadd.f32 %v4411, %v4470
    %v4472 = vpop.f32.mrf.mxu0
    %v4473 = vadd.f32 %v4411, %v4472
    %4474 = vmatmul.bf16.gmra.mxu0 %v4392
    %v4475 = vpop.f32.mrf.mxu0
    %v4476 = vadd.f32 %v4411, %v4475
    %v4477 = vpop.f32.mrf.mxu0
    %v4478 = vadd.f32 %v4411, %v4477
    %4479 = vdwg.mxu0
    %v4480 = vmul.f32 %v4387, 0.5
    %v4481 = vmul.f32 %v4388, 0.5
    %v4482 = vmul.f32 %v4389, 0.5
    %v4483 = vmul.f32 %v4390, 0.5
    %v4484 = vmul.f32 %v4387, 0.044715
    %v4485 = vmul.f32 %v4388, 0.044715
    %v4486 = vmul.f32 %v4389, 0.044715
    %v4487 = vmul.f32 %v4390, 0.044715
    %v4488 = vmul.f32 %v4484, %v4387
    %v4489 = vmul.f32 %v4485, %v4388
    %v4490 = vmul.f32 %v4486, %v4389
    %v4491 = vmul.f32 %v4487, %v4390
    %v4492 = vmul.f32 %v4488, %v4387
    %v4493 = vmul.f32 %v4489, %v4388
    %v4494 = vmul.f32 %v4490, %v4389
    %v4495 = vmul.f32 %v4491, %v4390
    %v4496 = vadd.f32 %v4387, %v4492
    %v4497 = vadd.f32 %v4388, %v4493
    %v4498 = vadd.f32 %v4389, %v4494
    %v4499 = vadd.f32 %v4390, %v4495
    %v4500 = vmul.f32 %v4496, 0.7978846
    %v4501 = vmul.f32 %v4497, 0.7978846
    %v4502 = vmul.f32 %v4498, 0.7978846
    %v4503 = vmul.f32 %v4499, 0.7978846
    %v4504 = vtanh.pop %v4500
    %v4505 = vtanh.pop %v4501
    %v4506 = vtanh.pop %v4502
    %v4507 = vtanh.pop %v4503
    %v4508 = vadd.f32 %v4504, 1.0
    %v4509 = vadd.f32 %v4505, 1.0
    %v4510 = vadd.f32 %v4506, 1.0
    %v4511 = vadd.f32 %v4507, 1.0
    %v4512 = vmul.f32 %v4480, %v4508
    %v4513 = vmul.f32 %v4481, %v4509
    %v4514 = vmul.f32 %v4482, %v4510
    %v4515 = vmul.f32 %v4483, %v4511
    %v4516 = vpack.c.bf16 %v4513, %v4512
    %v4517 = vpack.c.bf16 %v4515, %v4514
    %s4518 = scalar_lea.vmem [#allocation8], 3840
    %v4519 = vld [vmem:[%s4518 + $0x40] sm:$0xf]
    %v4520 = vld [vmem:[%s4518 + $0x44] sm:$0xf]
    %v4521 = vld [vmem:[%s4518 + $0x48] sm:$0xf]
    %v4522 = vld [vmem:[%s4518 + $0x4c] sm:$0xf]
    %v4523 = vld [vmem:[%s4518 + $0x50] sm:$0xf]
    %v4524 = vld [vmem:[%s4518 + $0x54] sm:$0xf]
    %v4525 = vld [vmem:[%s4518 + $0x58] sm:$0xf]
    %v4526 = vld [vmem:[%s4518 + $0x5c] sm:$0xf]
    %v4527 = vld [vmem:[%s4518 + $0x60] sm:$0xf]
    %v4528 = vld [vmem:[%s4518 + $0x64] sm:$0xf]
    %v4529 = vld [vmem:[%s4518 + $0x68] sm:$0xf]
    %v4530 = vld [vmem:[%s4518 + $0x6c] sm:$0xf]
    %v4531 = vld [vmem:[%s4518 + $0x70] sm:$0xf]
    %v4532 = vld [vmem:[%s4518 + $0x74] sm:$0xf]
    %v4533 = vld [vmem:[%s4518 + $0x78] sm:$0xf]
    %v4534 = vld [vmem:[%s4518 + $0x7c] sm:$0xf]
    %s4535 = scalar_lea.vmem [#allocation9], 20
    %v4536 = vld [vmem:[%s4535] sm:$0x1]
    %v4538 = vperm.slane %v4536, 0
    %v4556 = vunpack.c.l.b16 %v4519
    %v4557 = vunpack.c.l.b16 %v4520
    %v4558 = vunpack.c.l.b16 %v4521
    %v4559 = vunpack.c.l.b16 %v4522
    %v4560 = vunpack.c.l.b16 %v4523
    %v4561 = vunpack.c.l.b16 %v4524
    %v4562 = vunpack.c.l.b16 %v4525
    %v4563 = vunpack.c.l.b16 %v4526
    %v4564 = vunpack.c.l.b16 %v4527
    %v4565 = vunpack.c.l.b16 %v4528
    %v4566 = vunpack.c.l.b16 %v4529
    %v4567 = vunpack.c.l.b16 %v4530
    %v4568 = vunpack.c.l.b16 %v4531
    %v4569 = vunpack.c.l.b16 %v4532
    %v4570 = vunpack.c.l.b16 %v4533
    %v4571 = vunpack.c.l.b16 %v4534
    %v4572 = vpack.c.b16 %v4557, %v4556
    %v4573 = vpack.c.b16 %v4559, %v4558
    %v4574 = vpack.c.b16 %v4561, %v4560
    %v4575 = vpack.c.b16 %v4563, %v4562
    %v4576 = vpack.c.b16 %v4565, %v4564
    %v4577 = vpack.c.b16 %v4567, %v4566
    %v4578 = vpack.c.b16 %v4569, %v4568
    %v4579 = vpack.c.b16 %v4571, %v4570
    %4588 = vmatpush.bf16.msra.mxu0 %v4579
    %4589 = vmatpush.bf16.msra.mxu0 %v4578
    %4590 = vmatpush.bf16.msra.mxu0 %v4577
    %4591 = vmatpush.bf16.msra.mxu0 %v4576
    %4592 = vmatpush.bf16.msra.mxu0 %v4575
    %4593 = vmatpush.bf16.msra.mxu0 %v4574
    %4594 = vmatpush.bf16.msra.mxu0 %v4573
    %4595 = vmatpush.bf16.msra.mxu0 %v4572
    %4596 = vmatmul.bf16.gmra.mxu0 %v4516
    %v4597 = vpop.f32.mrf.mxu0
    %v4598 = vadd.f32 %v4538, %v4597
    %v4599 = vpop.f32.mrf.mxu0
    %v4600 = vadd.f32 %v4538, %v4599
    %4601 = vmatmul.bf16.gmra.mxu0 %v4517
    %v4602 = vpop.f32.mrf.mxu0
    %v4603 = vadd.f32 %v4538, %v4602
    %v4604 = vpop.f32.mrf.mxu0
    %v4605 = vadd.f32 %v4538, %v4604
    %4606 = vdwg.mxu0
    %v4607 = vmul.f32 %v4598, 0.5
    %v4608 = vmul.f32 %v4600, 0.5
    %v4609 = vmul.f32 %v4603, 0.5
    %v4610 = vmul.f32 %v4605, 0.5
    %v4611 = vmul.f32 %v4598, 0.044715
    %v4612 = vmul.f32 %v4600, 0.044715
    %v4613 = vmul.f32 %v4603, 0.044715
    %v4614 = vmul.f32 %v4605, 0.044715
    %v4615 = vmul.f32 %v4611, %v4598
    %v4616 = vmul.f32 %v4612, %v4600
    %v4617 = vmul.f32 %v4613, %v4603
    %v4618 = vmul.f32 %v4614, %v4605
    %v4619 = vmul.f32 %v4615, %v4598
    %v4620 = vmul.f32 %v4616, %v4600
    %v4621 = vmul.f32 %v4617, %v4603
    %v4622 = vmul.f32 %v4618, %v4605
    %v4623 = vadd.f32 %v4598, %v4619
    %v4624 = vadd.f32 %v4600, %v4620
    %v4625 = vadd.f32 %v4603, %v4621
    %v4626 = vadd.f32 %v4605, %v4622
    %v4627 = vmul.f32 %v4623, 0.7978846
    %v4628 = vmul.f32 %v4624, 0.7978846
    %v4629 = vmul.f32 %v4625, 0.7978846
    %v4630 = vmul.f32 %v4626, 0.7978846
    %v4631 = vtanh.pop %v4627
    %v4632 = vtanh.pop %v4628
    %v4633 = vtanh.pop %v4629
    %v4634 = vtanh.pop %v4630
    %v4635 = vadd.f32 %v4631, 1.0
    %v4636 = vadd.f32 %v4632, 1.0
    %v4637 = vadd.f32 %v4633, 1.0
    %v4638 = vadd.f32 %v4634, 1.0
    %v4639 = vmul.f32 %v4607, %v4635
    %v4640 = vmul.f32 %v4608, %v4636
    %v4641 = vmul.f32 %v4609, %v4637
    %v4642 = vmul.f32 %v4610, %v4638
    %v4643 = vpack.c.bf16 %v4640, %v4639
    %v4644 = vpack.c.bf16 %v4642, %v4641
    %s4645 = scalar_lea.vmem [#allocation8], 4032
    %v4646 = vld [vmem:[%s4645 + $0x40] sm:$0xf]
    %v4647 = vld [vmem:[%s4645 + $0x44] sm:$0xf]
    %v4648 = vld [vmem:[%s4645 + $0x48] sm:$0xf]
    %v4649 = vld [vmem:[%s4645 + $0x4c] sm:$0xf]
    %v4650 = vld [vmem:[%s4645 + $0x50] sm:$0xf]
    %v4651 = vld [vmem:[%s4645 + $0x54] sm:$0xf]
    %v4652 = vld [vmem:[%s4645 + $0x58] sm:$0xf]
    %v4653 = vld [vmem:[%s4645 + $0x5c] sm:$0xf]
    %v4654 = vld [vmem:[%s4645 + $0x60] sm:$0xf]
    %v4655 = vld [vmem:[%s4645 + $0x64] sm:$0xf]
    %v4656 = vld [vmem:[%s4645 + $0x68] sm:$0xf]
    %v4657 = vld [vmem:[%s4645 + $0x6c] sm:$0xf]
    %v4658 = vld [vmem:[%s4645 + $0x70] sm:$0xf]
    %v4659 = vld [vmem:[%s4645 + $0x74] sm:$0xf]
    %v4660 = vld [vmem:[%s4645 + $0x78] sm:$0xf]
    %v4661 = vld [vmem:[%s4645 + $0x7c] sm:$0xf]
    %s4662 = scalar_lea.vmem [#allocation9], 21
    %v4663 = vld [vmem:[%s4662] sm:$0x1]
    %v4665 = vperm.slane %v4663, 0
    %v4683 = vunpack.c.l.b16 %v4646
    %v4684 = vunpack.c.l.b16 %v4647
    %v4685 = vunpack.c.l.b16 %v4648
    %v4686 = vunpack.c.l.b16 %v4649
    %v4687 = vunpack.c.l.b16 %v4650
    %v4688 = vunpack.c.l.b16 %v4651
    %v4689 = vunpack.c.l.b16 %v4652
    %v4690 = vunpack.c.l.b16 %v4653
    %v4691 = vunpack.c.l.b16 %v4654
    %v4692 = vunpack.c.l.b16 %v4655
    %v4693 = vunpack.c.l.b16 %v4656
    %v4694 = vunpack.c.l.b16 %v4657
    %v4695 = vunpack.c.l.b16 %v4658
    %v4696 = vunpack.c.l.b16 %v4659
    %v4697 = vunpack.c.l.b16 %v4660
    %v4698 = vunpack.c.l.b16 %v4661
    %v4699 = vpack.c.b16 %v4684, %v4683
    %v4700 = vpack.c.b16 %v4686, %v4685
    %v4701 = vpack.c.b16 %v4688, %v4687
    %v4702 = vpack.c.b16 %v4690, %v4689
    %v4703 = vpack.c.b16 %v4692, %v4691
    %v4704 = vpack.c.b16 %v4694, %v4693
    %v4705 = vpack.c.b16 %v4696, %v4695
    %v4706 = vpack.c.b16 %v4698, %v4697
    %4715 = vmatpush.bf16.msra.mxu0 %v4706
    %4716 = vmatpush.bf16.msra.mxu0 %v4705
    %4717 = vmatpush.bf16.msra.mxu0 %v4704
    %4718 = vmatpush.bf16.msra.mxu0 %v4703
    %4719 = vmatpush.bf16.msra.mxu0 %v4702
    %4720 = vmatpush.bf16.msra.mxu0 %v4701
    %4721 = vmatpush.bf16.msra.mxu0 %v4700
    %4722 = vmatpush.bf16.msra.mxu0 %v4699
    %4723 = vmatmul.bf16.gmra.mxu0 %v4643
    %v4724 = vpop.f32.mrf.mxu0
    %v4725 = vadd.f32 %v4665, %v4724
    %v4726 = vpop.f32.mrf.mxu0
    %v4727 = vadd.f32 %v4665, %v4726
    %4728 = vmatmul.bf16.gmra.mxu0 %v4644
    %v4729 = vpop.f32.mrf.mxu0
    %v4730 = vadd.f32 %v4665, %v4729
    %v4731 = vpop.f32.mrf.mxu0
    %v4732 = vadd.f32 %v4665, %v4731
    %4733 = vdwg.mxu0
    %v4734 = vadd.f32 %v4725, %v4471
    %v4735 = vadd.f32 %v4727, %v4473
    %v4736 = vadd.f32 %v4730, %v4476
    %v4737 = vadd.f32 %v4732, %v4478
    %4738 = vst [vmem:[#allocation14] sm:$0xff] %v4734
    %4739 = vst [vmem:[#allocation14 + $0x8] sm:$0xff] %v4735
    %4740 = vst [vmem:[#allocation14 + $0x10] sm:$0xff] %v4736
    %4741 = vst [vmem:[#allocation14 + $0x18] sm:$0xff] %v4737
    // Predicated region
    $region54: #{ts2vec_forward.1} parent=1 // pred_check
      _
    $region55: #{ts2vec_forward.1} parent=1 // pred_check_branch
      %4743 = sbr.rel (0) target = $region57
    $region56: #{ts2vec_forward.1} parent=1 // pred_region
      %4745 = vsyncadd [#allocation5], 0
      %s4746 = sshll.u32 [#allocation14], 4
      %s4747 = int_to_ptr.vmem [resolvable:$true] %s4746
      %s4748 = sshll.u32 %s7, 4
      %s4749 = int_to_ptr.hbm [resolvable:$true] %s4748
      %4754 = dma.vmem_to_hbm [thread:$0]  %s4747, 512, %s4749, [#allocation5], 128, 128, 8
    $region57: #{ts2vec_forward.1} parent=1 // pred_fallthru
      _
    // Predicated region
    $region58: #{ts2vec_forward.1} parent=1 // pred_check
      _
    $region59: #{ts2vec_forward.1} parent=1 // pred_check_branch
      %4756 = sbr.rel (0) target = $region61
    $region60: #{ts2vec_forward.1} parent=1 // pred_region
      %4758 = dma.done [#allocation5], 512
    $region61: #{ts2vec_forward.1} parent=1 // pred_fallthru
      _
    %4759 = vsyncpa [#allocation4], 1
    %4760 = vsyncpa [#allocation7], 1
    %4761 = vsyncpa [#allocation10], 1
    %4762 = vsyncpa [#allocation13], 1
    %4763 = vsyncpa [#allocation5], 1

</llo_original>
